<compile_context>
chip_gen: v6e
topology: v6e:2x2x1
jax: 0.10.0
libtpu: 0.0.40
codegen_flags: <defaults>
</compile_context>

<pallas_src>
import functools
import math

import jax
import jax.numpy as jnp
from jax.experimental import pallas as pl
from jax.experimental.pallas import tpu as pltpu

LN_EPS = 1e-5
NEG_INF = -1e9  # stand-in for float('-inf') (diagonal is always unmasked)

LAYER_PARAM_NAMES = (
    "n1g", "n1b", "n2g", "n2b", "n3g", "n3b",
    "sa_qkv_w", "sa_qkv_b", "sa_out_w", "sa_out_b",
    "ca_q_w", "ca_q_b", "ca_kv_w", "ca_kv_b", "ca_out_w", "ca_out_b",
    "ff_w1", "ff_b1", "ff_w2", "ff_b2",
)
# Matmul weight matrices get bf16-cast for the MXU; biases / LN params stay f32.
MATMUL_WEIGHT_NAMES = frozenset(
    {"sa_qkv_w", "sa_out_w", "ca_q_w", "ca_kv_w", "ca_out_w", "ff_w1", "ff_w2"})


# ----------------------------- shared math helpers (jnp only) -----------------------------
def _gelu(x):
    # TODO(synk): PyTorch F.gelu default is erf-based; tanh approximation used here.
    c = math.sqrt(2.0 / math.pi)
    return 0.5 * x * (1.0 + jnp.tanh(c * (x + 0.044715 * x * x * x)))


def _layernorm(x, g, b):
    mu = jnp.mean(x, axis=-1, keepdims=True)
    var = jnp.mean((x - mu) ** 2, axis=-1, keepdims=True)
    return (x - mu) * jax.lax.rsqrt(var + LN_EPS) * g + b


# ----------------------------- in-kernel helpers -----------------------------
def _mm(a, w_bf16):
    """bf16 MXU matmul with f32 accumulation (weight already bf16)."""
    return jnp.dot(a.astype(jnp.bfloat16), w_bf16, preferred_element_type=jnp.float32)


def _split_heads(x, num_heads):
    """(T, D) -> (H, T, hd) via static lane slices + leading-axis concat
    (avoids in-kernel reshape/transpose of the minor dims)."""
    d = x.shape[-1]
    hd = d // num_heads
    return jnp.concatenate(
        [x[None, :, h * hd:(h + 1) * hd] for h in range(num_heads)], axis=0)


def _merge_heads(x):
    """(H, T, hd) -> (T, H*hd) via lane-dim concat."""
    return jnp.concatenate([x[h] for h in range(x.shape[0])], axis=-1)


def _attention(q, k, v, mask, num_heads):
    """q:(T,D), k/v:(S,D) already projected (f32). Returns ((T,D) ctx, (T,S) head-avg probs)."""
    hd = q.shape[-1] // num_heads
    scale = 1.0 / math.sqrt(hd)
    qh = _split_heads(q, num_heads).astype(jnp.bfloat16)   # (H, T, hd)
    kh = _split_heads(k, num_heads).astype(jnp.bfloat16)   # (H, S, hd)
    vh = _split_heads(v, num_heads).astype(jnp.bfloat16)   # (H, S, hd)
    s = jnp.einsum("htd,hsd->hts", qh, kh,
                   preferred_element_type=jnp.float32) * scale
    if mask is not None:
        s = s + mask[None]
    s = s - jnp.max(s, axis=-1, keepdims=True)
    p = jnp.exp(s)
    p = p * pl.reciprocal(jnp.sum(p, axis=-1, keepdims=True), approx=True)
    ctx = jnp.einsum("hts,hsd->htd", p.astype(jnp.bfloat16), vh,
                     preferred_element_type=jnp.float32)
    return _merge_heads(ctx), jnp.mean(p, axis=0)


# ----------------------------- fused decoder-stack kernel -----------------------------
def _decoder_stack_kernel(
        tgt_ref, mem_ref,
        n1g, n1b, n2g, n2b, n3g, n3b,
        sa_qkv_w, sa_qkv_b, sa_out_w, sa_out_b,
        ca_q_w, ca_q_b, ca_kv_w, ca_kv_b, ca_out_w, ca_out_b,
        ff_w1, ff_b1, ff_w2, ff_b2,
        fng, fnb,
        y_ref, *attn_refs,
        num_heads, num_layers, collect_attn):
    layer = pl.program_id(1)

    # Initialize the VMEM-resident residual stream from the input at layer 0.
    @pl.when(layer == 0)
    def _():
        y_ref[...] = tgt_ref[...]

    x = y_ref[0]        # (T, D) f32, resident across the layer axis
    mem = mem_ref[0]    # (S, D) f32
    d_model = x.shape[-1]
    seq_t = x.shape[0]

    # In-kernel causal mask (no HBM input / DMA).
    rows = jax.lax.broadcasted_iota(jnp.int32, (seq_t, seq_t), 0)
    cols = jax.lax.broadcasted_iota(jnp.int32, (seq_t, seq_t), 1)
    causal = jnp.where(rows >= cols, 0.0, NEG_INF).astype(jnp.float32)

    # --- self-attention block (pre-norm) ---
    xn = _layernorm(x, n1g[0], n1b[0])
    qkv = _mm(xn, sa_qkv_w[0]) + sa_qkv_b[0]                 # one (T,D)@(D,3D)
    q = qkv[:, :d_model]
    k = qkv[:, d_model:2 * d_model]
    v = qkv[:, 2 * d_model:]
    ctx, sa_p = _attention(q, k, v, causal, num_heads)
    x = x + _mm(ctx, sa_out_w[0]) + sa_out_b[0]              # one (T,D)@(D,D)

    # --- cross-attention block (key/value = memory, un-normed, matching PyTorch) ---
    xn = _layernorm(x, n2g[0], n2b[0])
    q = _mm(xn, ca_q_w[0]) + ca_q_b[0]                       # (T,D)@(D,D)
    kv = _mm(mem, ca_kv_w[0]) + ca_kv_b[0]                   # (S,D)@(D,2D)
    k = kv[:, :d_model]
    v = kv[:, d_model:]
    ctx, ca_p = _attention(q, k, v, None, num_heads)
    x = x + _mm(ctx, ca_out_w[0]) + ca_out_b[0]

    # --- feed-forward: Linear -> GELU -> Linear (4x expansion) ---
    xn = _layernorm(x, n3g[0], n3b[0])
    h = _gelu(_mm(xn, ff_w1[0]) + ff_b1[0])
    x = x + _mm(h, ff_w2[0]) + ff_b2[0]

    if collect_attn:
        sa_w_ref, ca_w_ref = attn_refs
        sa_w_ref[...] = sa_p[None, None]
        ca_w_ref[...] = ca_p[None, None]

    @pl.when(layer == num_layers - 1)
    def _():
        y_ref[...] = _layernorm(x, fng[...], fnb[...])[None]   # fused final LayerNorm

    @pl.when(layer < num_layers - 1)
    def _():
        y_ref[...] = x[None]


# ----------------------------- wrapper -----------------------------
@functools.partial(jax.jit, static_argnames=("num_heads", "return_attn_weights"))
def transformer_decoder_forward(tgt, memory, params, *, num_heads,
                                return_attn_weights=True):
    B, T, D = tgt.shape
    S = memory.shape[1]
    layers = params["layers"]
    L = len(layers)

    def stack(name):
        arr = jnp.stack([lp[name] for lp in layers], axis=0)
        if name in MATMUL_WEIGHT_NAMES:
            arr = arr.astype(jnp.bfloat16)       # halves weight DMA / VMEM footprint
        return arr.astype(arr.dtype)

    stacked = [stack(n) for n in LAYER_PARAM_NAMES]

    x = tgt.astype(jnp.float32)
    mem = memory.astype(jnp.float32)
    fng = params["norm_g"].astype(jnp.float32)
    fnb = params["norm_b"].astype(jnp.float32)

    act_spec = lambda seq: pl.BlockSpec((1, seq, D), lambda b, l: (b, 0, 0))
    layer_specs = [pl.BlockSpec((1,) + a.shape[1:], lambda b, l: (l, 0, 0))
                   for a in stacked]
    const_spec = pl.BlockSpec((1, D), lambda b, l: (0, 0))
    in_specs = [act_spec(T), act_spec(S)] + layer_specs + [const_spec, const_spec]

    y_spec = pl.BlockSpec((1, T, D), lambda b, l: (b, 0, 0))   # resident across layer axis
    if return_attn_weights:
        out_shape = (jax.ShapeDtypeStruct((B, T, D), jnp.float32),
                     jax.ShapeDtypeStruct((L, B, T, T), jnp.float32),
                     jax.ShapeDtypeStruct((L, B, T, S), jnp.float32))
        out_specs = (y_spec,
                     pl.BlockSpec((1, 1, T, T), lambda b, l: (l, b, 0, 0)),
                     pl.BlockSpec((1, 1, T, S), lambda b, l: (l, b, 0, 0)))
    else:
        out_shape = jax.ShapeDtypeStruct((B, T, D), jnp.float32)
        out_specs = y_spec

    kernel = functools.partial(_decoder_stack_kernel,
                               num_heads=num_heads, num_layers=L,
                               collect_attn=return_attn_weights)

    result = pl.pallas_call(
        kernel,
        grid=(B, L),                      # batch parallel (megacore), layers arbitrary
        in_specs=in_specs,
        out_specs=out_specs,
        out_shape=out_shape,
        compiler_params=pltpu.CompilerParams(
            dimension_semantics=("parallel", "arbitrary"),
            vmem_limit_bytes=48 * 1024 * 1024),
    )(x, mem, *stacked, fng, fnb)

    if return_attn_weights:
        y, sa_w, ca_w = result
        attn = {f"layer_{i}": {"self_attn_weights": sa_w[i],
                               "cross_attn_weights": ca_w[i]} for i in range(L)}
    else:
        y = result
        attn = {}
    return y, {"attn_weights": attn}


# ----------------------------- parameter init (synthetic, deterministic) -----------------------------
def init_decoder_params(key, num_layers, d_model, dim_ff):
    def dense(k, shape, scale=0.02):
        return (scale * jax.random.normal(k, shape)).astype(jnp.float32)

    layers = []
    for i in range(num_layers):
        k = jax.random.fold_in(key, i)
        ks = jax.random.split(k, 10)
        layers.append(dict(
            n1g=jnp.ones((1, d_model), jnp.float32), n1b=jnp.zeros((1, d_model), jnp.float32),
            n2g=jnp.ones((1, d_model), jnp.float32), n2b=jnp.zeros((1, d_model), jnp.float32),
            n3g=jnp.ones((1, d_model), jnp.float32), n3b=jnp.zeros((1, d_model), jnp.float32),
            sa_qkv_w=dense(ks[0], (d_model, 3 * d_model)),
            sa_qkv_b=dense(ks[1], (1, 3 * d_model)),
            sa_out_w=dense(ks[2], (d_model, d_model)),
            sa_out_b=jnp.zeros((1, d_model), jnp.float32),
            ca_q_w=dense(ks[3], (d_model, d_model)),
            ca_q_b=jnp.zeros((1, d_model), jnp.float32),
            ca_kv_w=dense(ks[4], (d_model, 2 * d_model)),
            ca_kv_b=jnp.zeros((1, 2 * d_model), jnp.float32),
            ca_out_w=dense(ks[5], (d_model, d_model)),
            ca_out_b=jnp.zeros((1, d_model), jnp.float32),
            ff_w1=dense(ks[6], (d_model, dim_ff)),
            ff_b1=dense(ks[7], (1, dim_ff)),
            ff_w2=dense(ks[8], (dim_ff, d_model)),
            ff_b2=dense(ks[9], (1, d_model)),
        ))
    return {"layers": layers,
            "norm_g": jnp.ones((1, d_model), jnp.float32),
            "norm_b": jnp.zeros((1, d_model), jnp.float32)}


# ----------------------------- pure-JAX reference (mirrors kernel numerics) -----------------------------
def _ref_mm(a, w):
    return jnp.dot(a.astype(jnp.bfloat16), w.astype(jnp.bfloat16),
                   preferred_element_type=jnp.float32)


def _ref_attention(q, k, v, mask, num_heads):
    B, T, D = q.shape
    S = k.shape[1]
    hd = D // num_heads
    qh = q.reshape(B, T, num_heads, hd).transpose(0, 2, 1, 3).astype(jnp.bfloat16)
    kh = k.reshape(B, S, num_heads, hd).transpose(0, 2, 1, 3).astype(jnp.bfloat16)
    vh = v.reshape(B, S, num_heads, hd).transpose(0, 2, 1, 3).astype(jnp.bfloat16)
    s = jnp.einsum("bhtd,bhsd->bhts", qh, kh,
                   preferred_element_type=jnp.float32) / math.sqrt(hd)
    if mask is not None:
        s = s + mask
    p = jax.nn.softmax(s, axis=-1)
    ctx = jnp.einsum("bhts,bhsd->bhtd", p.astype(jnp.bfloat16), vh,
                     preferred_element_type=jnp.float32)
    ctx = ctx.transpose(0, 2, 1, 3).reshape(B, T, D)
    return ctx, jnp.mean(p, axis=1)


def ref_decoder_forward(tgt, memory, params, num_heads):
    B, T, D = tgt.shape
    mask = jnp.where(jnp.triu(jnp.ones((T, T), jnp.float32), k=1) == 1.0, NEG_INF, 0.0)
    x = tgt
    attn = {}
    for i, lp in enumerate(params["layers"]):
        xn = _layernorm(x, lp["n1g"], lp["n1b"])
        qkv = _ref_mm(xn, lp["sa_qkv_w"]) + lp["sa_qkv_b"]
        q, k, v = qkv[..., :D], qkv[..., D:2 * D], qkv[..., 2 * D:]
        ctx, sa_p = _ref_attention(q, k, v, mask, num_heads)
        x = x + _ref_mm(ctx, lp["sa_out_w"]) + lp["sa_out_b"]

        xn = _layernorm(x, lp["n2g"], lp["n2b"])
        q = _ref_mm(xn, lp["ca_q_w"]) + lp["ca_q_b"]
        kv = _ref_mm(memory, lp["ca_kv_w"]) + lp["ca_kv_b"]
        k, v = kv[..., :D], kv[..., D:]
        ctx, ca_p = _ref_attention(q, k, v, None, num_heads)
        x = x + _ref_mm(ctx, lp["ca_out_w"]) + lp["ca_out_b"]

        xn = _layernorm(x, lp["n3g"], lp["n3b"])
        h = _gelu(_ref_mm(xn, lp["ff_w1"]) + lp["ff_b1"])
        x = x + _ref_mm(h, lp["ff_w2"]) + lp["ff_b2"]
        attn[f"layer_{i}"] = {"self_attn_weights": sa_p, "cross_attn_weights": ca_p}
    return _layernorm(x, params["norm_g"], params["norm_b"]), attn


# ----------------------------- main -----------------------------
if __name__ == "__main__":
    B, T, S, D, H, L = 2, 8, 16, 32, 4, 2
    key = jax.random.PRNGKey(0)
    kt, km, kp = jax.random.split(key, 3)
    tgt = jax.random.normal(kt, (B, T, D), jnp.float32)
    memory = jax.random.normal(km, (B, S, D), jnp.float32)
    params = init_decoder_params(kp, L, D, 4 * D)

    out, aux = transformer_decoder_forward(tgt, memory, params, num_heads=H)
    out = jax.block_until_ready(out)

    ref_out, _ = ref_decoder_forward(tgt, memory, params, H)
    assert out.shape == (B, T, D)
    max_err = float(jnp.max(jnp.abs(out - ref_out)))
    assert jnp.allclose(out, ref_out, atol=3e-3, rtol=3e-3), max_err

    for i in range(L):
        w = aux["attn_weights"][f"layer_{i}"]
        assert w["self_attn_weights"].shape == (B, T, T)
        assert w["cross_attn_weights"].shape == (B, T, S)
        assert jnp.allclose(jnp.sum(w["self_attn_weights"], axis=-1), 1.0, atol=1e-2)
        assert jnp.allclose(jnp.sum(w["cross_attn_weights"], axis=-1), 1.0, atol=1e-2)

    print("KERNEL_OK")
</pallas_src>

<mosaic_0001>
module attributes {stable_mosaic.version = 11 : i64} {
  func.func @_decoder_stack_kernel(%arg0: i32, %arg1: i32, %arg2: memref<1x8x32xf32, #tpu.memory_space<vmem>>, %arg3: memref<1x16x32xf32, #tpu.memory_space<vmem>>, %arg4: memref<1x1x32xf32, #tpu.memory_space<vmem>>, %arg5: memref<1x1x32xf32, #tpu.memory_space<vmem>>, %arg6: memref<1x1x32xf32, #tpu.memory_space<vmem>>, %arg7: memref<1x1x32xf32, #tpu.memory_space<vmem>>, %arg8: memref<1x1x32xf32, #tpu.memory_space<vmem>>, %arg9: memref<1x1x32xf32, #tpu.memory_space<vmem>>, %arg10: memref<1x32x96xbf16, #tpu.memory_space<vmem>>, %arg11: memref<1x1x96xf32, #tpu.memory_space<vmem>>, %arg12: memref<1x32x32xbf16, #tpu.memory_space<vmem>>, %arg13: memref<1x1x32xf32, #tpu.memory_space<vmem>>, %arg14: memref<1x32x32xbf16, #tpu.memory_space<vmem>>, %arg15: memref<1x1x32xf32, #tpu.memory_space<vmem>>, %arg16: memref<1x32x64xbf16, #tpu.memory_space<vmem>>, %arg17: memref<1x1x64xf32, #tpu.memory_space<vmem>>, %arg18: memref<1x32x32xbf16, #tpu.memory_space<vmem>>, %arg19: memref<1x1x32xf32, #tpu.memory_space<vmem>>, %arg20: memref<1x32x128xbf16, #tpu.memory_space<vmem>>, %arg21: memref<1x1x128xf32, #tpu.memory_space<vmem>>, %arg22: memref<1x128x32xbf16, #tpu.memory_space<vmem>>, %arg23: memref<1x1x32xf32, #tpu.memory_space<vmem>>, %arg24: memref<1x32xf32, #tpu.memory_space<vmem>>, %arg25: memref<1x32xf32, #tpu.memory_space<vmem>>, %arg26: memref<1x8x32xf32, #tpu.memory_space<vmem>>, %arg27: memref<1x1x8x8xf32, #tpu.memory_space<vmem>>, %arg28: memref<1x1x8x16xf32, #tpu.memory_space<vmem>>) attributes {dimension_semantics = [#tpu.dimension_semantics<parallel>, #tpu.dimension_semantics<arbitrary>], iteration_bounds = array<i64: 2, 2>, scalar_prefetch = 0 : i64, scratch_operands = 0 : i64, tpu.core_type = #tpu.core_type<tc>, window_params = [{transform_indices = @transform_0, window_bounds = array<i64: 1, 8, 32>}, {transform_indices = @transform_1, window_bounds = array<i64: 1, 16, 32>}, {transform_indices = @transform_2, window_bounds = array<i64: 1, 1, 32>}, {transform_indices = @transform_3, window_bounds = array<i64: 1, 1, 32>}, {transform_indices = @transform_4, window_bounds = array<i64: 1, 1, 32>}, {transform_indices = @transform_5, window_bounds = array<i64: 1, 1, 32>}, {transform_indices = @transform_6, window_bounds = array<i64: 1, 1, 32>}, {transform_indices = @transform_7, window_bounds = array<i64: 1, 1, 32>}, {transform_indices = @transform_8, window_bounds = array<i64: 1, 32, 96>}, {transform_indices = @transform_9, window_bounds = array<i64: 1, 1, 96>}, {transform_indices = @transform_10, window_bounds = array<i64: 1, 32, 32>}, {transform_indices = @transform_11, window_bounds = array<i64: 1, 1, 32>}, {transform_indices = @transform_12, window_bounds = array<i64: 1, 32, 32>}, {transform_indices = @transform_13, window_bounds = array<i64: 1, 1, 32>}, {transform_indices = @transform_14, window_bounds = array<i64: 1, 32, 64>}, {transform_indices = @transform_15, window_bounds = array<i64: 1, 1, 64>}, {transform_indices = @transform_16, window_bounds = array<i64: 1, 32, 32>}, {transform_indices = @transform_17, window_bounds = array<i64: 1, 1, 32>}, {transform_indices = @transform_18, window_bounds = array<i64: 1, 32, 128>}, {transform_indices = @transform_19, window_bounds = array<i64: 1, 1, 128>}, {transform_indices = @transform_20, window_bounds = array<i64: 1, 128, 32>}, {transform_indices = @transform_21, window_bounds = array<i64: 1, 1, 32>}, {pipeline_mode = #tpu.pipeline_mode<synchronous>, transform_indices = @transform_22, window_bounds = array<i64: 1, 32>}, {pipeline_mode = #tpu.pipeline_mode<synchronous>, transform_indices = @transform_23, window_bounds = array<i64: 1, 32>}, {transform_indices = @transform_24, window_bounds = array<i64: 1, 8, 32>}, {transform_indices = @transform_25, window_bounds = array<i64: 1, 1, 8, 8>}, {transform_indices = @transform_26, window_bounds = array<i64: 1, 1, 8, 16>}]} {
    %c0_i32 = arith.constant 0 : i32
    %0 = arith.cmpi eq, %arg1, %c0_i32 : i32
    %1 = arith.extui %0 : i1 to i32
    %c0_i32_0 = arith.constant 0 : i32
    %2 = arith.cmpi ne, %1, %c0_i32_0 : i32
    scf.if %2 {
      %c0_118 = arith.constant 0 : index
      %c0_119 = arith.constant 0 : index
      %c0_120 = arith.constant 0 : index
      %295 = vector.load %arg2[%c0_118, %c0_119, %c0_120] : memref<1x8x32xf32, #tpu.memory_space<vmem>>, vector<1x8x32xf32>
      %c0_121 = arith.constant 0 : index
      %c0_122 = arith.constant 0 : index
      %c0_123 = arith.constant 0 : index
      %296 = vector.load %arg26[%c0_121, %c0_122, %c0_123] : memref<1x8x32xf32, #tpu.memory_space<vmem>>, vector<1x8x32xf32>
      tpu.vector_store %arg26[%c0_121, %c0_122, %c0_123], %295 {strides = array<i32>} : memref<1x8x32xf32, #tpu.memory_space<vmem>>, vector<1x8x32xf32>,
    } else {
    }
    %c0 = arith.constant 0 : index
    %c0_1 = arith.constant 0 : index
    %c0_2 = arith.constant 0 : index
    %3 = vector.load %arg26[%c0, %c0_1, %c0_2] : memref<1x8x32xf32, #tpu.memory_space<vmem>>, vector<1x8x32xf32>
    %4 = vector.shape_cast %3 : vector<1x8x32xf32> to vector<8x32xf32>
    %c0_3 = arith.constant 0 : index
    %c0_4 = arith.constant 0 : index
    %c0_5 = arith.constant 0 : index
    %5 = vector.load %arg3[%c0_3, %c0_4, %c0_5] : memref<1x16x32xf32, #tpu.memory_space<vmem>>, vector<1x16x32xf32>
    %6 = vector.shape_cast %5 : vector<1x16x32xf32> to vector<16x32xf32>
    %7 = tpu.iota {dimensions = array<i32: 0>} : vector<8x8xi32>
    %8 = tpu.iota {dimensions = array<i32: 1>} : vector<8x8xi32>
    %9 = arith.cmpi sge, %7, %8 : vector<8x8xi32>
    %cst = arith.constant 0.000000e+00 : f32
    %cst_6 = arith.constant -1.000000e+09 : f32
    %10 = vector.broadcast %cst : f32 to vector<8x8xf32>
    %11 = vector.broadcast %cst_6 : f32 to vector<8x8xf32>
    %12 = arith.select %9, %10, %11 : vector<8x8xi1>, vector<8x8xf32>
    %c0_7 = arith.constant 0 : index
    %c0_8 = arith.constant 0 : index
    %c0_9 = arith.constant 0 : index
    %13 = vector.load %arg4[%c0_7, %c0_8, %c0_9] : memref<1x1x32xf32, #tpu.memory_space<vmem>>, vector<1x1x32xf32>
    %14 = vector.shape_cast %13 : vector<1x1x32xf32> to vector<1x32xf32>
    %c0_10 = arith.constant 0 : index
    %c0_11 = arith.constant 0 : index
    %c0_12 = arith.constant 0 : index
    %15 = vector.load %arg5[%c0_10, %c0_11, %c0_12] : memref<1x1x32xf32, #tpu.memory_space<vmem>>, vector<1x1x32xf32>
    %16 = vector.shape_cast %15 : vector<1x1x32xf32> to vector<1x32xf32>
    %cst_13 = arith.constant dense<0.000000e+00> : vector<8xf32>
    %17 = vector.multi_reduction <add>, %4, %cst_13 [1] : vector<8x32xf32> to vector<8xf32>
    %18 = vector.shape_cast %17 : vector<8xf32> to vector<8x1xf32>
    %cst_14 = arith.constant 3.200000e+01 : f32
    %19 = vector.broadcast %cst_14 : f32 to vector<8x1xf32>
    %20 = arith.divf %18, %19 : vector<8x1xf32>
    %21 = vector.broadcast %20 : vector<8x1xf32> to vector<8x32xf32>
    %22 = arith.subf %4, %21 : vector<8x32xf32>
    %23 = arith.mulf %22, %22 : vector<8x32xf32>
    %cst_15 = arith.constant dense<0.000000e+00> : vector<8xf32>
    %24 = vector.multi_reduction <add>, %23, %cst_15 [1] : vector<8x32xf32> to vector<8xf32>
    %25 = vector.shape_cast %24 : vector<8xf32> to vector<8x1xf32>
    %cst_16 = arith.constant 3.200000e+01 : f32
    %26 = vector.broadcast %cst_16 : f32 to vector<8x1xf32>
    %27 = arith.divf %25, %26 : vector<8x1xf32>
    %28 = vector.broadcast %20 : vector<8x1xf32> to vector<8x32xf32>
    %29 = arith.subf %4, %28 : vector<8x32xf32>
    %cst_17 = arith.constant 9.99999974E-6 : f32
    %30 = vector.broadcast %cst_17 : f32 to vector<8x1xf32>
    %31 = arith.addf %27, %30 : vector<8x1xf32>
    %32 = math.rsqrt %31 : vector<8x1xf32>
    %33 = vector.broadcast %32 : vector<8x1xf32> to vector<8x32xf32>
    %34 = arith.mulf %29, %33 : vector<8x32xf32>
    %35 = vector.broadcast %14 : vector<1x32xf32> to vector<8x32xf32>
    %36 = arith.mulf %34, %35 : vector<8x32xf32>
    %37 = vector.broadcast %16 : vector<1x32xf32> to vector<8x32xf32>
    %38 = arith.addf %36, %37 : vector<8x32xf32>
    %c0_18 = arith.constant 0 : index
    %c0_19 = arith.constant 0 : index
    %c0_20 = arith.constant 0 : index
    %39 = vector.load %arg10[%c0_18, %c0_19, %c0_20] : memref<1x32x96xbf16, #tpu.memory_space<vmem>>, vector<1x32x96xbf16>
    %40 = vector.shape_cast %39 : vector<1x32x96xbf16> to vector<32x96xbf16>
    %41 = arith.truncf %38 : vector<8x32xf32> to vector<8x32xbf16>
    %cst_21 = arith.constant dense<0.000000e+00> : vector<8x96xf32>
    %42 = tpu.matmul %41, %40, %cst_21 {dimension_numbers = #tpu.dot_dimension_numbers<[1], [0], [0], [1], [0, 0, 1, 1], [], []>} : vector<8x32xbf16>, vector<32x96xbf16>, vector<8x96xf32> -> vector<8x96xf32>
    %c0_22 = arith.constant 0 : index
    %c0_23 = arith.constant 0 : index
    %c0_24 = arith.constant 0 : index
    %43 = vector.load %arg11[%c0_22, %c0_23, %c0_24] : memref<1x1x96xf32, #tpu.memory_space<vmem>>, vector<1x1x96xf32>
    %44 = vector.shape_cast %43 : vector<1x1x96xf32> to vector<1x96xf32>
    %45 = vector.broadcast %44 : vector<1x96xf32> to vector<8x96xf32>
    %46 = arith.addf %42, %45 : vector<8x96xf32>
    %47 = vector.extract_strided_slice %46 {offsets = [0, 0], sizes = [8, 32], strides = [1, 1]} : vector<8x96xf32> to vector<8x32xf32>
    %48 = vector.extract_strided_slice %46 {offsets = [0, 32], sizes = [8, 32], strides = [1, 1]} : vector<8x96xf32> to vector<8x32xf32>
    %49 = vector.extract_strided_slice %46 {offsets = [0, 64], sizes = [8, 32], strides = [1, 1]} : vector<8x96xf32> to vector<8x32xf32>
    %50 = vector.extract_strided_slice %47 {offsets = [0, 0], sizes = [8, 8], strides = [1, 1]} : vector<8x32xf32> to vector<8x8xf32>
    %51 = vector.shape_cast %50 : vector<8x8xf32> to vector<1x8x8xf32>
    %52 = vector.extract_strided_slice %47 {offsets = [0, 8], sizes = [8, 8], strides = [1, 1]} : vector<8x32xf32> to vector<8x8xf32>
    %53 = vector.shape_cast %52 : vector<8x8xf32> to vector<1x8x8xf32>
    %54 = vector.extract_strided_slice %47 {offsets = [0, 16], sizes = [8, 8], strides = [1, 1]} : vector<8x32xf32> to vector<8x8xf32>
    %55 = vector.shape_cast %54 : vector<8x8xf32> to vector<1x8x8xf32>
    %56 = vector.extract_strided_slice %47 {offsets = [0, 24], sizes = [8, 8], strides = [1, 1]} : vector<8x32xf32> to vector<8x8xf32>
    %57 = vector.shape_cast %56 : vector<8x8xf32> to vector<1x8x8xf32>
    %58 = tpu.concatenate %51, %53, %55, %57 in 0 : vector<1x8x8xf32>, vector<1x8x8xf32>, vector<1x8x8xf32>, vector<1x8x8xf32> -> vector<4x8x8xf32>
    %59 = arith.truncf %58 : vector<4x8x8xf32> to vector<4x8x8xbf16>
    %60 = vector.extract_strided_slice %48 {offsets = [0, 0], sizes = [8, 8], strides = [1, 1]} : vector<8x32xf32> to vector<8x8xf32>
    %61 = vector.shape_cast %60 : vector<8x8xf32> to vector<1x8x8xf32>
    %62 = vector.extract_strided_slice %48 {offsets = [0, 8], sizes = [8, 8], strides = [1, 1]} : vector<8x32xf32> to vector<8x8xf32>
    %63 = vector.shape_cast %62 : vector<8x8xf32> to vector<1x8x8xf32>
    %64 = vector.extract_strided_slice %48 {offsets = [0, 16], sizes = [8, 8], strides = [1, 1]} : vector<8x32xf32> to vector<8x8xf32>
    %65 = vector.shape_cast %64 : vector<8x8xf32> to vector<1x8x8xf32>
    %66 = vector.extract_strided_slice %48 {offsets = [0, 24], sizes = [8, 8], strides = [1, 1]} : vector<8x32xf32> to vector<8x8xf32>
    %67 = vector.shape_cast %66 : vector<8x8xf32> to vector<1x8x8xf32>
    %68 = tpu.concatenate %61, %63, %65, %67 in 0 : vector<1x8x8xf32>, vector<1x8x8xf32>, vector<1x8x8xf32>, vector<1x8x8xf32> -> vector<4x8x8xf32>
    %69 = arith.truncf %68 : vector<4x8x8xf32> to vector<4x8x8xbf16>
    %70 = vector.extract_strided_slice %49 {offsets = [0, 0], sizes = [8, 8], strides = [1, 1]} : vector<8x32xf32> to vector<8x8xf32>
    %71 = vector.shape_cast %70 : vector<8x8xf32> to vector<1x8x8xf32>
    %72 = vector.extract_strided_slice %49 {offsets = [0, 8], sizes = [8, 8], strides = [1, 1]} : vector<8x32xf32> to vector<8x8xf32>
    %73 = vector.shape_cast %72 : vector<8x8xf32> to vector<1x8x8xf32>
    %74 = vector.extract_strided_slice %49 {offsets = [0, 16], sizes = [8, 8], strides = [1, 1]} : vector<8x32xf32> to vector<8x8xf32>
    %75 = vector.shape_cast %74 : vector<8x8xf32> to vector<1x8x8xf32>
    %76 = vector.extract_strided_slice %49 {offsets = [0, 24], sizes = [8, 8], strides = [1, 1]} : vector<8x32xf32> to vector<8x8xf32>
    %77 = vector.shape_cast %76 : vector<8x8xf32> to vector<1x8x8xf32>
    %78 = tpu.concatenate %71, %73, %75, %77 in 0 : vector<1x8x8xf32>, vector<1x8x8xf32>, vector<1x8x8xf32>, vector<1x8x8xf32> -> vector<4x8x8xf32>
    %79 = arith.truncf %78 : vector<4x8x8xf32> to vector<4x8x8xbf16>
    "tpu.trace_start"() <{level = 10 : i32, message = "htd,hsd->hts"}> : () -> ()
    %cst_25 = arith.constant dense<0.000000e+00> : vector<4x8x8xf32>
    %80 = tpu.matmul %59, %69, %cst_25 {dimension_numbers = #tpu.dot_dimension_numbers<[2], [2], [1], [1], [0, 0, 0, 1, 1, 1], [0], [0]>} : vector<4x8x8xbf16>, vector<4x8x8xbf16>, vector<4x8x8xf32> -> vector<4x8x8xf32>
    "tpu.trace_stop"() : () -> ()
    %cst_26 = arith.constant 0.353553385 : f32
    %81 = vector.broadcast %cst_26 : f32 to vector<4x8x8xf32>
    %82 = arith.mulf %80, %81 : vector<4x8x8xf32>
    %83 = vector.shape_cast %12 : vector<8x8xf32> to vector<1x8x8xf32>
    %84 = vector.broadcast %83 : vector<1x8x8xf32> to vector<4x8x8xf32>
    %85 = arith.addf %82, %84 : vector<4x8x8xf32>
    %cst_27 = arith.constant dense<0xFF800000> : vector<4x8xf32>
    %86 = vector.multi_reduction <maximumf>, %85, %cst_27 [2] : vector<4x8x8xf32> to vector<4x8xf32>
    %87 = vector.shape_cast %86 : vector<4x8xf32> to vector<4x8x1xf32>
    %88 = vector.broadcast %87 : vector<4x8x1xf32> to vector<4x8x8xf32>
    %89 = arith.subf %85, %88 : vector<4x8x8xf32>
    %90 = math.exp %89 : vector<4x8x8xf32>
    %cst_28 = arith.constant dense<0.000000e+00> : vector<4x8xf32>
    %91 = vector.multi_reduction <add>, %90, %cst_28 [2] : vector<4x8x8xf32> to vector<4x8xf32>
    %92 = vector.shape_cast %91 : vector<4x8xf32> to vector<4x8x1xf32>
    %93 = tpu.reciprocal %92 {approx = true} : vector<4x8x1xf32> -> vector<4x8x1xf32>
    %94 = vector.broadcast %93 : vector<4x8x1xf32> to vector<4x8x8xf32>
    %95 = arith.mulf %90, %94 : vector<4x8x8xf32>
    %96 = arith.truncf %95 : vector<4x8x8xf32> to vector<4x8x8xbf16>
    "tpu.trace_start"() <{level = 10 : i32, message = "hts,hsd->htd"}> : () -> ()
    %cst_29 = arith.constant dense<0.000000e+00> : vector<4x8x8xf32>
    %97 = tpu.matmul %96, %79, %cst_29 {dimension_numbers = #tpu.dot_dimension_numbers<[2], [1], [1], [2], [0, 0, 0, 1, 1, 2], [0], [0]>} : vector<4x8x8xbf16>, vector<4x8x8xbf16>, vector<4x8x8xf32> -> vector<4x8x8xf32>
    "tpu.trace_stop"() : () -> ()
    %98 = vector.extract_strided_slice %97 {offsets = [0, 0, 0], sizes = [1, 8, 8], strides = [1, 1, 1]} : vector<4x8x8xf32> to vector<1x8x8xf32>
    %99 = vector.shape_cast %98 : vector<1x8x8xf32> to vector<8x8xf32>
    %100 = vector.extract_strided_slice %97 {offsets = [1, 0, 0], sizes = [1, 8, 8], strides = [1, 1, 1]} : vector<4x8x8xf32> to vector<1x8x8xf32>
    %101 = vector.shape_cast %100 : vector<1x8x8xf32> to vector<8x8xf32>
    %102 = vector.extract_strided_slice %97 {offsets = [2, 0, 0], sizes = [1, 8, 8], strides = [1, 1, 1]} : vector<4x8x8xf32> to vector<1x8x8xf32>
    %103 = vector.shape_cast %102 : vector<1x8x8xf32> to vector<8x8xf32>
    %104 = vector.extract_strided_slice %97 {offsets = [3, 0, 0], sizes = [1, 8, 8], strides = [1, 1, 1]} : vector<4x8x8xf32> to vector<1x8x8xf32>
    %105 = vector.shape_cast %104 : vector<1x8x8xf32> to vector<8x8xf32>
    %106 = tpu.concatenate %99, %101, %103, %105 in 1 : vector<8x8xf32>, vector<8x8xf32>, vector<8x8xf32>, vector<8x8xf32> -> vector<8x32xf32>
    %cst_30 = arith.constant dense<0.000000e+00> : vector<8x8xf32>
    %107 = vector.multi_reduction <add>, %95, %cst_30 [0] : vector<4x8x8xf32> to vector<8x8xf32>
    %cst_31 = arith.constant 4.000000e+00 : f32
    %108 = vector.broadcast %cst_31 : f32 to vector<8x8xf32>
    %109 = arith.divf %107, %108 : vector<8x8xf32>
    %c0_32 = arith.constant 0 : index
    %c0_33 = arith.constant 0 : index
    %c0_34 = arith.constant 0 : index
    %110 = vector.load %arg12[%c0_32, %c0_33, %c0_34] : memref<1x32x32xbf16, #tpu.memory_space<vmem>>, vector<1x32x32xbf16>
    %111 = vector.shape_cast %110 : vector<1x32x32xbf16> to vector<32x32xbf16>
    %112 = arith.truncf %106 : vector<8x32xf32> to vector<8x32xbf16>
    %cst_35 = arith.constant dense<0.000000e+00> : vector<8x32xf32>
    %113 = tpu.matmul %112, %111, %cst_35 {dimension_numbers = #tpu.dot_dimension_numbers<[1], [0], [0], [1], [0, 0, 1, 1], [], []>} : vector<8x32xbf16>, vector<32x32xbf16>, vector<8x32xf32> -> vector<8x32xf32>
    %114 = arith.addf %4, %113 : vector<8x32xf32>
    %c0_36 = arith.constant 0 : index
    %c0_37 = arith.constant 0 : index
    %c0_38 = arith.constant 0 : index
    %115 = vector.load %arg13[%c0_36, %c0_37, %c0_38] : memref<1x1x32xf32, #tpu.memory_space<vmem>>, vector<1x1x32xf32>
    %116 = vector.shape_cast %115 : vector<1x1x32xf32> to vector<1x32xf32>
    %117 = vector.broadcast %116 : vector<1x32xf32> to vector<8x32xf32>
    %118 = arith.addf %114, %117 : vector<8x32xf32>
    %c0_39 = arith.constant 0 : index
    %c0_40 = arith.constant 0 : index
    %c0_41 = arith.constant 0 : index
    %119 = vector.load %arg6[%c0_39, %c0_40, %c0_41] : memref<1x1x32xf32, #tpu.memory_space<vmem>>, vector<1x1x32xf32>
    %120 = vector.shape_cast %119 : vector<1x1x32xf32> to vector<1x32xf32>
    %c0_42 = arith.constant 0 : index
    %c0_43 = arith.constant 0 : index
    %c0_44 = arith.constant 0 : index
    %121 = vector.load %arg7[%c0_42, %c0_43, %c0_44] : memref<1x1x32xf32, #tpu.memory_space<vmem>>, vector<1x1x32xf32>
    %122 = vector.shape_cast %121 : vector<1x1x32xf32> to vector<1x32xf32>
    %cst_45 = arith.constant dense<0.000000e+00> : vector<8xf32>
    %123 = vector.multi_reduction <add>, %118, %cst_45 [1] : vector<8x32xf32> to vector<8xf32>
    %124 = vector.shape_cast %123 : vector<8xf32> to vector<8x1xf32>
    %cst_46 = arith.constant 3.200000e+01 : f32
    %125 = vector.broadcast %cst_46 : f32 to vector<8x1xf32>
    %126 = arith.divf %124, %125 : vector<8x1xf32>
    %127 = vector.broadcast %126 : vector<8x1xf32> to vector<8x32xf32>
    %128 = arith.subf %118, %127 : vector<8x32xf32>
    %129 = arith.mulf %128, %128 : vector<8x32xf32>
    %cst_47 = arith.constant dense<0.000000e+00> : vector<8xf32>
    %130 = vector.multi_reduction <add>, %129, %cst_47 [1] : vector<8x32xf32> to vector<8xf32>
    %131 = vector.shape_cast %130 : vector<8xf32> to vector<8x1xf32>
    %cst_48 = arith.constant 3.200000e+01 : f32
    %132 = vector.broadcast %cst_48 : f32 to vector<8x1xf32>
    %133 = arith.divf %131, %132 : vector<8x1xf32>
    %134 = vector.broadcast %126 : vector<8x1xf32> to vector<8x32xf32>
    %135 = arith.subf %118, %134 : vector<8x32xf32>
    %cst_49 = arith.constant 9.99999974E-6 : f32
    %136 = vector.broadcast %cst_49 : f32 to vector<8x1xf32>
    %137 = arith.addf %133, %136 : vector<8x1xf32>
    %138 = math.rsqrt %137 : vector<8x1xf32>
    %139 = vector.broadcast %138 : vector<8x1xf32> to vector<8x32xf32>
    %140 = arith.mulf %135, %139 : vector<8x32xf32>
    %141 = vector.broadcast %120 : vector<1x32xf32> to vector<8x32xf32>
    %142 = arith.mulf %140, %141 : vector<8x32xf32>
    %143 = vector.broadcast %122 : vector<1x32xf32> to vector<8x32xf32>
    %144 = arith.addf %142, %143 : vector<8x32xf32>
    %c0_50 = arith.constant 0 : index
    %c0_51 = arith.constant 0 : index
    %c0_52 = arith.constant 0 : index
    %145 = vector.load %arg14[%c0_50, %c0_51, %c0_52] : memref<1x32x32xbf16, #tpu.memory_space<vmem>>, vector<1x32x32xbf16>
    %146 = vector.shape_cast %145 : vector<1x32x32xbf16> to vector<32x32xbf16>
    %147 = arith.truncf %144 : vector<8x32xf32> to vector<8x32xbf16>
    %cst_53 = arith.constant dense<0.000000e+00> : vector<8x32xf32>
    %148 = tpu.matmul %147, %146, %cst_53 {dimension_numbers = #tpu.dot_dimension_numbers<[1], [0], [0], [1], [0, 0, 1, 1], [], []>} : vector<8x32xbf16>, vector<32x32xbf16>, vector<8x32xf32> -> vector<8x32xf32>
    %c0_54 = arith.constant 0 : index
    %c0_55 = arith.constant 0 : index
    %c0_56 = arith.constant 0 : index
    %149 = vector.load %arg15[%c0_54, %c0_55, %c0_56] : memref<1x1x32xf32, #tpu.memory_space<vmem>>, vector<1x1x32xf32>
    %150 = vector.shape_cast %149 : vector<1x1x32xf32> to vector<1x32xf32>
    %151 = vector.broadcast %150 : vector<1x32xf32> to vector<8x32xf32>
    %152 = arith.addf %148, %151 : vector<8x32xf32>
    %c0_57 = arith.constant 0 : index
    %c0_58 = arith.constant 0 : index
    %c0_59 = arith.constant 0 : index
    %153 = vector.load %arg16[%c0_57, %c0_58, %c0_59] : memref<1x32x64xbf16, #tpu.memory_space<vmem>>, vector<1x32x64xbf16>
    %154 = vector.shape_cast %153 : vector<1x32x64xbf16> to vector<32x64xbf16>
    %155 = arith.truncf %6 : vector<16x32xf32> to vector<16x32xbf16>
    %cst_60 = arith.constant dense<0.000000e+00> : vector<16x64xf32>
    %156 = tpu.matmul %155, %154, %cst_60 {dimension_numbers = #tpu.dot_dimension_numbers<[1], [0], [0], [1], [0, 0, 1, 1], [], []>} : vector<16x32xbf16>, vector<32x64xbf16>, vector<16x64xf32> -> vector<16x64xf32>
    %c0_61 = arith.constant 0 : index
    %c0_62 = arith.constant 0 : index
    %c0_63 = arith.constant 0 : index
    %157 = vector.load %arg17[%c0_61, %c0_62, %c0_63] : memref<1x1x64xf32, #tpu.memory_space<vmem>>, vector<1x1x64xf32>
    %158 = vector.shape_cast %157 : vector<1x1x64xf32> to vector<1x64xf32>
    %159 = vector.broadcast %158 : vector<1x64xf32> to vector<16x64xf32>
    %160 = arith.addf %156, %159 : vector<16x64xf32>
    %161 = vector.extract_strided_slice %160 {offsets = [0, 0], sizes = [16, 32], strides = [1, 1]} : vector<16x64xf32> to vector<16x32xf32>
    %162 = vector.extract_strided_slice %160 {offsets = [0, 32], sizes = [16, 32], strides = [1, 1]} : vector<16x64xf32> to vector<16x32xf32>
    %163 = vector.extract_strided_slice %152 {offsets = [0, 0], sizes = [8, 8], strides = [1, 1]} : vector<8x32xf32> to vector<8x8xf32>
    %164 = vector.shape_cast %163 : vector<8x8xf32> to vector<1x8x8xf32>
    %165 = vector.extract_strided_slice %152 {offsets = [0, 8], sizes = [8, 8], strides = [1, 1]} : vector<8x32xf32> to vector<8x8xf32>
    %166 = vector.shape_cast %165 : vector<8x8xf32> to vector<1x8x8xf32>
    %167 = vector.extract_strided_slice %152 {offsets = [0, 16], sizes = [8, 8], strides = [1, 1]} : vector<8x32xf32> to vector<8x8xf32>
    %168 = vector.shape_cast %167 : vector<8x8xf32> to vector<1x8x8xf32>
    %169 = vector.extract_strided_slice %152 {offsets = [0, 24], sizes = [8, 8], strides = [1, 1]} : vector<8x32xf32> to vector<8x8xf32>
    %170 = vector.shape_cast %169 : vector<8x8xf32> to vector<1x8x8xf32>
    %171 = tpu.concatenate %164, %166, %168, %170 in 0 : vector<1x8x8xf32>, vector<1x8x8xf32>, vector<1x8x8xf32>, vector<1x8x8xf32> -> vector<4x8x8xf32>
    %172 = arith.truncf %171 : vector<4x8x8xf32> to vector<4x8x8xbf16>
    %173 = vector.extract_strided_slice %161 {offsets = [0, 0], sizes = [16, 8], strides = [1, 1]} : vector<16x32xf32> to vector<16x8xf32>
    %174 = vector.shape_cast %173 : vector<16x8xf32> to vector<1x16x8xf32>
    %175 = vector.extract_strided_slice %161 {offsets = [0, 8], sizes = [16, 8], strides = [1, 1]} : vector<16x32xf32> to vector<16x8xf32>
    %176 = vector.shape_cast %175 : vector<16x8xf32> to vector<1x16x8xf32>
    %177 = vector.extract_strided_slice %161 {offsets = [0, 16], sizes = [16, 8], strides = [1, 1]} : vector<16x32xf32> to vector<16x8xf32>
    %178 = vector.shape_cast %177 : vector<16x8xf32> to vector<1x16x8xf32>
    %179 = vector.extract_strided_slice %161 {offsets = [0, 24], sizes = [16, 8], strides = [1, 1]} : vector<16x32xf32> to vector<16x8xf32>
    %180 = vector.shape_cast %179 : vector<16x8xf32> to vector<1x16x8xf32>
    %181 = tpu.concatenate %174, %176, %178, %180 in 0 : vector<1x16x8xf32>, vector<1x16x8xf32>, vector<1x16x8xf32>, vector<1x16x8xf32> -> vector<4x16x8xf32>
    %182 = arith.truncf %181 : vector<4x16x8xf32> to vector<4x16x8xbf16>
    %183 = vector.extract_strided_slice %162 {offsets = [0, 0], sizes = [16, 8], strides = [1, 1]} : vector<16x32xf32> to vector<16x8xf32>
    %184 = vector.shape_cast %183 : vector<16x8xf32> to vector<1x16x8xf32>
    %185 = vector.extract_strided_slice %162 {offsets = [0, 8], sizes = [16, 8], strides = [1, 1]} : vector<16x32xf32> to vector<16x8xf32>
    %186 = vector.shape_cast %185 : vector<16x8xf32> to vector<1x16x8xf32>
    %187 = vector.extract_strided_slice %162 {offsets = [0, 16], sizes = [16, 8], strides = [1, 1]} : vector<16x32xf32> to vector<16x8xf32>
    %188 = vector.shape_cast %187 : vector<16x8xf32> to vector<1x16x8xf32>
    %189 = vector.extract_strided_slice %162 {offsets = [0, 24], sizes = [16, 8], strides = [1, 1]} : vector<16x32xf32> to vector<16x8xf32>
    %190 = vector.shape_cast %189 : vector<16x8xf32> to vector<1x16x8xf32>
    %191 = tpu.concatenate %184, %186, %188, %190 in 0 : vector<1x16x8xf32>, vector<1x16x8xf32>, vector<1x16x8xf32>, vector<1x16x8xf32> -> vector<4x16x8xf32>
    %192 = arith.truncf %191 : vector<4x16x8xf32> to vector<4x16x8xbf16>
    "tpu.trace_start"() <{level = 10 : i32, message = "htd,hsd->hts"}> : () -> ()
    %cst_64 = arith.constant dense<0.000000e+00> : vector<4x8x16xf32>
    %193 = tpu.matmul %172, %182, %cst_64 {dimension_numbers = #tpu.dot_dimension_numbers<[2], [2], [1], [1], [0, 0, 0, 1, 1, 1], [0], [0]>} : vector<4x8x8xbf16>, vector<4x16x8xbf16>, vector<4x8x16xf32> -> vector<4x8x16xf32>
    "tpu.trace_stop"() : () -> ()
    %cst_65 = arith.constant 0.353553385 : f32
    %194 = vector.broadcast %cst_65 : f32 to vector<4x8x16xf32>
    %195 = arith.mulf %193, %194 : vector<4x8x16xf32>
    %cst_66 = arith.constant dense<0xFF800000> : vector<4x8xf32>
    %196 = vector.multi_reduction <maximumf>, %195, %cst_66 [2] : vector<4x8x16xf32> to vector<4x8xf32>
    %197 = vector.shape_cast %196 : vector<4x8xf32> to vector<4x8x1xf32>
    %198 = vector.broadcast %197 : vector<4x8x1xf32> to vector<4x8x16xf32>
    %199 = arith.subf %195, %198 : vector<4x8x16xf32>
    %200 = math.exp %199 : vector<4x8x16xf32>
    %cst_67 = arith.constant dense<0.000000e+00> : vector<4x8xf32>
    %201 = vector.multi_reduction <add>, %200, %cst_67 [2] : vector<4x8x16xf32> to vector<4x8xf32>
    %202 = vector.shape_cast %201 : vector<4x8xf32> to vector<4x8x1xf32>
    %203 = tpu.reciprocal %202 {approx = true} : vector<4x8x1xf32> -> vector<4x8x1xf32>
    %204 = vector.broadcast %203 : vector<4x8x1xf32> to vector<4x8x16xf32>
    %205 = arith.mulf %200, %204 : vector<4x8x16xf32>
    %206 = arith.truncf %205 : vector<4x8x16xf32> to vector<4x8x16xbf16>
    "tpu.trace_start"() <{level = 10 : i32, message = "hts,hsd->htd"}> : () -> ()
    %cst_68 = arith.constant dense<0.000000e+00> : vector<4x8x8xf32>
    %207 = tpu.matmul %206, %192, %cst_68 {dimension_numbers = #tpu.dot_dimension_numbers<[2], [1], [1], [2], [0, 0, 0, 1, 1, 2], [0], [0]>} : vector<4x8x16xbf16>, vector<4x16x8xbf16>, vector<4x8x8xf32> -> vector<4x8x8xf32>
    "tpu.trace_stop"() : () -> ()
    %208 = vector.extract_strided_slice %207 {offsets = [0, 0, 0], sizes = [1, 8, 8], strides = [1, 1, 1]} : vector<4x8x8xf32> to vector<1x8x8xf32>
    %209 = vector.shape_cast %208 : vector<1x8x8xf32> to vector<8x8xf32>
    %210 = vector.extract_strided_slice %207 {offsets = [1, 0, 0], sizes = [1, 8, 8], strides = [1, 1, 1]} : vector<4x8x8xf32> to vector<1x8x8xf32>
    %211 = vector.shape_cast %210 : vector<1x8x8xf32> to vector<8x8xf32>
    %212 = vector.extract_strided_slice %207 {offsets = [2, 0, 0], sizes = [1, 8, 8], strides = [1, 1, 1]} : vector<4x8x8xf32> to vector<1x8x8xf32>
    %213 = vector.shape_cast %212 : vector<1x8x8xf32> to vector<8x8xf32>
    %214 = vector.extract_strided_slice %207 {offsets = [3, 0, 0], sizes = [1, 8, 8], strides = [1, 1, 1]} : vector<4x8x8xf32> to vector<1x8x8xf32>
    %215 = vector.shape_cast %214 : vector<1x8x8xf32> to vector<8x8xf32>
    %216 = tpu.concatenate %209, %211, %213, %215 in 1 : vector<8x8xf32>, vector<8x8xf32>, vector<8x8xf32>, vector<8x8xf32> -> vector<8x32xf32>
    %cst_69 = arith.constant dense<0.000000e+00> : vector<8x16xf32>
    %217 = vector.multi_reduction <add>, %205, %cst_69 [0] : vector<4x8x16xf32> to vector<8x16xf32>
    %cst_70 = arith.constant 4.000000e+00 : f32
    %218 = vector.broadcast %cst_70 : f32 to vector<8x16xf32>
    %219 = arith.divf %217, %218 : vector<8x16xf32>
    %c0_71 = arith.constant 0 : index
    %c0_72 = arith.constant 0 : index
    %c0_73 = arith.constant 0 : index
    %220 = vector.load %arg18[%c0_71, %c0_72, %c0_73] : memref<1x32x32xbf16, #tpu.memory_space<vmem>>, vector<1x32x32xbf16>
    %221 = vector.shape_cast %220 : vector<1x32x32xbf16> to vector<32x32xbf16>
    %222 = arith.truncf %216 : vector<8x32xf32> to vector<8x32xbf16>
    %cst_74 = arith.constant dense<0.000000e+00> : vector<8x32xf32>
    %223 = tpu.matmul %222, %221, %cst_74 {dimension_numbers = #tpu.dot_dimension_numbers<[1], [0], [0], [1], [0, 0, 1, 1], [], []>} : vector<8x32xbf16>, vector<32x32xbf16>, vector<8x32xf32> -> vector<8x32xf32>
    %224 = arith.addf %118, %223 : vector<8x32xf32>
    %c0_75 = arith.constant 0 : index
    %c0_76 = arith.constant 0 : index
    %c0_77 = arith.constant 0 : index
    %225 = vector.load %arg19[%c0_75, %c0_76, %c0_77] : memref<1x1x32xf32, #tpu.memory_space<vmem>>, vector<1x1x32xf32>
    %226 = vector.shape_cast %225 : vector<1x1x32xf32> to vector<1x32xf32>
    %227 = vector.broadcast %226 : vector<1x32xf32> to vector<8x32xf32>
    %228 = arith.addf %224, %227 : vector<8x32xf32>
    %c0_78 = arith.constant 0 : index
    %c0_79 = arith.constant 0 : index
    %c0_80 = arith.constant 0 : index
    %229 = vector.load %arg8[%c0_78, %c0_79, %c0_80] : memref<1x1x32xf32, #tpu.memory_space<vmem>>, vector<1x1x32xf32>
    %230 = vector.shape_cast %229 : vector<1x1x32xf32> to vector<1x32xf32>
    %c0_81 = arith.constant 0 : index
    %c0_82 = arith.constant 0 : index
    %c0_83 = arith.constant 0 : index
    %231 = vector.load %arg9[%c0_81, %c0_82, %c0_83] : memref<1x1x32xf32, #tpu.memory_space<vmem>>, vector<1x1x32xf32>
    %232 = vector.shape_cast %231 : vector<1x1x32xf32> to vector<1x32xf32>
    %cst_84 = arith.constant dense<0.000000e+00> : vector<8xf32>
    %233 = vector.multi_reduction <add>, %228, %cst_84 [1] : vector<8x32xf32> to vector<8xf32>
    %234 = vector.shape_cast %233 : vector<8xf32> to vector<8x1xf32>
    %cst_85 = arith.constant 3.200000e+01 : f32
    %235 = vector.broadcast %cst_85 : f32 to vector<8x1xf32>
    %236 = arith.divf %234, %235 : vector<8x1xf32>
    %237 = vector.broadcast %236 : vector<8x1xf32> to vector<8x32xf32>
    %238 = arith.subf %228, %237 : vector<8x32xf32>
    %239 = arith.mulf %238, %238 : vector<8x32xf32>
    %cst_86 = arith.constant dense<0.000000e+00> : vector<8xf32>
    %240 = vector.multi_reduction <add>, %239, %cst_86 [1] : vector<8x32xf32> to vector<8xf32>
    %241 = vector.shape_cast %240 : vector<8xf32> to vector<8x1xf32>
    %cst_87 = arith.constant 3.200000e+01 : f32
    %242 = vector.broadcast %cst_87 : f32 to vector<8x1xf32>
    %243 = arith.divf %241, %242 : vector<8x1xf32>
    %244 = vector.broadcast %236 : vector<8x1xf32> to vector<8x32xf32>
    %245 = arith.subf %228, %244 : vector<8x32xf32>
    %cst_88 = arith.constant 9.99999974E-6 : f32
    %246 = vector.broadcast %cst_88 : f32 to vector<8x1xf32>
    %247 = arith.addf %243, %246 : vector<8x1xf32>
    %248 = math.rsqrt %247 : vector<8x1xf32>
    %249 = vector.broadcast %248 : vector<8x1xf32> to vector<8x32xf32>
    %250 = arith.mulf %245, %249 : vector<8x32xf32>
    %251 = vector.broadcast %230 : vector<1x32xf32> to vector<8x32xf32>
    %252 = arith.mulf %250, %251 : vector<8x32xf32>
    %253 = vector.broadcast %232 : vector<1x32xf32> to vector<8x32xf32>
    %254 = arith.addf %252, %253 : vector<8x32xf32>
    %c0_89 = arith.constant 0 : index
    %c0_90 = arith.constant 0 : index
    %c0_91 = arith.constant 0 : index
    %255 = vector.load %arg20[%c0_89, %c0_90, %c0_91] : memref<1x32x128xbf16, #tpu.memory_space<vmem>>, vector<1x32x128xbf16>
    %256 = vector.shape_cast %255 : vector<1x32x128xbf16> to vector<32x128xbf16>
    %257 = arith.truncf %254 : vector<8x32xf32> to vector<8x32xbf16>
    %cst_92 = arith.constant dense<0.000000e+00> : vector<8x128xf32>
    %258 = tpu.matmul %257, %256, %cst_92 {dimension_numbers = #tpu.dot_dimension_numbers<[1], [0], [0], [1], [0, 0, 1, 1], [], []>} : vector<8x32xbf16>, vector<32x128xbf16>, vector<8x128xf32> -> vector<8x128xf32>
    %c0_93 = arith.constant 0 : index
    %c0_94 = arith.constant 0 : index
    %c0_95 = arith.constant 0 : index
    %259 = vector.load %arg21[%c0_93, %c0_94, %c0_95] : memref<1x1x128xf32, #tpu.memory_space<vmem>>, vector<1x1x128xf32>
    %260 = vector.shape_cast %259 : vector<1x1x128xf32> to vector<1x128xf32>
    %261 = vector.broadcast %260 : vector<1x128xf32> to vector<8x128xf32>
    %262 = arith.addf %258, %261 : vector<8x128xf32>
    %cst_96 = arith.constant 5.000000e-01 : f32
    %263 = vector.broadcast %cst_96 : f32 to vector<8x128xf32>
    %264 = arith.mulf %263, %262 : vector<8x128xf32>
    %cst_97 = arith.constant 4.471500e-02 : f32
    %265 = vector.broadcast %cst_97 : f32 to vector<8x128xf32>
    %266 = arith.mulf %265, %262 : vector<8x128xf32>
    %267 = arith.mulf %266, %262 : vector<8x128xf32>
    %268 = arith.mulf %267, %262 : vector<8x128xf32>
    %269 = arith.addf %262, %268 : vector<8x128xf32>
    %cst_98 = arith.constant 0.797884583 : f32
    %270 = vector.broadcast %cst_98 : f32 to vector<8x128xf32>
    %271 = arith.mulf %270, %269 : vector<8x128xf32>
    %272 = math.tanh %271 : vector<8x128xf32>
    %cst_99 = arith.constant 1.000000e+00 : f32
    %273 = vector.broadcast %cst_99 : f32 to vector<8x128xf32>
    %274 = arith.addf %273, %272 : vector<8x128xf32>
    %275 = arith.mulf %264, %274 : vector<8x128xf32>
    %c0_100 = arith.constant 0 : index
    %c0_101 = arith.constant 0 : index
    %c0_102 = arith.constant 0 : index
    %276 = vector.load %arg22[%c0_100, %c0_101, %c0_102] : memref<1x128x32xbf16, #tpu.memory_space<vmem>>, vector<1x128x32xbf16>
    %277 = vector.shape_cast %276 : vector<1x128x32xbf16> to vector<128x32xbf16>
    %278 = arith.truncf %275 : vector<8x128xf32> to vector<8x128xbf16>
    %cst_103 = arith.constant dense<0.000000e+00> : vector<8x32xf32>
    %279 = tpu.matmul %278, %277, %cst_103 {dimension_numbers = #tpu.dot_dimension_numbers<[1], [0], [0], [1], [0, 0, 1, 1], [], []>} : vector<8x128xbf16>, vector<128x32xbf16>, vector<8x32xf32> -> vector<8x32xf32>
    %280 = arith.addf %228, %279 : vector<8x32xf32>
    %c0_104 = arith.constant 0 : index
    %c0_105 = arith.constant 0 : index
    %c0_106 = arith.constant 0 : index
    %281 = vector.load %arg23[%c0_104, %c0_105, %c0_106] : memref<1x1x32xf32, #tpu.memory_space<vmem>>, vector<1x1x32xf32>
    %282 = vector.shape_cast %281 : vector<1x1x32xf32> to vector<1x32xf32>
    %283 = vector.broadcast %282 : vector<1x32xf32> to vector<8x32xf32>
    %284 = arith.addf %280, %283 : vector<8x32xf32>
    %285 = vector.shape_cast %109 : vector<8x8xf32> to vector<1x1x8x8xf32>
    %c0_107 = arith.constant 0 : index
    %c0_108 = arith.constant 0 : index
    %c0_109 = arith.constant 0 : index
    %c0_110 = arith.constant 0 : index
    %286 = vector.load %arg27[%c0_107, %c0_108, %c0_109, %c0_110] : memref<1x1x8x8xf32, #tpu.memory_space<vmem>>, vector<1x1x8x8xf32>
    tpu.vector_store %arg27[%c0_107, %c0_108, %c0_109, %c0_110], %285 {strides = array<i32>} : memref<1x1x8x8xf32, #tpu.memory_space<vmem>>, vector<1x1x8x8xf32>,
    %287 = vector.shape_cast %219 : vector<8x16xf32> to vector<1x1x8x16xf32>
    %c0_111 = arith.constant 0 : index
    %c0_112 = arith.constant 0 : index
    %c0_113 = arith.constant 0 : index
    %c0_114 = arith.constant 0 : index
    %288 = vector.load %arg28[%c0_111, %c0_112, %c0_113, %c0_114] : memref<1x1x8x16xf32, #tpu.memory_space<vmem>>, vector<1x1x8x16xf32>
    tpu.vector_store %arg28[%c0_111, %c0_112, %c0_113, %c0_114], %287 {strides = array<i32>} : memref<1x1x8x16xf32, #tpu.memory_space<vmem>>, vector<1x1x8x16xf32>,
    %c1_i32 = arith.constant 1 : i32
    %289 = arith.cmpi eq, %arg1, %c1_i32 : i32
    %290 = arith.extui %289 : i1 to i32
    %c0_i32_115 = arith.constant 0 : i32
    %291 = arith.cmpi ne, %290, %c0_i32_115 : i32
    scf.if %291 {
      %c0_118 = arith.constant 0 : index
      %c0_119 = arith.constant 0 : index
      %295 = vector.load %arg24[%c0_118, %c0_119] : memref<1x32xf32, #tpu.memory_space<vmem>>, vector<1x32xf32>
      %c0_120 = arith.constant 0 : index
      %c0_121 = arith.constant 0 : index
      %296 = vector.load %arg25[%c0_120, %c0_121] : memref<1x32xf32, #tpu.memory_space<vmem>>, vector<1x32xf32>
      %cst_122 = arith.constant dense<0.000000e+00> : vector<8xf32>
      %297 = vector.multi_reduction <add>, %284, %cst_122 [1] : vector<8x32xf32> to vector<8xf32>
      %298 = vector.shape_cast %297 : vector<8xf32> to vector<8x1xf32>
      %cst_123 = arith.constant 3.200000e+01 : f32
      %299 = vector.broadcast %cst_123 : f32 to vector<8x1xf32>
      %300 = arith.divf %298, %299 : vector<8x1xf32>
      %301 = vector.broadcast %300 : vector<8x1xf32> to vector<8x32xf32>
      %302 = arith.subf %284, %301 : vector<8x32xf32>
      %303 = arith.mulf %302, %302 : vector<8x32xf32>
      %cst_124 = arith.constant dense<0.000000e+00> : vector<8xf32>
      %304 = vector.multi_reduction <add>, %303, %cst_124 [1] : vector<8x32xf32> to vector<8xf32>
      %305 = vector.shape_cast %304 : vector<8xf32> to vector<8x1xf32>
      %cst_125 = arith.constant 3.200000e+01 : f32
      %306 = vector.broadcast %cst_125 : f32 to vector<8x1xf32>
      %307 = arith.divf %305, %306 : vector<8x1xf32>
      %308 = vector.broadcast %300 : vector<8x1xf32> to vector<8x32xf32>
      %309 = arith.subf %284, %308 : vector<8x32xf32>
      %cst_126 = arith.constant 9.99999974E-6 : f32
      %310 = vector.broadcast %cst_126 : f32 to vector<8x1xf32>
      %311 = arith.addf %307, %310 : vector<8x1xf32>
      %312 = math.rsqrt %311 : vector<8x1xf32>
      %313 = vector.broadcast %312 : vector<8x1xf32> to vector<8x32xf32>
      %314 = arith.mulf %309, %313 : vector<8x32xf32>
      %315 = vector.broadcast %295 : vector<1x32xf32> to vector<8x32xf32>
      %316 = arith.mulf %314, %315 : vector<8x32xf32>
      %317 = vector.broadcast %296 : vector<1x32xf32> to vector<8x32xf32>
      %318 = arith.addf %316, %317 : vector<8x32xf32>
      %319 = vector.shape_cast %318 : vector<8x32xf32> to vector<1x8x32xf32>
      %c0_127 = arith.constant 0 : index
      %c0_128 = arith.constant 0 : index
      %c0_129 = arith.constant 0 : index
      %320 = vector.load %arg26[%c0_127, %c0_128, %c0_129] : memref<1x8x32xf32, #tpu.memory_space<vmem>>, vector<1x8x32xf32>
      tpu.vector_store %arg26[%c0_127, %c0_128, %c0_129], %319 {strides = array<i32>} : memref<1x8x32xf32, #tpu.memory_space<vmem>>, vector<1x8x32xf32>,
    } else {
    }
    %c1_i32_116 = arith.constant 1 : i32
    %292 = arith.cmpi slt, %arg1, %c1_i32_116 : i32
    %293 = arith.extui %292 : i1 to i32
    %c0_i32_117 = arith.constant 0 : i32
    %294 = arith.cmpi ne, %293, %c0_i32_117 : i32
    scf.if %294 {
      %295 = vector.shape_cast %284 : vector<8x32xf32> to vector<1x8x32xf32>
      %c0_118 = arith.constant 0 : index
      %c0_119 = arith.constant 0 : index
      %c0_120 = arith.constant 0 : index
      %296 = vector.load %arg26[%c0_118, %c0_119, %c0_120] : memref<1x8x32xf32, #tpu.memory_space<vmem>>, vector<1x8x32xf32>
      tpu.vector_store %arg26[%c0_118, %c0_119, %c0_120], %295 {strides = array<i32>} : memref<1x8x32xf32, #tpu.memory_space<vmem>>, vector<1x8x32xf32>,
    } else {
    }
    return
  }
  func.func @transform_0(%arg0: i32, %arg1: i32) -> (i32, i32, i32) {
    %c0_i32 = arith.constant 0 : i32
    %c0_i32_0 = arith.constant 0 : i32
    %c0_i32_1 = arith.constant 0 : i32
    return %arg0, %c0_i32, %c0_i32_0 : i32, i32, i32
  }
  func.func @transform_1(%arg0: i32, %arg1: i32) -> (i32, i32, i32) {
    %c0_i32 = arith.constant 0 : i32
    %c0_i32_0 = arith.constant 0 : i32
    %c0_i32_1 = arith.constant 0 : i32
    return %arg0, %c0_i32, %c0_i32_0 : i32, i32, i32
  }
  func.func @transform_2(%arg0: i32, %arg1: i32) -> (i32, i32, i32) {
    %c0_i32 = arith.constant 0 : i32
    %c0_i32_0 = arith.constant 0 : i32
    %c0_i32_1 = arith.constant 0 : i32
    return %arg1, %c0_i32, %c0_i32_0 : i32, i32, i32
  }
  func.func @transform_3(%arg0: i32, %arg1: i32) -> (i32, i32, i32) {
    %c0_i32 = arith.constant 0 : i32
    %c0_i32_0 = arith.constant 0 : i32
    %c0_i32_1 = arith.constant 0 : i32
    return %arg1, %c0_i32, %c0_i32_0 : i32, i32, i32
  }
  func.func @transform_4(%arg0: i32, %arg1: i32) -> (i32, i32, i32) {
    %c0_i32 = arith.constant 0 : i32
    %c0_i32_0 = arith.constant 0 : i32
    %c0_i32_1 = arith.constant 0 : i32
    return %arg1, %c0_i32, %c0_i32_0 : i32, i32, i32
  }
  func.func @transform_5(%arg0: i32, %arg1: i32) -> (i32, i32, i32) {
    %c0_i32 = arith.constant 0 : i32
    %c0_i32_0 = arith.constant 0 : i32
    %c0_i32_1 = arith.constant 0 : i32
    return %arg1, %c0_i32, %c0_i32_0 : i32, i32, i32
  }
  func.func @transform_6(%arg0: i32, %arg1: i32) -> (i32, i32, i32) {
    %c0_i32 = arith.constant 0 : i32
    %c0_i32_0 = arith.constant 0 : i32
    %c0_i32_1 = arith.constant 0 : i32
    return %arg1, %c0_i32, %c0_i32_0 : i32, i32, i32
  }
  func.func @transform_7(%arg0: i32, %arg1: i32) -> (i32, i32, i32) {
    %c0_i32 = arith.constant 0 : i32
    %c0_i32_0 = arith.constant 0 : i32
    %c0_i32_1 = arith.constant 0 : i32
    return %arg1, %c0_i32, %c0_i32_0 : i32, i32, i32
  }
  func.func @transform_8(%arg0: i32, %arg1: i32) -> (i32, i32, i32) {
    %c0_i32 = arith.constant 0 : i32
    %c0_i32_0 = arith.constant 0 : i32
    %c0_i32_1 = arith.constant 0 : i32
    return %arg1, %c0_i32, %c0_i32_0 : i32, i32, i32
  }
  func.func @transform_9(%arg0: i32, %arg1: i32) -> (i32, i32, i32) {
    %c0_i32 = arith.constant 0 : i32
    %c0_i32_0 = arith.constant 0 : i32
    %c0_i32_1 = arith.constant 0 : i32
    return %arg1, %c0_i32, %c0_i32_0 : i32, i32, i32
  }
  func.func @transform_10(%arg0: i32, %arg1: i32) -> (i32, i32, i32) {
    %c0_i32 = arith.constant 0 : i32
    %c0_i32_0 = arith.constant 0 : i32
    %c0_i32_1 = arith.constant 0 : i32
    return %arg1, %c0_i32, %c0_i32_0 : i32, i32, i32
  }
  func.func @transform_11(%arg0: i32, %arg1: i32) -> (i32, i32, i32) {
    %c0_i32 = arith.constant 0 : i32
    %c0_i32_0 = arith.constant 0 : i32
    %c0_i32_1 = arith.constant 0 : i32
    return %arg1, %c0_i32, %c0_i32_0 : i32, i32, i32
  }
  func.func @transform_12(%arg0: i32, %arg1: i32) -> (i32, i32, i32) {
    %c0_i32 = arith.constant 0 : i32
    %c0_i32_0 = arith.constant 0 : i32
    %c0_i32_1 = arith.constant 0 : i32
    return %arg1, %c0_i32, %c0_i32_0 : i32, i32, i32
  }
  func.func @transform_13(%arg0: i32, %arg1: i32) -> (i32, i32, i32) {
    %c0_i32 = arith.constant 0 : i32
    %c0_i32_0 = arith.constant 0 : i32
    %c0_i32_1 = arith.constant 0 : i32
    return %arg1, %c0_i32, %c0_i32_0 : i32, i32, i32
  }
  func.func @transform_14(%arg0: i32, %arg1: i32) -> (i32, i32, i32) {
    %c0_i32 = arith.constant 0 : i32
    %c0_i32_0 = arith.constant 0 : i32
    %c0_i32_1 = arith.constant 0 : i32
    return %arg1, %c0_i32, %c0_i32_0 : i32, i32, i32
  }
  func.func @transform_15(%arg0: i32, %arg1: i32) -> (i32, i32, i32) {
    %c0_i32 = arith.constant 0 : i32
    %c0_i32_0 = arith.constant 0 : i32
    %c0_i32_1 = arith.constant 0 : i32
    return %arg1, %c0_i32, %c0_i32_0 : i32, i32, i32
  }
  func.func @transform_16(%arg0: i32, %arg1: i32) -> (i32, i32, i32) {
    %c0_i32 = arith.constant 0 : i32
    %c0_i32_0 = arith.constant 0 : i32
    %c0_i32_1 = arith.constant 0 : i32
    return %arg1, %c0_i32, %c0_i32_0 : i32, i32, i32
  }
  func.func @transform_17(%arg0: i32, %arg1: i32) -> (i32, i32, i32) {
    %c0_i32 = arith.constant 0 : i32
    %c0_i32_0 = arith.constant 0 : i32
    %c0_i32_1 = arith.constant 0 : i32
    return %arg1, %c0_i32, %c0_i32_0 : i32, i32, i32
  }
  func.func @transform_18(%arg0: i32, %arg1: i32) -> (i32, i32, i32) {
    %c0_i32 = arith.constant 0 : i32
    %c0_i32_0 = arith.constant 0 : i32
    %c0_i32_1 = arith.constant 0 : i32
    return %arg1, %c0_i32, %c0_i32_0 : i32, i32, i32
  }
  func.func @transform_19(%arg0: i32, %arg1: i32) -> (i32, i32, i32) {
    %c0_i32 = arith.constant 0 : i32
    %c0_i32_0 = arith.constant 0 : i32
    %c0_i32_1 = arith.constant 0 : i32
    return %arg1, %c0_i32, %c0_i32_0 : i32, i32, i32
  }
  func.func @transform_20(%arg0: i32, %arg1: i32) -> (i32, i32, i32) {
    %c0_i32 = arith.constant 0 : i32
    %c0_i32_0 = arith.constant 0 : i32
    %c0_i32_1 = arith.constant 0 : i32
    return %arg1, %c0_i32, %c0_i32_0 : i32, i32, i32
  }
  func.func @transform_21(%arg0: i32, %arg1: i32) -> (i32, i32, i32) {
    %c0_i32 = arith.constant 0 : i32
    %c0_i32_0 = arith.constant 0 : i32
    %c0_i32_1 = arith.constant 0 : i32
    return %arg1, %c0_i32, %c0_i32_0 : i32, i32, i32
  }
  func.func @transform_22(%arg0: i32, %arg1: i32) -> (i32, i32) {
    %c0_i32 = arith.constant 0 : i32
    %c0_i32_0 = arith.constant 0 : i32
    %c0_i32_1 = arith.constant 0 : i32
    return %c0_i32, %c0_i32_0 : i32, i32
  }
  func.func @transform_23(%arg0: i32, %arg1: i32) -> (i32, i32) {
    %c0_i32 = arith.constant 0 : i32
    %c0_i32_0 = arith.constant 0 : i32
    %c0_i32_1 = arith.constant 0 : i32
    return %c0_i32, %c0_i32_0 : i32, i32
  }
  func.func @transform_24(%arg0: i32, %arg1: i32) -> (i32, i32, i32) {
    %c0_i32 = arith.constant 0 : i32
    %c0_i32_0 = arith.constant 0 : i32
    %c0_i32_1 = arith.constant 0 : i32
    return %arg0, %c0_i32, %c0_i32_0 : i32, i32, i32
  }
  func.func @transform_25(%arg0: i32, %arg1: i32) -> (i32, i32, i32, i32) {
    %c0_i32 = arith.constant 0 : i32
    %c0_i32_0 = arith.constant 0 : i32
    %c0_i32_1 = arith.constant 0 : i32
    return %arg1, %arg0, %c0_i32, %c0_i32_0 : i32, i32, i32, i32
  }
  func.func @transform_26(%arg0: i32, %arg1: i32) -> (i32, i32, i32, i32) {
    %c0_i32 = arith.constant 0 : i32
    %c0_i32_0 = arith.constant 0 : i32
    %c0_i32_1 = arith.constant 0 : i32
    return %arg1, %arg0, %c0_i32, %c0_i32_0 : i32, i32, i32, i32
  }
}

</mosaic_0001>

<llo_original>
// kernel: transformer_decoder_forward.1
$region0: #{transformer_decoder_forward.1}
  #allocation0 [shape = 'u32[]', space=smem, size = 0x4, offset = 0x4, fixed_abs, tag = 'smem constant byte address 0x4 - core index']
  #allocation1 [shape = 'u32[144,128]{1,0:T(1,128)}', space=vmem, size = 0x12000, scoped, tag = 'internal scratch']
  %s0 = inlined_call_operand.vmem [shape: f32[2,8,32], index: 0, kind: input, shape index: {}]
  %s1 = inlined_call_operand.vmem [shape: f32[2,16,32], index: 1, kind: input, shape index: {}]
  %s2 = inlined_call_operand.vmem [shape: f32[2,1,32], index: 2, kind: input, shape index: {}]
  %s3 = inlined_call_operand.vmem [shape: f32[2,1,32], index: 3, kind: input, shape index: {}]
  %s4 = inlined_call_operand.vmem [shape: f32[2,1,32], index: 4, kind: input, shape index: {}]
  %s5 = inlined_call_operand.vmem [shape: f32[2,1,32], index: 5, kind: input, shape index: {}]
  %s6 = inlined_call_operand.vmem [shape: f32[2,1,32], index: 6, kind: input, shape index: {}]
  %s7 = inlined_call_operand.vmem [shape: f32[2,1,32], index: 7, kind: input, shape index: {}]
  %s8 = inlined_call_operand.vmem [shape: bf16[2,32,96], index: 8, kind: input, shape index: {}]
  %s9 = inlined_call_operand.vmem [shape: f32[2,1,96], index: 9, kind: input, shape index: {}]
  %s10 = inlined_call_operand.vmem [shape: bf16[2,32,32], index: 10, kind: input, shape index: {}]
  %s11 = inlined_call_operand.vmem [shape: f32[2,1,32], index: 11, kind: input, shape index: {}]
  %s12 = inlined_call_operand.vmem [shape: bf16[2,32,32], index: 12, kind: input, shape index: {}]
  %s13 = inlined_call_operand.vmem [shape: f32[2,1,32], index: 13, kind: input, shape index: {}]
  %s14 = inlined_call_operand.vmem [shape: bf16[2,32,64], index: 14, kind: input, shape index: {}]
  %s15 = inlined_call_operand.vmem [shape: f32[2,1,64], index: 15, kind: input, shape index: {}]
  %s16 = inlined_call_operand.vmem [shape: bf16[2,32,32], index: 16, kind: input, shape index: {}]
  %s17 = inlined_call_operand.vmem [shape: f32[2,1,32], index: 17, kind: input, shape index: {}]
  %s18 = inlined_call_operand.vmem [shape: bf16[2,32,128], index: 18, kind: input, shape index: {}]
  %s19 = inlined_call_operand.vmem [shape: f32[2,1,128], index: 19, kind: input, shape index: {}]
  %s20 = inlined_call_operand.vmem [shape: bf16[2,128,32], index: 20, kind: input, shape index: {}]
  %s21 = inlined_call_operand.vmem [shape: f32[2,1,32], index: 21, kind: input, shape index: {}]
  %s22 = inlined_call_operand.vmem [shape: f32[1,32], index: 22, kind: input, shape index: {}]
  %s23 = inlined_call_operand.vmem [shape: f32[1,32], index: 23, kind: input, shape index: {}]
  %s24 = inlined_call_operand.hbm [shape: f32[2,8,32], index: 24, kind: output, shape index: {0}]
  %s25 = inlined_call_operand.vmem [shape: f32[2,2,8,8], index: 25, kind: output, shape index: {1}]
  %s26 = inlined_call_operand.vmem [shape: f32[2,2,8,16], index: 26, kind: output, shape index: {2}]
  %27 = xla_tuple %s24, %s25, %s26
  %s28 = sld [smem:[#allocation0]]
  $region157: #{transformer_decoder_forward.1} parent=0
    _
  %s30 = ssub.s32 1, %s28
  %s31 = scalar_select 0, %s30, %s28
  $region1: #{transformer_decoder_forward.1} parent=0
    #allocation2 [shape = 'u8[8192]{0}', space=vmem, size = 0x2000, scoped, tag = 'output window, operand 0']
    #allocation3 [shape = 's32[2]{0}', space=sflag, size = 0x8, scoped, tag = 'scoped memory for transformer_decoder_forward.1']
    %32 = vsyncpa [#allocation3], 0
    %s33 = scalar_lea.sflag [#allocation3], 1
    %34 = vsyncpa %s33, 0
    loop: start=0, step=1, limit=6
    $region2: #{transformer_decoder_forward.1} parent=1 // loop_pre_header
      _
    $region3: #{transformer_decoder_forward.1} parent=1 // loop_header
      %s36 = sphi 0, %s40
      %p37 = scmp.ge.s32.totalorder %s36, 6
      %s43 = sphi 0, %s55
      %s44 = sphi 0, %s51
      %s45 = sphi 0, %s43
      %s46 = sphi 0, %s44
      %s47 = sphi 0, %s45
      %s48 = sphi 0, %s46
      %s58 = sphi 0, %s60
      %s61 = sphi 0, %s58
      %s62 = sphi 0, %s61
      %s78 = sphi 0, %s62
      %s84 = sphi 0, %s86
      %s87 = sphi 0, %s84
      %s88 = sphi 0, %s87
      %s104 = sphi 0, %s88
      %s110 = sphi 0, %s112
      %s113 = sphi 0, %s110
      %s114 = sphi 0, %s113
      %s130 = sphi 0, %s114
      %s136 = sphi 0, %s138
      %s139 = sphi 0, %s136
      %s140 = sphi 0, %s139
      %s156 = sphi 0, %s140
      %s162 = sphi 0, %s164
      %s165 = sphi 0, %s162
      %s166 = sphi 0, %s165
      %s182 = sphi 0, %s166
      %s188 = sphi 0, %s190
      %s191 = sphi 0, %s188
      %s192 = sphi 0, %s191
      %s208 = sphi 0, %s192
      %s214 = sphi 0, %s216
      %s217 = sphi 0, %s214
      %s218 = sphi 0, %s217
      %s234 = sphi 0, %s218
      %s240 = sphi 0, %s242
      %s243 = sphi 0, %s240
      %s244 = sphi 0, %s243
      %s260 = sphi 0, %s244
      %s266 = sphi 0, %s268
      %s269 = sphi 0, %s266
      %s270 = sphi 0, %s269
      %s286 = sphi 0, %s270
      %s292 = sphi 0, %s294
      %s295 = sphi 0, %s292
      %s296 = sphi 0, %s295
      %s312 = sphi 0, %s296
      %s318 = sphi 0, %s320
      %s321 = sphi 0, %s318
      %s322 = sphi 0, %s321
      %s338 = sphi 0, %s322
      %s344 = sphi 0, %s346
      %s347 = sphi 0, %s344
      %s348 = sphi 0, %s347
      %s364 = sphi 0, %s348
      %s370 = sphi 0, %s372
      %s373 = sphi 0, %s370
      %s374 = sphi 0, %s373
      %s390 = sphi 0, %s374
      %s396 = sphi 0, %s398
      %s399 = sphi 0, %s396
      %s400 = sphi 0, %s399
      %s416 = sphi 0, %s400
      %s422 = sphi 0, %s424
      %s425 = sphi 0, %s422
      %s426 = sphi 0, %s425
      %s442 = sphi 0, %s426
      %s448 = sphi 0, %s450
      %s451 = sphi 0, %s448
      %s452 = sphi 0, %s451
      %s468 = sphi 0, %s452
      %s474 = sphi 0, %s476
      %s477 = sphi 0, %s474
      %s478 = sphi 0, %s477
      %s494 = sphi 0, %s478
      %s500 = sphi 0, %s502
      %s503 = sphi 0, %s500
      %s504 = sphi 0, %s503
      %s520 = sphi 0, %s504
      %s526 = sphi 0, %s528
      %s529 = sphi 0, %s526
      %s530 = sphi 0, %s529
      %s546 = sphi 0, %s530
      %s552 = sphi 0, %s554
      %s555 = sphi 0, %s552
      %s556 = sphi 0, %s555
      %s572 = sphi 0, %s556
      %s578 = sphi 0, %s580
      %s581 = sphi 0, %s578
      %s582 = sphi 0, %s581
      %s598 = sphi 0, %s582
      %s604 = sphi 0, %s606
      %s607 = sphi 0, %s604
      %s608 = sphi 0, %s607
      %s624 = sphi 0, %s608
      %s628 = sphi 0, %s628
      %s630 = sphi 0, %s628
      %s631 = sphi 0, %s630
      %s645 = sphi 0, %s631
      %s649 = sphi 0, %s649
      %s651 = sphi 0, %s649
      %s652 = sphi 0, %s651
      %s666 = sphi 0, %s652
      %s672 = sphi 0, %s674
      %s675 = sphi 0, %s672
      %s676 = sphi 0, %s675
      %s692 = sphi 0, %s676
      %s700 = sphi 0, %s702
      %s703 = sphi 0, %s700
      %s704 = sphi 0, %s703
      %s720 = sphi 0, %s704
      %s728 = sphi 0, %s730
      %s731 = sphi 0, %s728
      %s732 = sphi 0, %s731
      %s748 = sphi 0, %s732
    $region4: #{transformer_decoder_forward.1} parent=1 // loop_header_branch
      %39 = sbr.rel (%p37) target = $region8
    $region5: #{transformer_decoder_forward.1} parent=1 // loop_body
      %s41 = ssub.s32 %s36, 1
      %s42 = ssub.s32 %s36, 2
      %s49 = sadd.s32 1, %s44
      %p50 = scmp.ge.s32.totalorder %s49, 2
      %s51 = scalar_select %p50, 0, %s49
      %s52 = sadd.s32 1, %s43
      %s53 = scalar_select %p50, %s52, %s43
      %p54 = scmp.ge.s32.totalorder %s53, 2
      %s55 = scalar_select %p54, 0, %s53
      %s56 = ssub.s32 %s43, %s55
      %p57 = scmp.eq.s32.totalorder %s56, 0
      %s59 = sadd.s32 %s58, 1
      %s60 = scalar_select %p57, %s58, %s59
      %p63 = pneg %p57
      %p64 = scmp.eq.s32.totalorder %s36, 3
      %p65 = por %p63, %p64
      %p66 = scmp.ne.s32.totalorder %s58, %s61
      %p67 = scmp.eq.s32.totalorder %s36, 0
      %p68 = por %p66, %p67
      %p69 = scmp.ne.s32.totalorder %s58, %s61
      %p70 = scmp.eq.s32.totalorder %s41, 3
      %p71 = por %p69, %p70
      %p72 = scmp.ne.s32.totalorder %s61, %s62
      %p73 = scmp.eq.s32.totalorder %s41, 0
      %p74 = por %p72, %p73
      %p75 = scmp.ne.s32.totalorder %s61, %s62
      %p76 = scmp.eq.s32.totalorder %s42, 3
      %p77 = por %p75, %p76
      %p79 = scmp.ne.s32.totalorder %s62, %s78
      %p80 = scmp.eq.s32.totalorder %s42, 0
      %p81 = por %p79, %p80
      %s82 = ssub.s32 %s43, %s55
      %p83 = scmp.eq.s32.totalorder %s82, 0
      %s85 = sadd.s32 %s84, 1
      %s86 = scalar_select %p83, %s84, %s85
      %p89 = pneg %p83
      %p90 = scmp.eq.s32.totalorder %s36, 3
      %p91 = por %p89, %p90
      %p92 = scmp.ne.s32.totalorder %s84, %s87
      %p93 = scmp.eq.s32.totalorder %s36, 0
      %p94 = por %p92, %p93
      %p95 = scmp.ne.s32.totalorder %s84, %s87
      %p96 = scmp.eq.s32.totalorder %s41, 3
      %p97 = por %p95, %p96
      %p98 = scmp.ne.s32.totalorder %s87, %s88
      %p99 = scmp.eq.s32.totalorder %s41, 0
      %p100 = por %p98, %p99
      %p101 = scmp.ne.s32.totalorder %s87, %s88
      %p102 = scmp.eq.s32.totalorder %s42, 3
      %p103 = por %p101, %p102
      %p105 = scmp.ne.s32.totalorder %s88, %s104
      %p106 = scmp.eq.s32.totalorder %s42, 0
      %p107 = por %p105, %p106
      %s108 = ssub.s32 %s44, %s51
      %p109 = scmp.eq.s32.totalorder %s108, 0
      %s111 = sadd.s32 %s110, 1
      %s112 = scalar_select %p109, %s110, %s111
      %p115 = pneg %p109
      %p116 = scmp.eq.s32.totalorder %s36, 3
      %p117 = por %p115, %p116
      %p118 = scmp.ne.s32.totalorder %s110, %s113
      %p119 = scmp.eq.s32.totalorder %s36, 0
      %p120 = por %p118, %p119
      %p121 = scmp.ne.s32.totalorder %s110, %s113
      %p122 = scmp.eq.s32.totalorder %s41, 3
      %p123 = por %p121, %p122
      %p124 = scmp.ne.s32.totalorder %s113, %s114
      %p125 = scmp.eq.s32.totalorder %s41, 0
      %p126 = por %p124, %p125
      %p127 = scmp.ne.s32.totalorder %s113, %s114
      %p128 = scmp.eq.s32.totalorder %s42, 3
      %p129 = por %p127, %p128
      %p131 = scmp.ne.s32.totalorder %s114, %s130
      %p132 = scmp.eq.s32.totalorder %s42, 0
      %p133 = por %p131, %p132
      %s134 = ssub.s32 %s44, %s51
      %p135 = scmp.eq.s32.totalorder %s134, 0
      %s137 = sadd.s32 %s136, 1
      %s138 = scalar_select %p135, %s136, %s137
      %p141 = pneg %p135
      %p142 = scmp.eq.s32.totalorder %s36, 3
      %p143 = por %p141, %p142
      %p144 = scmp.ne.s32.totalorder %s136, %s139
      %p145 = scmp.eq.s32.totalorder %s36, 0
      %p146 = por %p144, %p145
      %p147 = scmp.ne.s32.totalorder %s136, %s139
      %p148 = scmp.eq.s32.totalorder %s41, 3
      %p149 = por %p147, %p148
      %p150 = scmp.ne.s32.totalorder %s139, %s140
      %p151 = scmp.eq.s32.totalorder %s41, 0
      %p152 = por %p150, %p151
      %p153 = scmp.ne.s32.totalorder %s139, %s140
      %p154 = scmp.eq.s32.totalorder %s42, 3
      %p155 = por %p153, %p154
      %p157 = scmp.ne.s32.totalorder %s140, %s156
      %p158 = scmp.eq.s32.totalorder %s42, 0
      %p159 = por %p157, %p158
      %s160 = ssub.s32 %s44, %s51
      %p161 = scmp.eq.s32.totalorder %s160, 0
      %s163 = sadd.s32 %s162, 1
      %s164 = scalar_select %p161, %s162, %s163
      %p167 = pneg %p161
      %p168 = scmp.eq.s32.totalorder %s36, 3
      %p169 = por %p167, %p168
      %p170 = scmp.ne.s32.totalorder %s162, %s165
      %p171 = scmp.eq.s32.totalorder %s36, 0
      %p172 = por %p170, %p171
      %p173 = scmp.ne.s32.totalorder %s162, %s165
      %p174 = scmp.eq.s32.totalorder %s41, 3
      %p175 = por %p173, %p174
      %p176 = scmp.ne.s32.totalorder %s165, %s166
      %p177 = scmp.eq.s32.totalorder %s41, 0
      %p178 = por %p176, %p177
      %p179 = scmp.ne.s32.totalorder %s165, %s166
      %p180 = scmp.eq.s32.totalorder %s42, 3
      %p181 = por %p179, %p180
      %p183 = scmp.ne.s32.totalorder %s166, %s182
      %p184 = scmp.eq.s32.totalorder %s42, 0
      %p185 = por %p183, %p184
      %s186 = ssub.s32 %s44, %s51
      %p187 = scmp.eq.s32.totalorder %s186, 0
      %s189 = sadd.s32 %s188, 1
      %s190 = scalar_select %p187, %s188, %s189
      %p193 = pneg %p187
      %p194 = scmp.eq.s32.totalorder %s36, 3
      %p195 = por %p193, %p194
      %p196 = scmp.ne.s32.totalorder %s188, %s191
      %p197 = scmp.eq.s32.totalorder %s36, 0
      %p198 = por %p196, %p197
      %p199 = scmp.ne.s32.totalorder %s188, %s191
      %p200 = scmp.eq.s32.totalorder %s41, 3
      %p201 = por %p199, %p200
      %p202 = scmp.ne.s32.totalorder %s191, %s192
      %p203 = scmp.eq.s32.totalorder %s41, 0
      %p204 = por %p202, %p203
      %p205 = scmp.ne.s32.totalorder %s191, %s192
      %p206 = scmp.eq.s32.totalorder %s42, 3
      %p207 = por %p205, %p206
      %p209 = scmp.ne.s32.totalorder %s192, %s208
      %p210 = scmp.eq.s32.totalorder %s42, 0
      %p211 = por %p209, %p210
      %s212 = ssub.s32 %s44, %s51
      %p213 = scmp.eq.s32.totalorder %s212, 0
      %s215 = sadd.s32 %s214, 1
      %s216 = scalar_select %p213, %s214, %s215
      %p219 = pneg %p213
      %p220 = scmp.eq.s32.totalorder %s36, 3
      %p221 = por %p219, %p220
      %p222 = scmp.ne.s32.totalorder %s214, %s217
      %p223 = scmp.eq.s32.totalorder %s36, 0
      %p224 = por %p222, %p223
      %p225 = scmp.ne.s32.totalorder %s214, %s217
      %p226 = scmp.eq.s32.totalorder %s41, 3
      %p227 = por %p225, %p226
      %p228 = scmp.ne.s32.totalorder %s217, %s218
      %p229 = scmp.eq.s32.totalorder %s41, 0
      %p230 = por %p228, %p229
      %p231 = scmp.ne.s32.totalorder %s217, %s218
      %p232 = scmp.eq.s32.totalorder %s42, 3
      %p233 = por %p231, %p232
      %p235 = scmp.ne.s32.totalorder %s218, %s234
      %p236 = scmp.eq.s32.totalorder %s42, 0
      %p237 = por %p235, %p236
      %s238 = ssub.s32 %s44, %s51
      %p239 = scmp.eq.s32.totalorder %s238, 0
      %s241 = sadd.s32 %s240, 1
      %s242 = scalar_select %p239, %s240, %s241
      %p245 = pneg %p239
      %p246 = scmp.eq.s32.totalorder %s36, 3
      %p247 = por %p245, %p246
      %p248 = scmp.ne.s32.totalorder %s240, %s243
      %p249 = scmp.eq.s32.totalorder %s36, 0
      %p250 = por %p248, %p249
      %p251 = scmp.ne.s32.totalorder %s240, %s243
      %p252 = scmp.eq.s32.totalorder %s41, 3
      %p253 = por %p251, %p252
      %p254 = scmp.ne.s32.totalorder %s243, %s244
      %p255 = scmp.eq.s32.totalorder %s41, 0
      %p256 = por %p254, %p255
      %p257 = scmp.ne.s32.totalorder %s243, %s244
      %p258 = scmp.eq.s32.totalorder %s42, 3
      %p259 = por %p257, %p258
      %p261 = scmp.ne.s32.totalorder %s244, %s260
      %p262 = scmp.eq.s32.totalorder %s42, 0
      %p263 = por %p261, %p262
      %s264 = ssub.s32 %s44, %s51
      %p265 = scmp.eq.s32.totalorder %s264, 0
      %s267 = sadd.s32 %s266, 1
      %s268 = scalar_select %p265, %s266, %s267
      %p271 = pneg %p265
      %p272 = scmp.eq.s32.totalorder %s36, 3
      %p273 = por %p271, %p272
      %p274 = scmp.ne.s32.totalorder %s266, %s269
      %p275 = scmp.eq.s32.totalorder %s36, 0
      %p276 = por %p274, %p275
      %p277 = scmp.ne.s32.totalorder %s266, %s269
      %p278 = scmp.eq.s32.totalorder %s41, 3
      %p279 = por %p277, %p278
      %p280 = scmp.ne.s32.totalorder %s269, %s270
      %p281 = scmp.eq.s32.totalorder %s41, 0
      %p282 = por %p280, %p281
      %p283 = scmp.ne.s32.totalorder %s269, %s270
      %p284 = scmp.eq.s32.totalorder %s42, 3
      %p285 = por %p283, %p284
      %p287 = scmp.ne.s32.totalorder %s270, %s286
      %p288 = scmp.eq.s32.totalorder %s42, 0
      %p289 = por %p287, %p288
      %s290 = ssub.s32 %s44, %s51
      %p291 = scmp.eq.s32.totalorder %s290, 0
      %s293 = sadd.s32 %s292, 1
      %s294 = scalar_select %p291, %s292, %s293
      %p297 = pneg %p291
      %p298 = scmp.eq.s32.totalorder %s36, 3
      %p299 = por %p297, %p298
      %p300 = scmp.ne.s32.totalorder %s292, %s295
      %p301 = scmp.eq.s32.totalorder %s36, 0
      %p302 = por %p300, %p301
      %p303 = scmp.ne.s32.totalorder %s292, %s295
      %p304 = scmp.eq.s32.totalorder %s41, 3
      %p305 = por %p303, %p304
      %p306 = scmp.ne.s32.totalorder %s295, %s296
      %p307 = scmp.eq.s32.totalorder %s41, 0
      %p308 = por %p306, %p307
      %p309 = scmp.ne.s32.totalorder %s295, %s296
      %p310 = scmp.eq.s32.totalorder %s42, 3
      %p311 = por %p309, %p310
      %p313 = scmp.ne.s32.totalorder %s296, %s312
      %p314 = scmp.eq.s32.totalorder %s42, 0
      %p315 = por %p313, %p314
      %s316 = ssub.s32 %s44, %s51
      %p317 = scmp.eq.s32.totalorder %s316, 0
      %s319 = sadd.s32 %s318, 1
      %s320 = scalar_select %p317, %s318, %s319
      %p323 = pneg %p317
      %p324 = scmp.eq.s32.totalorder %s36, 3
      %p325 = por %p323, %p324
      %p326 = scmp.ne.s32.totalorder %s318, %s321
      %p327 = scmp.eq.s32.totalorder %s36, 0
      %p328 = por %p326, %p327
      %p329 = scmp.ne.s32.totalorder %s318, %s321
      %p330 = scmp.eq.s32.totalorder %s41, 3
      %p331 = por %p329, %p330
      %p332 = scmp.ne.s32.totalorder %s321, %s322
      %p333 = scmp.eq.s32.totalorder %s41, 0
      %p334 = por %p332, %p333
      %p335 = scmp.ne.s32.totalorder %s321, %s322
      %p336 = scmp.eq.s32.totalorder %s42, 3
      %p337 = por %p335, %p336
      %p339 = scmp.ne.s32.totalorder %s322, %s338
      %p340 = scmp.eq.s32.totalorder %s42, 0
      %p341 = por %p339, %p340
      %s342 = ssub.s32 %s44, %s51
      %p343 = scmp.eq.s32.totalorder %s342, 0
      %s345 = sadd.s32 %s344, 1
      %s346 = scalar_select %p343, %s344, %s345
      %p349 = pneg %p343
      %p350 = scmp.eq.s32.totalorder %s36, 3
      %p351 = por %p349, %p350
      %p352 = scmp.ne.s32.totalorder %s344, %s347
      %p353 = scmp.eq.s32.totalorder %s36, 0
      %p354 = por %p352, %p353
      %p355 = scmp.ne.s32.totalorder %s344, %s347
      %p356 = scmp.eq.s32.totalorder %s41, 3
      %p357 = por %p355, %p356
      %p358 = scmp.ne.s32.totalorder %s347, %s348
      %p359 = scmp.eq.s32.totalorder %s41, 0
      %p360 = por %p358, %p359
      %p361 = scmp.ne.s32.totalorder %s347, %s348
      %p362 = scmp.eq.s32.totalorder %s42, 3
      %p363 = por %p361, %p362
      %p365 = scmp.ne.s32.totalorder %s348, %s364
      %p366 = scmp.eq.s32.totalorder %s42, 0
      %p367 = por %p365, %p366
      %s368 = ssub.s32 %s44, %s51
      %p369 = scmp.eq.s32.totalorder %s368, 0
      %s371 = sadd.s32 %s370, 1
      %s372 = scalar_select %p369, %s370, %s371
      %p375 = pneg %p369
      %p376 = scmp.eq.s32.totalorder %s36, 3
      %p377 = por %p375, %p376
      %p378 = scmp.ne.s32.totalorder %s370, %s373
      %p379 = scmp.eq.s32.totalorder %s36, 0
      %p380 = por %p378, %p379
      %p381 = scmp.ne.s32.totalorder %s370, %s373
      %p382 = scmp.eq.s32.totalorder %s41, 3
      %p383 = por %p381, %p382
      %p384 = scmp.ne.s32.totalorder %s373, %s374
      %p385 = scmp.eq.s32.totalorder %s41, 0
      %p386 = por %p384, %p385
      %p387 = scmp.ne.s32.totalorder %s373, %s374
      %p388 = scmp.eq.s32.totalorder %s42, 3
      %p389 = por %p387, %p388
      %p391 = scmp.ne.s32.totalorder %s374, %s390
      %p392 = scmp.eq.s32.totalorder %s42, 0
      %p393 = por %p391, %p392
      %s394 = ssub.s32 %s44, %s51
      %p395 = scmp.eq.s32.totalorder %s394, 0
      %s397 = sadd.s32 %s396, 1
      %s398 = scalar_select %p395, %s396, %s397
      %p401 = pneg %p395
      %p402 = scmp.eq.s32.totalorder %s36, 3
      %p403 = por %p401, %p402
      %p404 = scmp.ne.s32.totalorder %s396, %s399
      %p405 = scmp.eq.s32.totalorder %s36, 0
      %p406 = por %p404, %p405
      %p407 = scmp.ne.s32.totalorder %s396, %s399
      %p408 = scmp.eq.s32.totalorder %s41, 3
      %p409 = por %p407, %p408
      %p410 = scmp.ne.s32.totalorder %s399, %s400
      %p411 = scmp.eq.s32.totalorder %s41, 0
      %p412 = por %p410, %p411
      %p413 = scmp.ne.s32.totalorder %s399, %s400
      %p414 = scmp.eq.s32.totalorder %s42, 3
      %p415 = por %p413, %p414
      %p417 = scmp.ne.s32.totalorder %s400, %s416
      %p418 = scmp.eq.s32.totalorder %s42, 0
      %p419 = por %p417, %p418
      %s420 = ssub.s32 %s44, %s51
      %p421 = scmp.eq.s32.totalorder %s420, 0
      %s423 = sadd.s32 %s422, 1
      %s424 = scalar_select %p421, %s422, %s423
      %p427 = pneg %p421
      %p428 = scmp.eq.s32.totalorder %s36, 3
      %p429 = por %p427, %p428
      %p430 = scmp.ne.s32.totalorder %s422, %s425
      %p431 = scmp.eq.s32.totalorder %s36, 0
      %p432 = por %p430, %p431
      %p433 = scmp.ne.s32.totalorder %s422, %s425
      %p434 = scmp.eq.s32.totalorder %s41, 3
      %p435 = por %p433, %p434
      %p436 = scmp.ne.s32.totalorder %s425, %s426
      %p437 = scmp.eq.s32.totalorder %s41, 0
      %p438 = por %p436, %p437
      %p439 = scmp.ne.s32.totalorder %s425, %s426
      %p440 = scmp.eq.s32.totalorder %s42, 3
      %p441 = por %p439, %p440
      %p443 = scmp.ne.s32.totalorder %s426, %s442
      %p444 = scmp.eq.s32.totalorder %s42, 0
      %p445 = por %p443, %p444
      %s446 = ssub.s32 %s44, %s51
      %p447 = scmp.eq.s32.totalorder %s446, 0
      %s449 = sadd.s32 %s448, 1
      %s450 = scalar_select %p447, %s448, %s449
      %p453 = pneg %p447
      %p454 = scmp.eq.s32.totalorder %s36, 3
      %p455 = por %p453, %p454
      %p456 = scmp.ne.s32.totalorder %s448, %s451
      %p457 = scmp.eq.s32.totalorder %s36, 0
      %p458 = por %p456, %p457
      %p459 = scmp.ne.s32.totalorder %s448, %s451
      %p460 = scmp.eq.s32.totalorder %s41, 3
      %p461 = por %p459, %p460
      %p462 = scmp.ne.s32.totalorder %s451, %s452
      %p463 = scmp.eq.s32.totalorder %s41, 0
      %p464 = por %p462, %p463
      %p465 = scmp.ne.s32.totalorder %s451, %s452
      %p466 = scmp.eq.s32.totalorder %s42, 3
      %p467 = por %p465, %p466
      %p469 = scmp.ne.s32.totalorder %s452, %s468
      %p470 = scmp.eq.s32.totalorder %s42, 0
      %p471 = por %p469, %p470
      %s472 = ssub.s32 %s44, %s51
      %p473 = scmp.eq.s32.totalorder %s472, 0
      %s475 = sadd.s32 %s474, 1
      %s476 = scalar_select %p473, %s474, %s475
      %p479 = pneg %p473
      %p480 = scmp.eq.s32.totalorder %s36, 3
      %p481 = por %p479, %p480
      %p482 = scmp.ne.s32.totalorder %s474, %s477
      %p483 = scmp.eq.s32.totalorder %s36, 0
      %p484 = por %p482, %p483
      %p485 = scmp.ne.s32.totalorder %s474, %s477
      %p486 = scmp.eq.s32.totalorder %s41, 3
      %p487 = por %p485, %p486
      %p488 = scmp.ne.s32.totalorder %s477, %s478
      %p489 = scmp.eq.s32.totalorder %s41, 0
      %p490 = por %p488, %p489
      %p491 = scmp.ne.s32.totalorder %s477, %s478
      %p492 = scmp.eq.s32.totalorder %s42, 3
      %p493 = por %p491, %p492
      %p495 = scmp.ne.s32.totalorder %s478, %s494
      %p496 = scmp.eq.s32.totalorder %s42, 0
      %p497 = por %p495, %p496
      %s498 = ssub.s32 %s44, %s51
      %p499 = scmp.eq.s32.totalorder %s498, 0
      %s501 = sadd.s32 %s500, 1
      %s502 = scalar_select %p499, %s500, %s501
      %p505 = pneg %p499
      %p506 = scmp.eq.s32.totalorder %s36, 3
      %p507 = por %p505, %p506
      %p508 = scmp.ne.s32.totalorder %s500, %s503
      %p509 = scmp.eq.s32.totalorder %s36, 0
      %p510 = por %p508, %p509
      %p511 = scmp.ne.s32.totalorder %s500, %s503
      %p512 = scmp.eq.s32.totalorder %s41, 3
      %p513 = por %p511, %p512
      %p514 = scmp.ne.s32.totalorder %s503, %s504
      %p515 = scmp.eq.s32.totalorder %s41, 0
      %p516 = por %p514, %p515
      %p517 = scmp.ne.s32.totalorder %s503, %s504
      %p518 = scmp.eq.s32.totalorder %s42, 3
      %p519 = por %p517, %p518
      %p521 = scmp.ne.s32.totalorder %s504, %s520
      %p522 = scmp.eq.s32.totalorder %s42, 0
      %p523 = por %p521, %p522
      %s524 = ssub.s32 %s44, %s51
      %p525 = scmp.eq.s32.totalorder %s524, 0
      %s527 = sadd.s32 %s526, 1
      %s528 = scalar_select %p525, %s526, %s527
      %p531 = pneg %p525
      %p532 = scmp.eq.s32.totalorder %s36, 3
      %p533 = por %p531, %p532
      %p534 = scmp.ne.s32.totalorder %s526, %s529
      %p535 = scmp.eq.s32.totalorder %s36, 0
      %p536 = por %p534, %p535
      %p537 = scmp.ne.s32.totalorder %s526, %s529
      %p538 = scmp.eq.s32.totalorder %s41, 3
      %p539 = por %p537, %p538
      %p540 = scmp.ne.s32.totalorder %s529, %s530
      %p541 = scmp.eq.s32.totalorder %s41, 0
      %p542 = por %p540, %p541
      %p543 = scmp.ne.s32.totalorder %s529, %s530
      %p544 = scmp.eq.s32.totalorder %s42, 3
      %p545 = por %p543, %p544
      %p547 = scmp.ne.s32.totalorder %s530, %s546
      %p548 = scmp.eq.s32.totalorder %s42, 0
      %p549 = por %p547, %p548
      %s550 = ssub.s32 %s44, %s51
      %p551 = scmp.eq.s32.totalorder %s550, 0
      %s553 = sadd.s32 %s552, 1
      %s554 = scalar_select %p551, %s552, %s553
      %p557 = pneg %p551
      %p558 = scmp.eq.s32.totalorder %s36, 3
      %p559 = por %p557, %p558
      %p560 = scmp.ne.s32.totalorder %s552, %s555
      %p561 = scmp.eq.s32.totalorder %s36, 0
      %p562 = por %p560, %p561
      %p563 = scmp.ne.s32.totalorder %s552, %s555
      %p564 = scmp.eq.s32.totalorder %s41, 3
      %p565 = por %p563, %p564
      %p566 = scmp.ne.s32.totalorder %s555, %s556
      %p567 = scmp.eq.s32.totalorder %s41, 0
      %p568 = por %p566, %p567
      %p569 = scmp.ne.s32.totalorder %s555, %s556
      %p570 = scmp.eq.s32.totalorder %s42, 3
      %p571 = por %p569, %p570
      %p573 = scmp.ne.s32.totalorder %s556, %s572
      %p574 = scmp.eq.s32.totalorder %s42, 0
      %p575 = por %p573, %p574
      %s576 = ssub.s32 %s44, %s51
      %p577 = scmp.eq.s32.totalorder %s576, 0
      %s579 = sadd.s32 %s578, 1
      %s580 = scalar_select %p577, %s578, %s579
      %p583 = pneg %p577
      %p584 = scmp.eq.s32.totalorder %s36, 3
      %p585 = por %p583, %p584
      %p586 = scmp.ne.s32.totalorder %s578, %s581
      %p587 = scmp.eq.s32.totalorder %s36, 0
      %p588 = por %p586, %p587
      %p589 = scmp.ne.s32.totalorder %s578, %s581
      %p590 = scmp.eq.s32.totalorder %s41, 3
      %p591 = por %p589, %p590
      %p592 = scmp.ne.s32.totalorder %s581, %s582
      %p593 = scmp.eq.s32.totalorder %s41, 0
      %p594 = por %p592, %p593
      %p595 = scmp.ne.s32.totalorder %s581, %s582
      %p596 = scmp.eq.s32.totalorder %s42, 3
      %p597 = por %p595, %p596
      %p599 = scmp.ne.s32.totalorder %s582, %s598
      %p600 = scmp.eq.s32.totalorder %s42, 0
      %p601 = por %p599, %p600
      %s602 = ssub.s32 %s44, %s51
      %p603 = scmp.eq.s32.totalorder %s602, 0
      %s605 = sadd.s32 %s604, 1
      %s606 = scalar_select %p603, %s604, %s605
      %p609 = pneg %p603
      %p610 = scmp.eq.s32.totalorder %s36, 3
      %p611 = por %p609, %p610
      %p612 = scmp.ne.s32.totalorder %s604, %s607
      %p613 = scmp.eq.s32.totalorder %s36, 0
      %p614 = por %p612, %p613
      %p615 = scmp.ne.s32.totalorder %s604, %s607
      %p616 = scmp.eq.s32.totalorder %s41, 3
      %p617 = por %p615, %p616
      %p618 = scmp.ne.s32.totalorder %s607, %s608
      %p619 = scmp.eq.s32.totalorder %s41, 0
      %p620 = por %p618, %p619
      %p621 = scmp.ne.s32.totalorder %s607, %s608
      %p622 = scmp.eq.s32.totalorder %s42, 3
      %p623 = por %p621, %p622
      %p625 = scmp.ne.s32.totalorder %s608, %s624
      %p626 = scmp.eq.s32.totalorder %s42, 0
      %p627 = por %p625, %p626
      %s629 = sadd.s32 %s628, 1
      %p632 = scmp.eq.s32.totalorder %s36, 3
      %p633 = scmp.ne.s32.totalorder %s628, %s630
      %p634 = scmp.eq.s32.totalorder %s36, 0
      %p635 = por %p633, %p634
      %p636 = scmp.ne.s32.totalorder %s628, %s630
      %p637 = scmp.eq.s32.totalorder %s41, 3
      %p638 = por %p636, %p637
      %p639 = scmp.ne.s32.totalorder %s630, %s631
      %p640 = scmp.eq.s32.totalorder %s41, 0
      %p641 = por %p639, %p640
      %p642 = scmp.ne.s32.totalorder %s630, %s631
      %p643 = scmp.eq.s32.totalorder %s42, 3
      %p644 = por %p642, %p643
      %p646 = scmp.ne.s32.totalorder %s631, %s645
      %p647 = scmp.eq.s32.totalorder %s42, 0
      %p648 = por %p646, %p647
      %s650 = sadd.s32 %s649, 1
      %p653 = scmp.eq.s32.totalorder %s36, 3
      %p654 = scmp.ne.s32.totalorder %s649, %s651
      %p655 = scmp.eq.s32.totalorder %s36, 0
      %p656 = por %p654, %p655
      %p657 = scmp.ne.s32.totalorder %s649, %s651
      %p658 = scmp.eq.s32.totalorder %s41, 3
      %p659 = por %p657, %p658
      %p660 = scmp.ne.s32.totalorder %s651, %s652
      %p661 = scmp.eq.s32.totalorder %s41, 0
      %p662 = por %p660, %p661
      %p663 = scmp.ne.s32.totalorder %s651, %s652
      %p664 = scmp.eq.s32.totalorder %s42, 3
      %p665 = por %p663, %p664
      %p667 = scmp.ne.s32.totalorder %s652, %s666
      %p668 = scmp.eq.s32.totalorder %s42, 0
      %p669 = por %p667, %p668
      %s670 = ssub.s32 %s43, %s55
      %p671 = scmp.eq.s32.totalorder %s670, 0
      %s673 = sadd.s32 %s672, 1
      %s674 = scalar_select %p671, %s672, %s673
      %p677 = pneg %p671
      %p678 = scmp.eq.s32.totalorder %s36, 3
      %p679 = por %p677, %p678
      %p680 = scmp.ne.s32.totalorder %s672, %s675
      %p681 = scmp.eq.s32.totalorder %s36, 0
      %p682 = por %p680, %p681
      %p683 = scmp.ne.s32.totalorder %s672, %s675
      %p684 = scmp.eq.s32.totalorder %s41, 3
      %p685 = por %p683, %p684
      %p686 = scmp.ne.s32.totalorder %s675, %s676
      %p687 = scmp.eq.s32.totalorder %s41, 0
      %p688 = por %p686, %p687
      %p689 = scmp.ne.s32.totalorder %s675, %s676
      %p690 = scmp.eq.s32.totalorder %s42, 3
      %p691 = por %p689, %p690
      %p693 = scmp.ne.s32.totalorder %s676, %s692
      %p694 = scmp.eq.s32.totalorder %s42, 0
      %p695 = por %p693, %p694
      %s696 = ssub.s32 %s44, %s51
      %s697 = ssub.s32 %s43, %s55
      %s698 = sor.u32 %s696, %s697
      %p699 = scmp.eq.s32.totalorder %s698, 0
      %s701 = sadd.s32 %s700, 1
      %s702 = scalar_select %p699, %s700, %s701
      %p705 = pneg %p699
      %p706 = scmp.eq.s32.totalorder %s36, 3
      %p707 = por %p705, %p706
      %p708 = scmp.ne.s32.totalorder %s700, %s703
      %p709 = scmp.eq.s32.totalorder %s36, 0
      %p710 = por %p708, %p709
      %p711 = scmp.ne.s32.totalorder %s700, %s703
      %p712 = scmp.eq.s32.totalorder %s41, 3
      %p713 = por %p711, %p712
      %p714 = scmp.ne.s32.totalorder %s703, %s704
      %p715 = scmp.eq.s32.totalorder %s41, 0
      %p716 = por %p714, %p715
      %p717 = scmp.ne.s32.totalorder %s703, %s704
      %p718 = scmp.eq.s32.totalorder %s42, 3
      %p719 = por %p717, %p718
      %p721 = scmp.ne.s32.totalorder %s704, %s720
      %p722 = scmp.eq.s32.totalorder %s42, 0
      %p723 = por %p721, %p722
      %s724 = ssub.s32 %s44, %s51
      %s725 = ssub.s32 %s43, %s55
      %s726 = sor.u32 %s724, %s725
      %p727 = scmp.eq.s32.totalorder %s726, 0
      %s729 = sadd.s32 %s728, 1
      %s730 = scalar_select %p727, %s728, %s729
      %p733 = pneg %p727
      %p734 = scmp.eq.s32.totalorder %s36, 3
      %p735 = por %p733, %p734
      %p736 = scmp.ne.s32.totalorder %s728, %s731
      %p737 = scmp.eq.s32.totalorder %s36, 0
      %p738 = por %p736, %p737
      %p739 = scmp.ne.s32.totalorder %s728, %s731
      %p740 = scmp.eq.s32.totalorder %s41, 3
      %p741 = por %p739, %p740
      %p742 = scmp.ne.s32.totalorder %s731, %s732
      %p743 = scmp.eq.s32.totalorder %s41, 0
      %p744 = por %p742, %p743
      %p745 = scmp.ne.s32.totalorder %s731, %s732
      %p746 = scmp.eq.s32.totalorder %s42, 3
      %p747 = por %p745, %p746
      %p749 = scmp.ne.s32.totalorder %s732, %s748
      %p750 = scmp.eq.s32.totalorder %s42, 0
      %p751 = por %p749, %p750
      %p752 = scmp.le.s32.totalorder 1, %s36
      %p753 = scmp.lt.s32.totalorder %s36, 5
      %p754 = pnand %p752, %p753
      %p755 = pneg %p754
      // Predicated region
      $region9: #{transformer_decoder_forward.1} parent=5 // pred_check
        _
      $region10: #{transformer_decoder_forward.1} parent=5 // pred_check_branch
        %757 = sbr.rel (%p754) target = $region12
      $region11: #{transformer_decoder_forward.1} parent=5 // pred_region
        %s758 = ssub.s32 %s36, 1
        // Predicated region
        $region13: #{transformer_decoder_forward.1} parent=11 // pred_check
          %p759 = pneg %p641
        $region14: #{transformer_decoder_forward.1} parent=11 // pred_check_branch
          %761 = sbr.rel (%p759) target = $region16
        $region15: #{transformer_decoder_forward.1} parent=11 // pred_region
          _
        $region16: #{transformer_decoder_forward.1} parent=11 // pred_fallthru
          _
        // Predicated region
        $region17: #{transformer_decoder_forward.1} parent=11 // pred_check
          %p762 = pneg %p662
        $region18: #{transformer_decoder_forward.1} parent=11 // pred_check_branch
          %764 = sbr.rel (%p762) target = $region20
        $region19: #{transformer_decoder_forward.1} parent=11 // pred_region
          _
        $region20: #{transformer_decoder_forward.1} parent=11 // pred_fallthru
          _
      $region12: #{transformer_decoder_forward.1} parent=5 // pred_fallthru
        _
      %p765 = scmp.lt.s32.totalorder %s36, 4
      // Predicated region
      $region21: #{transformer_decoder_forward.1} parent=5 // pred_check
        %p766 = pneg %p765
      $region22: #{transformer_decoder_forward.1} parent=5 // pred_check_branch
        %768 = sbr.rel (%p766) target = $region24
      $region23: #{transformer_decoder_forward.1} parent=5 // pred_region
        // Predicated region
        $region25: #{transformer_decoder_forward.1} parent=23 // pred_check
          %p769 = pneg %p68
        $region26: #{transformer_decoder_forward.1} parent=23 // pred_check_branch
          %771 = sbr.rel (%p769) target = $region28
        $region27: #{transformer_decoder_forward.1} parent=23 // pred_region
          %p772 = scmp.lt.s32.totalorder %s43, 1
          %s773 = scalar_select %p772, %s43, 1
          %s774 = smul.addr %s773, 8
          %s775 = scalar_lea.vmem %s0, %s774
        $region28: #{transformer_decoder_forward.1} parent=23 // pred_fallthru
          _
        // Predicated region
        $region29: #{transformer_decoder_forward.1} parent=23 // pred_check
          %p776 = pneg %p94
        $region30: #{transformer_decoder_forward.1} parent=23 // pred_check_branch
          %778 = sbr.rel (%p776) target = $region32
        $region31: #{transformer_decoder_forward.1} parent=23 // pred_region
          %p779 = scmp.lt.s32.totalorder %s43, 1
          %s780 = scalar_select %p779, %s43, 1
          %s781 = smul.addr %s780, 2
          %s782 = smul.addr %s781, 8
          %s783 = scalar_lea.vmem %s1, %s782
        $region32: #{transformer_decoder_forward.1} parent=23 // pred_fallthru
          _
        // Predicated region
        $region33: #{transformer_decoder_forward.1} parent=23 // pred_check
          %p784 = pneg %p120
        $region34: #{transformer_decoder_forward.1} parent=23 // pred_check_branch
          %786 = sbr.rel (%p784) target = $region36
        $region35: #{transformer_decoder_forward.1} parent=23 // pred_region
          %p787 = scmp.lt.s32.totalorder %s44, 1
          %s788 = scalar_select %p787, %s44, 1
          %s789 = scalar_lea.vmem %s2, %s788
        $region36: #{transformer_decoder_forward.1} parent=23 // pred_fallthru
          _
        // Predicated region
        $region37: #{transformer_decoder_forward.1} parent=23 // pred_check
          %p790 = pneg %p146
        $region38: #{transformer_decoder_forward.1} parent=23 // pred_check_branch
          %792 = sbr.rel (%p790) target = $region40
        $region39: #{transformer_decoder_forward.1} parent=23 // pred_region
          %p793 = scmp.lt.s32.totalorder %s44, 1
          %s794 = scalar_select %p793, %s44, 1
          %s795 = scalar_lea.vmem %s3, %s794
        $region40: #{transformer_decoder_forward.1} parent=23 // pred_fallthru
          _
        // Predicated region
        $region41: #{transformer_decoder_forward.1} parent=23 // pred_check
          %p796 = pneg %p172
        $region42: #{transformer_decoder_forward.1} parent=23 // pred_check_branch
          %798 = sbr.rel (%p796) target = $region44
        $region43: #{transformer_decoder_forward.1} parent=23 // pred_region
          %p799 = scmp.lt.s32.totalorder %s44, 1
          %s800 = scalar_select %p799, %s44, 1
          %s801 = scalar_lea.vmem %s4, %s800
        $region44: #{transformer_decoder_forward.1} parent=23 // pred_fallthru
          _
        // Predicated region
        $region45: #{transformer_decoder_forward.1} parent=23 // pred_check
          %p802 = pneg %p198
        $region46: #{transformer_decoder_forward.1} parent=23 // pred_check_branch
          %804 = sbr.rel (%p802) target = $region48
        $region47: #{transformer_decoder_forward.1} parent=23 // pred_region
          %p805 = scmp.lt.s32.totalorder %s44, 1
          %s806 = scalar_select %p805, %s44, 1
          %s807 = scalar_lea.vmem %s5, %s806
        $region48: #{transformer_decoder_forward.1} parent=23 // pred_fallthru
          _
        // Predicated region
        $region49: #{transformer_decoder_forward.1} parent=23 // pred_check
          %p808 = pneg %p224
        $region50: #{transformer_decoder_forward.1} parent=23 // pred_check_branch
          %810 = sbr.rel (%p808) target = $region52
        $region51: #{transformer_decoder_forward.1} parent=23 // pred_region
          %p811 = scmp.lt.s32.totalorder %s44, 1
          %s812 = scalar_select %p811, %s44, 1
          %s813 = scalar_lea.vmem %s6, %s812
        $region52: #{transformer_decoder_forward.1} parent=23 // pred_fallthru
          _
        // Predicated region
        $region53: #{transformer_decoder_forward.1} parent=23 // pred_check
          %p814 = pneg %p250
        $region54: #{transformer_decoder_forward.1} parent=23 // pred_check_branch
          %816 = sbr.rel (%p814) target = $region56
        $region55: #{transformer_decoder_forward.1} parent=23 // pred_region
          %p817 = scmp.lt.s32.totalorder %s44, 1
          %s818 = scalar_select %p817, %s44, 1
          %s819 = scalar_lea.vmem %s7, %s818
        $region56: #{transformer_decoder_forward.1} parent=23 // pred_fallthru
          _
        // Predicated region
        $region57: #{transformer_decoder_forward.1} parent=23 // pred_check
          %p820 = pneg %p276
        $region58: #{transformer_decoder_forward.1} parent=23 // pred_check_branch
          %822 = sbr.rel (%p820) target = $region60
        $region59: #{transformer_decoder_forward.1} parent=23 // pred_region
          %p823 = scmp.lt.s32.totalorder %s44, 1
          %s824 = scalar_select %p823, %s44, 1
          %s825 = smul.addr %s824, 4
          %s826 = smul.addr %s825, 4
          %s827 = scalar_lea.vmem %s8, %s826
        $region60: #{transformer_decoder_forward.1} parent=23 // pred_fallthru
          _
        // Predicated region
        $region61: #{transformer_decoder_forward.1} parent=23 // pred_check
          %p828 = pneg %p302
        $region62: #{transformer_decoder_forward.1} parent=23 // pred_check_branch
          %830 = sbr.rel (%p828) target = $region64
        $region63: #{transformer_decoder_forward.1} parent=23 // pred_region
          %p831 = scmp.lt.s32.totalorder %s44, 1
          %s832 = scalar_select %p831, %s44, 1
          %s833 = scalar_lea.vmem %s9, %s832
        $region64: #{transformer_decoder_forward.1} parent=23 // pred_fallthru
          _
        // Predicated region
        $region65: #{transformer_decoder_forward.1} parent=23 // pred_check
          %p834 = pneg %p328
        $region66: #{transformer_decoder_forward.1} parent=23 // pred_check_branch
          %836 = sbr.rel (%p834) target = $region68
        $region67: #{transformer_decoder_forward.1} parent=23 // pred_region
          %p837 = scmp.lt.s32.totalorder %s44, 1
          %s838 = scalar_select %p837, %s44, 1
          %s839 = smul.addr %s838, 4
          %s840 = smul.addr %s839, 4
          %s841 = scalar_lea.vmem %s10, %s840
        $region68: #{transformer_decoder_forward.1} parent=23 // pred_fallthru
          _
        // Predicated region
        $region69: #{transformer_decoder_forward.1} parent=23 // pred_check
          %p842 = pneg %p354
        $region70: #{transformer_decoder_forward.1} parent=23 // pred_check_branch
          %844 = sbr.rel (%p842) target = $region72
        $region71: #{transformer_decoder_forward.1} parent=23 // pred_region
          %p845 = scmp.lt.s32.totalorder %s44, 1
          %s846 = scalar_select %p845, %s44, 1
          %s847 = scalar_lea.vmem %s11, %s846
        $region72: #{transformer_decoder_forward.1} parent=23 // pred_fallthru
          _
        // Predicated region
        $region73: #{transformer_decoder_forward.1} parent=23 // pred_check
          %p848 = pneg %p380
        $region74: #{transformer_decoder_forward.1} parent=23 // pred_check_branch
          %850 = sbr.rel (%p848) target = $region76
        $region75: #{transformer_decoder_forward.1} parent=23 // pred_region
          %p851 = scmp.lt.s32.totalorder %s44, 1
          %s852 = scalar_select %p851, %s44, 1
          %s853 = smul.addr %s852, 4
          %s854 = smul.addr %s853, 4
          %s855 = scalar_lea.vmem %s12, %s854
        $region76: #{transformer_decoder_forward.1} parent=23 // pred_fallthru
          _
        // Predicated region
        $region77: #{transformer_decoder_forward.1} parent=23 // pred_check
          %p856 = pneg %p406
        $region78: #{transformer_decoder_forward.1} parent=23 // pred_check_branch
          %858 = sbr.rel (%p856) target = $region80
        $region79: #{transformer_decoder_forward.1} parent=23 // pred_region
          %p859 = scmp.lt.s32.totalorder %s44, 1
          %s860 = scalar_select %p859, %s44, 1
          %s861 = scalar_lea.vmem %s13, %s860
        $region80: #{transformer_decoder_forward.1} parent=23 // pred_fallthru
          _
        // Predicated region
        $region81: #{transformer_decoder_forward.1} parent=23 // pred_check
          %p862 = pneg %p432
        $region82: #{transformer_decoder_forward.1} parent=23 // pred_check_branch
          %864 = sbr.rel (%p862) target = $region84
        $region83: #{transformer_decoder_forward.1} parent=23 // pred_region
          %p865 = scmp.lt.s32.totalorder %s44, 1
          %s866 = scalar_select %p865, %s44, 1
          %s867 = smul.addr %s866, 4
          %s868 = smul.addr %s867, 4
          %s869 = scalar_lea.vmem %s14, %s868
        $region84: #{transformer_decoder_forward.1} parent=23 // pred_fallthru
          _
        // Predicated region
        $region85: #{transformer_decoder_forward.1} parent=23 // pred_check
          %p870 = pneg %p458
        $region86: #{transformer_decoder_forward.1} parent=23 // pred_check_branch
          %872 = sbr.rel (%p870) target = $region88
        $region87: #{transformer_decoder_forward.1} parent=23 // pred_region
          %p873 = scmp.lt.s32.totalorder %s44, 1
          %s874 = scalar_select %p873, %s44, 1
          %s875 = scalar_lea.vmem %s15, %s874
        $region88: #{transformer_decoder_forward.1} parent=23 // pred_fallthru
          _
        // Predicated region
        $region89: #{transformer_decoder_forward.1} parent=23 // pred_check
          %p876 = pneg %p484
        $region90: #{transformer_decoder_forward.1} parent=23 // pred_check_branch
          %878 = sbr.rel (%p876) target = $region92
        $region91: #{transformer_decoder_forward.1} parent=23 // pred_region
          %p879 = scmp.lt.s32.totalorder %s44, 1
          %s880 = scalar_select %p879, %s44, 1
          %s881 = smul.addr %s880, 4
          %s882 = smul.addr %s881, 4
          %s883 = scalar_lea.vmem %s16, %s882
        $region92: #{transformer_decoder_forward.1} parent=23 // pred_fallthru
          _
        // Predicated region
        $region93: #{transformer_decoder_forward.1} parent=23 // pred_check
          %p884 = pneg %p510
        $region94: #{transformer_decoder_forward.1} parent=23 // pred_check_branch
          %886 = sbr.rel (%p884) target = $region96
        $region95: #{transformer_decoder_forward.1} parent=23 // pred_region
          %p887 = scmp.lt.s32.totalorder %s44, 1
          %s888 = scalar_select %p887, %s44, 1
          %s889 = scalar_lea.vmem %s17, %s888
        $region96: #{transformer_decoder_forward.1} parent=23 // pred_fallthru
          _
        // Predicated region
        $region97: #{transformer_decoder_forward.1} parent=23 // pred_check
          %p890 = pneg %p536
        $region98: #{transformer_decoder_forward.1} parent=23 // pred_check_branch
          %892 = sbr.rel (%p890) target = $region100
        $region99: #{transformer_decoder_forward.1} parent=23 // pred_region
          %p893 = scmp.lt.s32.totalorder %s44, 1
          %s894 = scalar_select %p893, %s44, 1
          %s895 = smul.addr %s894, 4
          %s896 = smul.addr %s895, 4
          %s897 = scalar_lea.vmem %s18, %s896
        $region100: #{transformer_decoder_forward.1} parent=23 // pred_fallthru
          _
        // Predicated region
        $region101: #{transformer_decoder_forward.1} parent=23 // pred_check
          %p898 = pneg %p562
        $region102: #{transformer_decoder_forward.1} parent=23 // pred_check_branch
          %900 = sbr.rel (%p898) target = $region104
        $region103: #{transformer_decoder_forward.1} parent=23 // pred_region
          %p901 = scmp.lt.s32.totalorder %s44, 1
          %s902 = scalar_select %p901, %s44, 1
          %s903 = scalar_lea.vmem %s19, %s902
        $region104: #{transformer_decoder_forward.1} parent=23 // pred_fallthru
          _
        // Predicated region
        $region105: #{transformer_decoder_forward.1} parent=23 // pred_check
          %p904 = pneg %p588
        $region106: #{transformer_decoder_forward.1} parent=23 // pred_check_branch
          %906 = sbr.rel (%p904) target = $region108
        $region107: #{transformer_decoder_forward.1} parent=23 // pred_region
          %p907 = scmp.lt.s32.totalorder %s44, 1
          %s908 = scalar_select %p907, %s44, 1
          %s909 = smul.addr %s908, 16
          %s910 = smul.addr %s909, 4
          %s911 = scalar_lea.vmem %s20, %s910
        $region108: #{transformer_decoder_forward.1} parent=23 // pred_fallthru
          _
        // Predicated region
        $region109: #{transformer_decoder_forward.1} parent=23 // pred_check
          %p912 = pneg %p614
        $region110: #{transformer_decoder_forward.1} parent=23 // pred_check_branch
          %914 = sbr.rel (%p912) target = $region112
        $region111: #{transformer_decoder_forward.1} parent=23 // pred_region
          %p915 = scmp.lt.s32.totalorder %s44, 1
          %s916 = scalar_select %p915, %s44, 1
          %s917 = scalar_lea.vmem %s21, %s916
        $region112: #{transformer_decoder_forward.1} parent=23 // pred_fallthru
          _
      $region24: #{transformer_decoder_forward.1} parent=5 // pred_fallthru
        _
      %p918 = scmp.le.s32.totalorder 1, %s36
      %p919 = scmp.lt.s32.totalorder %s36, 5
      %p920 = pnand %p918, %p919
      %p921 = pneg %p920
      // Predicated region
      $region113: #{transformer_decoder_forward.1} parent=5 // pred_check
        _
      $region114: #{transformer_decoder_forward.1} parent=5 // pred_check_branch
        %923 = sbr.rel (%p920) target = $region116
      $region115: #{transformer_decoder_forward.1} parent=5 // pred_region
        %s924 = ssub.s32 %s36, 1
        %p925 = scmp.lt.s32.totalorder %s45, 1
        %s926 = scalar_select %p925, %s45, 1
        %s927 = smul.addr %s926, 8
        %s928 = scalar_lea.vmem %s0, %s927
        %p929 = pneg %p74
        %p930 = pneg %p71
        %p931 = scmp.lt.s32.totalorder %s45, 1
        %s932 = scalar_select %p931, %s45, 1
        %s933 = smul.addr %s932, 2
        %s934 = smul.addr %s933, 8
        %s935 = scalar_lea.vmem %s1, %s934
        %p936 = pneg %p100
        %p937 = pneg %p97
        %p938 = scmp.lt.s32.totalorder %s46, 1
        %s939 = scalar_select %p938, %s46, 1
        %s940 = scalar_lea.vmem %s2, %s939
        %p941 = pneg %p126
        %p942 = pneg %p123
        %p943 = scmp.lt.s32.totalorder %s46, 1
        %s944 = scalar_select %p943, %s46, 1
        %s945 = scalar_lea.vmem %s3, %s944
        %p946 = pneg %p152
        %p947 = pneg %p149
        %p948 = scmp.lt.s32.totalorder %s46, 1
        %s949 = scalar_select %p948, %s46, 1
        %s950 = scalar_lea.vmem %s4, %s949
        %p951 = pneg %p178
        %p952 = pneg %p175
        %p953 = scmp.lt.s32.totalorder %s46, 1
        %s954 = scalar_select %p953, %s46, 1
        %s955 = scalar_lea.vmem %s5, %s954
        %p956 = pneg %p204
        %p957 = pneg %p201
        %p958 = scmp.lt.s32.totalorder %s46, 1
        %s959 = scalar_select %p958, %s46, 1
        %s960 = scalar_lea.vmem %s6, %s959
        %p961 = pneg %p230
        %p962 = pneg %p227
        %p963 = scmp.lt.s32.totalorder %s46, 1
        %s964 = scalar_select %p963, %s46, 1
        %s965 = scalar_lea.vmem %s7, %s964
        %p966 = pneg %p256
        %p967 = pneg %p253
        %p968 = scmp.lt.s32.totalorder %s46, 1
        %s969 = scalar_select %p968, %s46, 1
        %s970 = smul.addr %s969, 4
        %s971 = smul.addr %s970, 4
        %s972 = scalar_lea.vmem %s8, %s971
        %p973 = pneg %p282
        %p974 = pneg %p279
        %p975 = scmp.lt.s32.totalorder %s46, 1
        %s976 = scalar_select %p975, %s46, 1
        %s977 = scalar_lea.vmem %s9, %s976
        %p978 = pneg %p308
        %p979 = pneg %p305
        %p980 = scmp.lt.s32.totalorder %s46, 1
        %s981 = scalar_select %p980, %s46, 1
        %s982 = smul.addr %s981, 4
        %s983 = smul.addr %s982, 4
        %s984 = scalar_lea.vmem %s10, %s983
        %p985 = pneg %p334
        %p986 = pneg %p331
        %p987 = scmp.lt.s32.totalorder %s46, 1
        %s988 = scalar_select %p987, %s46, 1
        %s989 = scalar_lea.vmem %s11, %s988
        %p990 = pneg %p360
        %p991 = pneg %p357
        %p992 = scmp.lt.s32.totalorder %s46, 1
        %s993 = scalar_select %p992, %s46, 1
        %s994 = smul.addr %s993, 4
        %s995 = smul.addr %s994, 4
        %s996 = scalar_lea.vmem %s12, %s995
        %p997 = pneg %p386
        %p998 = pneg %p383
        %p999 = scmp.lt.s32.totalorder %s46, 1
        %s1000 = scalar_select %p999, %s46, 1
        %s1001 = scalar_lea.vmem %s13, %s1000
        %p1002 = pneg %p412
        %p1003 = pneg %p409
        %p1004 = scmp.lt.s32.totalorder %s46, 1
        %s1005 = scalar_select %p1004, %s46, 1
        %s1006 = smul.addr %s1005, 4
        %s1007 = smul.addr %s1006, 4
        %s1008 = scalar_lea.vmem %s14, %s1007
        %p1009 = pneg %p438
        %p1010 = pneg %p435
        %p1011 = scmp.lt.s32.totalorder %s46, 1
        %s1012 = scalar_select %p1011, %s46, 1
        %s1013 = scalar_lea.vmem %s15, %s1012
        %p1014 = pneg %p464
        %p1015 = pneg %p461
        %p1016 = scmp.lt.s32.totalorder %s46, 1
        %s1017 = scalar_select %p1016, %s46, 1
        %s1018 = smul.addr %s1017, 4
        %s1019 = smul.addr %s1018, 4
        %s1020 = scalar_lea.vmem %s16, %s1019
        %p1021 = pneg %p490
        %p1022 = pneg %p487
        %p1023 = scmp.lt.s32.totalorder %s46, 1
        %s1024 = scalar_select %p1023, %s46, 1
        %s1025 = scalar_lea.vmem %s17, %s1024
        %p1026 = pneg %p516
        %p1027 = pneg %p513
        %p1028 = scmp.lt.s32.totalorder %s46, 1
        %s1029 = scalar_select %p1028, %s46, 1
        %s1030 = smul.addr %s1029, 4
        %s1031 = smul.addr %s1030, 4
        %s1032 = scalar_lea.vmem %s18, %s1031
        %p1033 = pneg %p542
        %p1034 = pneg %p539
        %p1035 = scmp.lt.s32.totalorder %s46, 1
        %s1036 = scalar_select %p1035, %s46, 1
        %s1037 = scalar_lea.vmem %s19, %s1036
        %p1038 = pneg %p568
        %p1039 = pneg %p565
        %p1040 = scmp.lt.s32.totalorder %s46, 1
        %s1041 = scalar_select %p1040, %s46, 1
        %s1042 = smul.addr %s1041, 16
        %s1043 = smul.addr %s1042, 4
        %s1044 = scalar_lea.vmem %s20, %s1043
        %p1045 = pneg %p594
        %p1046 = pneg %p591
        %p1047 = scmp.lt.s32.totalorder %s46, 1
        %s1048 = scalar_select %p1047, %s46, 1
        %s1049 = scalar_lea.vmem %s21, %s1048
        %p1050 = pneg %p620
        %p1051 = pneg %p617
        %p1052 = pneg %p641
        %p1053 = pneg %p638
        %p1054 = pneg %p662
        %p1055 = pneg %p659
        %p1056 = pneg %p688
        %p1057 = pneg %p685
        %s1058 = sand.u32 %s675, 1
        %s1059 = scalar_lea.sflag [#allocation3], %s1058
        %s1060 = sand.u32 %s675, 1
        %s1061 = smul.addr %s1060, 8
        %s1062 = scalar_lea.vmem [#allocation2], %s1061
        %p1063 = pneg %p716
        %p1064 = pneg %p713
        %p1065 = scmp.lt.s32.totalorder %s46, 1
        %s1066 = scalar_select %p1065, %s46, 1
        %p1067 = scmp.lt.s32.totalorder %s45, 1
        %s1068 = scalar_select %p1067, %s45, 1
        %s1069 = smul.addr %s1066, 2
        %s1070 = sadd.s32 %s1068, %s1069
        %s1071 = smul.addr %s1070, 8
        %s1072 = scalar_lea.vmem %s25, %s1071
        %p1073 = pneg %p744
        %p1074 = pneg %p741
        %p1075 = scmp.lt.s32.totalorder %s46, 1
        %s1076 = scalar_select %p1075, %s46, 1
        %p1077 = scmp.lt.s32.totalorder %s45, 1
        %s1078 = scalar_select %p1077, %s45, 1
        %s1079 = smul.addr %s1076, 2
        %s1080 = sadd.s32 %s1078, %s1079
        %s1081 = smul.addr %s1080, 8
        %s1082 = scalar_lea.vmem %s26, %s1081
        %p1083 = scmp.lt.s32.totalorder %s45, 1
        %s1084 = scalar_select %p1083, %s45, 1
        %s1085 = smul.addr %s1084, 8
        %s1086 = scalar_lea.vmem %s0, %s1085
        %p1087 = scmp.lt.s32.totalorder %s45, 1
        %s1088 = scalar_select %p1087, %s45, 1
        %s1089 = smul.addr %s1088, 2
        %s1090 = smul.addr %s1089, 8
        %s1091 = scalar_lea.vmem %s1, %s1090
        %p1092 = scmp.lt.s32.totalorder %s46, 1
        %s1093 = scalar_select %p1092, %s46, 1
        %s1094 = scalar_lea.vmem %s2, %s1093
        %p1095 = scmp.lt.s32.totalorder %s46, 1
        %s1096 = scalar_select %p1095, %s46, 1
        %s1097 = scalar_lea.vmem %s3, %s1096
        %p1098 = scmp.lt.s32.totalorder %s46, 1
        %s1099 = scalar_select %p1098, %s46, 1
        %s1100 = scalar_lea.vmem %s4, %s1099
        %p1101 = scmp.lt.s32.totalorder %s46, 1
        %s1102 = scalar_select %p1101, %s46, 1
        %s1103 = scalar_lea.vmem %s5, %s1102
        %p1104 = scmp.lt.s32.totalorder %s46, 1
        %s1105 = scalar_select %p1104, %s46, 1
        %s1106 = scalar_lea.vmem %s6, %s1105
        %p1107 = scmp.lt.s32.totalorder %s46, 1
        %s1108 = scalar_select %p1107, %s46, 1
        %s1109 = scalar_lea.vmem %s7, %s1108
        %p1110 = scmp.lt.s32.totalorder %s46, 1
        %s1111 = scalar_select %p1110, %s46, 1
        %s1112 = smul.addr %s1111, 4
        %s1113 = smul.addr %s1112, 4
        %s1114 = scalar_lea.vmem %s8, %s1113
        %p1115 = scmp.lt.s32.totalorder %s46, 1
        %s1116 = scalar_select %p1115, %s46, 1
        %s1117 = scalar_lea.vmem %s9, %s1116
        %p1118 = scmp.lt.s32.totalorder %s46, 1
        %s1119 = scalar_select %p1118, %s46, 1
        %s1120 = smul.addr %s1119, 4
        %s1121 = smul.addr %s1120, 4
        %s1122 = scalar_lea.vmem %s10, %s1121
        %p1123 = scmp.lt.s32.totalorder %s46, 1
        %s1124 = scalar_select %p1123, %s46, 1
        %s1125 = scalar_lea.vmem %s11, %s1124
        %p1126 = scmp.lt.s32.totalorder %s46, 1
        %s1127 = scalar_select %p1126, %s46, 1
        %s1128 = smul.addr %s1127, 4
        %s1129 = smul.addr %s1128, 4
        %s1130 = scalar_lea.vmem %s12, %s1129
        %p1131 = scmp.lt.s32.totalorder %s46, 1
        %s1132 = scalar_select %p1131, %s46, 1
        %s1133 = scalar_lea.vmem %s13, %s1132
        %p1134 = scmp.lt.s32.totalorder %s46, 1
        %s1135 = scalar_select %p1134, %s46, 1
        %s1136 = smul.addr %s1135, 4
        %s1137 = smul.addr %s1136, 4
        %s1138 = scalar_lea.vmem %s14, %s1137
        %p1139 = scmp.lt.s32.totalorder %s46, 1
        %s1140 = scalar_select %p1139, %s46, 1
        %s1141 = scalar_lea.vmem %s15, %s1140
        %p1142 = scmp.lt.s32.totalorder %s46, 1
        %s1143 = scalar_select %p1142, %s46, 1
        %s1144 = smul.addr %s1143, 4
        %s1145 = smul.addr %s1144, 4
        %s1146 = scalar_lea.vmem %s16, %s1145
        %p1147 = scmp.lt.s32.totalorder %s46, 1
        %s1148 = scalar_select %p1147, %s46, 1
        %s1149 = scalar_lea.vmem %s17, %s1148
        %p1150 = scmp.lt.s32.totalorder %s46, 1
        %s1151 = scalar_select %p1150, %s46, 1
        %s1152 = smul.addr %s1151, 4
        %s1153 = smul.addr %s1152, 4
        %s1154 = scalar_lea.vmem %s18, %s1153
        %p1155 = scmp.lt.s32.totalorder %s46, 1
        %s1156 = scalar_select %p1155, %s46, 1
        %s1157 = scalar_lea.vmem %s19, %s1156
        %p1158 = scmp.lt.s32.totalorder %s46, 1
        %s1159 = scalar_select %p1158, %s46, 1
        %s1160 = smul.addr %s1159, 16
        %s1161 = smul.addr %s1160, 4
        %s1162 = scalar_lea.vmem %s20, %s1161
        %p1163 = scmp.lt.s32.totalorder %s46, 1
        %s1164 = scalar_select %p1163, %s46, 1
        %s1165 = scalar_lea.vmem %s21, %s1164
        %p1166 = scmp.lt.s32.totalorder %s46, 1
        %s1167 = scalar_select %p1166, %s46, 1
        %p1168 = scmp.lt.s32.totalorder %s45, 1
        %s1169 = scalar_select %p1168, %s45, 1
        %s1170 = smul.addr %s1167, 2
        %s1171 = sadd.s32 %s1169, %s1170
        %s1172 = smul.addr %s1171, 8
        %s1173 = scalar_lea.vmem %s25, %s1172
        %p1174 = scmp.lt.s32.totalorder %s46, 1
        %s1175 = scalar_select %p1174, %s46, 1
        %p1176 = scmp.lt.s32.totalorder %s45, 1
        %s1177 = scalar_select %p1176, %s45, 1
        %s1178 = smul.addr %s1175, 2
        %s1179 = sadd.s32 %s1177, %s1178
        %s1180 = smul.addr %s1179, 8
        %s1181 = scalar_lea.vmem %s26, %s1180
        %p1183 = scmp.eq.s32.totalorder %s46, 0
        // Predicated region
        $region117: #{transformer_decoder_forward.1} parent=115 // pred_check
          %p1184 = pneg %p1183
        $region118: #{transformer_decoder_forward.1} parent=115 // pred_check_branch
          %1186 = sbr.rel (%p1184) target = $region120
        $region119: #{transformer_decoder_forward.1} parent=115 // pred_region
          %v1187 = vld [vmem:[%s1086] sm:$0xff]
          %vm1188 = vcmask 261120
          %1189 = vst.msk [vmem:[%s1062] sm:$0xff] %vm1188, %v1187
        $region120: #{transformer_decoder_forward.1} parent=115 // pred_fallthru
          _
        %v1190 = vld [vmem:[%s1062] sm:$0xff]
        %v1191 = vld [vmem:[%s1091] sm:$0xff]
        %v1192 = vld [vmem:[%s1091 + $0x8] sm:$0xff]
        %v1193 = vlaneseq
        %v1194 = vshrl.u32 %v1193, 7
        %v1195 = vlaneseq
        %v1196 = vand.u32 %v1195, 127
        %vm1197 = vcmp.ge.s32.totalorder %v1194, %v1196
        %v1198 = vsel %vm1197, 0.0, -1e+09
        %v1199 = vld [vmem:[%s1094] sm:$0x1]
        %v1200 = vld [vmem:[%s1097] sm:$0x1]
        %vm1201 = vcmask 261120
        %v1202 = vsel %vm1201, %v1190, 0.0
        %1203 = vadd.xlane.f32.xlu0 %v1202
        %v1204 = vpop.xlane.xlu0 %1203
        %v1205 = vrcp.pop 32.0
        %v1206 = vmul.f32 %v1204, %v1205
        %v1207 = vsub.f32 %v1190, %v1206
        %v1208 = vmul.f32 %v1207, %v1207
        %v1209 = vsel %vm1201, %v1208, 0.0
        %1210 = vadd.xlane.f32.xlu0 %v1209
        %v1211 = vpop.xlane.xlu0 %1210
        %v1212 = vmul.f32 %v1211, %v1205
        %v1213 = vadd.f32 %v1212, 1e-05
        %v1214 = vrsqrt.pop %v1213
        %v1215 = vmul.f32 %v1207, %v1214
        %v1217 = vlaneseq
        %v1218 = vshrl.u32 %v1217, 7
        %v1219 = vsub.s32 0, %v1218
        %v1220 = vrot.slane %v1199, %v1219
        %v1222 = vmul.f32 %v1215, %v1220
        %v1224 = vlaneseq
        %v1225 = vshrl.u32 %v1224, 7
        %v1226 = vsub.s32 0, %v1225
        %v1227 = vrot.slane %v1200, %v1226
        %v1229 = vadd.f32 %v1222, %v1227
        %v1230 = vld [vmem:[%s1114] sm:$0xf]
        %v1231 = vld [vmem:[%s1114 + $0x4] sm:$0xf]
        %v1232 = vld [vmem:[%s1114 + $0x8] sm:$0xf]
        %v1233 = vld [vmem:[%s1114 + $0xc] sm:$0xf]
        %v1234 = vpack.c.bf16 %v1229, %v1229
        %v1235 = vld [vmem:[%s1117] sm:$0x1]
        %v1237 = vlaneseq
        %v1238 = vshrl.u32 %v1237, 7
        %v1239 = vsub.s32 0, %v1238
        %v1240 = vrot.slane %v1235, %v1239
        %v1246 = vunpack.c.l.b16 %v1230
        %v1247 = vunpack.c.l.b16 %v1231
        %v1248 = vunpack.c.l.b16 %v1232
        %v1249 = vunpack.c.l.b16 %v1233
        %v1250 = vpack.c.b16 %v1247, %v1246
        %v1251 = vpack.c.b16 %v1249, %v1248
        %v1255 = vsel %vm1201, %v1234, 0
        %1257 = vmatprep.subr.bf16.mxu0 0
        %1258 = vmatpush1.bf16.msra.mxu0 0
        %1259 = vmatprep.subr.bf16.mxu0 0
        %1260 = vmatpush1.bf16.msra.mxu0 0
        %1261 = vmatprep.subr.bf16.mxu0 0
        %1262 = vmatpush1.bf16.msra.mxu0 0
        %1263 = vmatprep.subr.bf16.mxu0 0
        %1264 = vmatpush1.bf16.msra.mxu0 0
        %1265 = vmatprep.subr.bf16.mxu0 0
        %1266 = vmatpush1.bf16.msra.mxu0 0
        %1267 = vmatprep.subr.bf16.mxu0 0
        %1268 = vmatpush1.bf16.msra.mxu0 0
        %1269 = vmatprep.subr.bf16.mxu0 0
        %1270 = vmatpush1.bf16.msra.mxu0 %v1251
        %1271 = vmatprep.subr.bf16.mxu0 0
        %1272 = vmatpush1.bf16.msra.mxu0 %v1250
        %1273 = vmatprep.subr.bf16.mxu0 0
        %1274 = vmatpush2.bf16.msra.mxu0 0
        %1275 = vmatprep.subr.bf16.mxu0 0
        %1276 = vmatpush2.bf16.msra.mxu0 0
        %1277 = vmatprep.subr.bf16.mxu0 0
        %1278 = vmatpush2.bf16.msra.mxu0 0
        %1279 = vmatprep.subr.bf16.mxu0 0
        %1280 = vmatpush2.bf16.msra.mxu0 0
        %1281 = vmatprep.subr.bf16.mxu0 0
        %1282 = vmatpush2.bf16.msra.mxu0 0
        %1283 = vmatprep.subr.bf16.mxu0 0
        %1284 = vmatpush2.bf16.msra.mxu0 0
        %1285 = vmatprep.subr.bf16.mxu0 0
        %1286 = vmatpush2.bf16.msra.mxu0 0
        %1287 = vmatprep.subr.bf16.mxu0 0
        %1288 = vmatpush2.bf16.msra.mxu0 0
        %1289 = vmatprep.mubr.bf16.mxu0 0
        %1290 = vmatmul.mubr.bf16.gmra.mxu0 %v1255
        %v1291 = vpop.f32.mrf.mxu0
        %v1292 = vadd.f32 %v1240, %v1291
        %v1293 = vpop.f32.mrf.mxu0
        %v1294 = vpop.f32.mrf.mxu0
        %v1295 = vpop.f32.mrf.mxu0
        %1296 = vdwg.mxu0
        %1298 = vrot.lane.b32.xlu0 %v1292, 120
        %v1299 = vpop.permute.xlu0 %1298
        %1301 = vrot.lane.b32.xlu0 %v1292, 112
        %v1302 = vpop.permute.xlu0 %1301
        %1304 = vrot.lane.b32.xlu0 %v1292, 104
        %v1305 = vpop.permute.xlu0 %1304
        %v1307 = vpack.c.bf16 %v1292, %v1292
        %v1308 = vpack.c.bf16 %v1299, %v1299
        %v1309 = vpack.c.bf16 %v1302, %v1302
        %v1310 = vpack.c.bf16 %v1305, %v1305
        %1312 = vrot.lane.b32.xlu0 %v1307, 96
        %v1313 = vpop.permute.xlu0 %1312
        %vm1314 = vcmask 64512
        %v1316 = vsel %vm1314, %v1307, 0
        %v1319 = vsel %vm1314, %v1313, 0
        %1321 = vmatprep.subr.bf16.mxu0 0
        %1322 = vmatpush1.bf16.xpose.msra.mxu0 0
        %1323 = vmatprep.subr.bf16.mxu0 0
        %1324 = vmatpush1.bf16.xpose.msra.mxu0 0
        %1325 = vmatprep.subr.bf16.mxu0 0
        %1326 = vmatpush1.bf16.xpose.msra.mxu0 0
        %1327 = vmatprep.subr.bf16.mxu0 0
        %1328 = vmatpush1.bf16.xpose.msra.mxu0 0
        %1329 = vmatprep.subr.bf16.mxu0 0
        %1330 = vmatpush1.bf16.xpose.msra.mxu0 0
        %1331 = vmatprep.subr.bf16.mxu0 0
        %1332 = vmatpush1.bf16.xpose.msra.mxu0 0
        %1333 = vmatprep.subr.bf16.mxu0 0
        %1334 = vmatpush1.bf16.xpose.msra.mxu0 0
        %1335 = vmatprep.subr.bf16.mxu0 0
        %1336 = vmatpush1.bf16.xpose.msra.mxu0 %v1319
        %1337 = vmatprep.subr.bf16.mxu0 0
        %1338 = vmatpush2.bf16.xpose.msra.mxu0 0
        %1339 = vmatprep.subr.bf16.mxu0 0
        %1340 = vmatpush2.bf16.xpose.msra.mxu0 0
        %1341 = vmatprep.subr.bf16.mxu0 0
        %1342 = vmatpush2.bf16.xpose.msra.mxu0 0
        %1343 = vmatprep.subr.bf16.mxu0 0
        %1344 = vmatpush2.bf16.xpose.msra.mxu0 0
        %1345 = vmatprep.subr.bf16.mxu0 0
        %1346 = vmatpush2.bf16.xpose.msra.mxu0 0
        %1347 = vmatprep.subr.bf16.mxu0 0
        %1348 = vmatpush2.bf16.xpose.msra.mxu0 0
        %1349 = vmatprep.subr.bf16.mxu0 0
        %1350 = vmatpush2.bf16.xpose.msra.mxu0 0
        %1351 = vmatprep.subr.bf16.mxu0 0
        %1352 = vmatpush2.bf16.xpose.msra.mxu0 0
        %1353 = vmatprep.mubr.bf16.mxu0 0
        %1354 = vmatmul.mubr.bf16.gmra.mxu0 %v1316
        %v1355 = vpop.f32.mrf.mxu0
        %v1356 = vadd.f32 0.0, %v1355
        %v1357 = vpop.f32.mrf.mxu0
        %v1358 = vpop.f32.mrf.mxu0
        %v1359 = vpop.f32.mrf.mxu0
        %1360 = vdwg.mxu0
        %1362 = vrot.lane.b32.xlu0 %v1308, 96
        %v1363 = vpop.permute.xlu0 %1362
        %v1365 = vsel %vm1314, %v1308, 0
        %v1368 = vsel %vm1314, %v1363, 0
        %1370 = vmatprep.subr.bf16.mxu0 0
        %1371 = vmatpush1.bf16.xpose.msra.mxu0 0
        %1372 = vmatprep.subr.bf16.mxu0 0
        %1373 = vmatpush1.bf16.xpose.msra.mxu0 0
        %1374 = vmatprep.subr.bf16.mxu0 0
        %1375 = vmatpush1.bf16.xpose.msra.mxu0 0
        %1376 = vmatprep.subr.bf16.mxu0 0
        %1377 = vmatpush1.bf16.xpose.msra.mxu0 0
        %1378 = vmatprep.subr.bf16.mxu0 0
        %1379 = vmatpush1.bf16.xpose.msra.mxu0 0
        %1380 = vmatprep.subr.bf16.mxu0 0
        %1381 = vmatpush1.bf16.xpose.msra.mxu0 0
        %1382 = vmatprep.subr.bf16.mxu0 0
        %1383 = vmatpush1.bf16.xpose.msra.mxu0 0
        %1384 = vmatprep.subr.bf16.mxu0 0
        %1385 = vmatpush1.bf16.xpose.msra.mxu0 %v1368
        %1386 = vmatprep.subr.bf16.mxu0 0
        %1387 = vmatpush2.bf16.xpose.msra.mxu0 0
        %1388 = vmatprep.subr.bf16.mxu0 0
        %1389 = vmatpush2.bf16.xpose.msra.mxu0 0
        %1390 = vmatprep.subr.bf16.mxu0 0
        %1391 = vmatpush2.bf16.xpose.msra.mxu0 0
        %1392 = vmatprep.subr.bf16.mxu0 0
        %1393 = vmatpush2.bf16.xpose.msra.mxu0 0
        %1394 = vmatprep.subr.bf16.mxu0 0
        %1395 = vmatpush2.bf16.xpose.msra.mxu0 0
        %1396 = vmatprep.subr.bf16.mxu0 0
        %1397 = vmatpush2.bf16.xpose.msra.mxu0 0
        %1398 = vmatprep.subr.bf16.mxu0 0
        %1399 = vmatpush2.bf16.xpose.msra.mxu0 0
        %1400 = vmatprep.subr.bf16.mxu0 0
        %1401 = vmatpush2.bf16.xpose.msra.mxu0 0
        %1402 = vmatprep.mubr.bf16.mxu0 0
        %1403 = vmatmul.mubr.bf16.gmra.mxu0 %v1365
        %v1404 = vpop.f32.mrf.mxu0
        %v1405 = vadd.f32 0.0, %v1404
        %v1406 = vpop.f32.mrf.mxu0
        %v1407 = vpop.f32.mrf.mxu0
        %v1408 = vpop.f32.mrf.mxu0
        %1409 = vdwg.mxu0
        %1411 = vrot.lane.b32.xlu0 %v1309, 96
        %v1412 = vpop.permute.xlu0 %1411
        %v1414 = vsel %vm1314, %v1309, 0
        %v1417 = vsel %vm1314, %v1412, 0
        %1419 = vmatprep.subr.bf16.mxu0 0
        %1420 = vmatpush1.bf16.xpose.msra.mxu0 0
        %1421 = vmatprep.subr.bf16.mxu0 0
        %1422 = vmatpush1.bf16.xpose.msra.mxu0 0
        %1423 = vmatprep.subr.bf16.mxu0 0
        %1424 = vmatpush1.bf16.xpose.msra.mxu0 0
        %1425 = vmatprep.subr.bf16.mxu0 0
        %1426 = vmatpush1.bf16.xpose.msra.mxu0 0
        %1427 = vmatprep.subr.bf16.mxu0 0
        %1428 = vmatpush1.bf16.xpose.msra.mxu0 0
        %1429 = vmatprep.subr.bf16.mxu0 0
        %1430 = vmatpush1.bf16.xpose.msra.mxu0 0
        %1431 = vmatprep.subr.bf16.mxu0 0
        %1432 = vmatpush1.bf16.xpose.msra.mxu0 0
        %1433 = vmatprep.subr.bf16.mxu0 0
        %1434 = vmatpush1.bf16.xpose.msra.mxu0 %v1417
        %1435 = vmatprep.subr.bf16.mxu0 0
        %1436 = vmatpush2.bf16.xpose.msra.mxu0 0
        %1437 = vmatprep.subr.bf16.mxu0 0
        %1438 = vmatpush2.bf16.xpose.msra.mxu0 0
        %1439 = vmatprep.subr.bf16.mxu0 0
        %1440 = vmatpush2.bf16.xpose.msra.mxu0 0
        %1441 = vmatprep.subr.bf16.mxu0 0
        %1442 = vmatpush2.bf16.xpose.msra.mxu0 0
        %1443 = vmatprep.subr.bf16.mxu0 0
        %1444 = vmatpush2.bf16.xpose.msra.mxu0 0
        %1445 = vmatprep.subr.bf16.mxu0 0
        %1446 = vmatpush2.bf16.xpose.msra.mxu0 0
        %1447 = vmatprep.subr.bf16.mxu0 0
        %1448 = vmatpush2.bf16.xpose.msra.mxu0 0
        %1449 = vmatprep.subr.bf16.mxu0 0
        %1450 = vmatpush2.bf16.xpose.msra.mxu0 0
        %1451 = vmatprep.mubr.bf16.mxu0 0
        %1452 = vmatmul.mubr.bf16.gmra.mxu0 %v1414
        %v1453 = vpop.f32.mrf.mxu0
        %v1454 = vadd.f32 0.0, %v1453
        %v1455 = vpop.f32.mrf.mxu0
        %v1456 = vpop.f32.mrf.mxu0
        %v1457 = vpop.f32.mrf.mxu0
        %1458 = vdwg.mxu0
        %1460 = vrot.lane.b32.xlu0 %v1310, 96
        %v1461 = vpop.permute.xlu0 %1460
        %v1463 = vsel %vm1314, %v1310, 0
        %v1466 = vsel %vm1314, %v1461, 0
        %1468 = vmatprep.subr.bf16.mxu0 0
        %1469 = vmatpush1.bf16.xpose.msra.mxu0 0
        %1470 = vmatprep.subr.bf16.mxu0 0
        %1471 = vmatpush1.bf16.xpose.msra.mxu0 0
        %1472 = vmatprep.subr.bf16.mxu0 0
        %1473 = vmatpush1.bf16.xpose.msra.mxu0 0
        %1474 = vmatprep.subr.bf16.mxu0 0
        %1475 = vmatpush1.bf16.xpose.msra.mxu0 0
        %1476 = vmatprep.subr.bf16.mxu0 0
        %1477 = vmatpush1.bf16.xpose.msra.mxu0 0
        %1478 = vmatprep.subr.bf16.mxu0 0
        %1479 = vmatpush1.bf16.xpose.msra.mxu0 0
        %1480 = vmatprep.subr.bf16.mxu0 0
        %1481 = vmatpush1.bf16.xpose.msra.mxu0 0
        %1482 = vmatprep.subr.bf16.mxu0 0
        %1483 = vmatpush1.bf16.xpose.msra.mxu0 %v1466
        %1484 = vmatprep.subr.bf16.mxu0 0
        %1485 = vmatpush2.bf16.xpose.msra.mxu0 0
        %1486 = vmatprep.subr.bf16.mxu0 0
        %1487 = vmatpush2.bf16.xpose.msra.mxu0 0
        %1488 = vmatprep.subr.bf16.mxu0 0
        %1489 = vmatpush2.bf16.xpose.msra.mxu0 0
        %1490 = vmatprep.subr.bf16.mxu0 0
        %1491 = vmatpush2.bf16.xpose.msra.mxu0 0
        %1492 = vmatprep.subr.bf16.mxu0 0
        %1493 = vmatpush2.bf16.xpose.msra.mxu0 0
        %1494 = vmatprep.subr.bf16.mxu0 0
        %1495 = vmatpush2.bf16.xpose.msra.mxu0 0
        %1496 = vmatprep.subr.bf16.mxu0 0
        %1497 = vmatpush2.bf16.xpose.msra.mxu0 0
        %1498 = vmatprep.subr.bf16.mxu0 0
        %1499 = vmatpush2.bf16.xpose.msra.mxu0 0
        %1500 = vmatprep.mubr.bf16.mxu0 0
        %1501 = vmatmul.mubr.bf16.gmra.mxu0 %v1463
        %v1502 = vpop.f32.mrf.mxu0
        %v1503 = vadd.f32 0.0, %v1502
        %v1504 = vpop.f32.mrf.mxu0
        %v1505 = vpop.f32.mrf.mxu0
        %v1506 = vpop.f32.mrf.mxu0
        %1507 = vdwg.mxu0
        %v1508 = vmul.f32 %v1356, 0.35355338
        %v1509 = vmul.f32 %v1405, 0.35355338
        %v1510 = vmul.f32 %v1454, 0.35355338
        %v1511 = vmul.f32 %v1503, 0.35355338
        %v1512 = vadd.f32 %v1508, %v1198
        %v1513 = vadd.f32 %v1509, %v1198
        %v1514 = vadd.f32 %v1510, %v1198
        %v1515 = vadd.f32 %v1511, %v1198
        %v1516 = vsel %vm1314, %v1512, -inf
        %1517 = vmax.xlane.f32.xlu0 %v1516
        %v1518 = vpop.xlane.xlu0 %1517
        %v1519 = vsel %vm1314, %v1513, -inf
        %1520 = vmax.xlane.f32.xlu0 %v1519
        %v1521 = vpop.xlane.xlu0 %1520
        %v1522 = vsel %vm1314, %v1514, -inf
        %1523 = vmax.xlane.f32.xlu0 %v1522
        %v1524 = vpop.xlane.xlu0 %1523
        %v1525 = vsel %vm1314, %v1515, -inf
        %1526 = vmax.xlane.f32.xlu0 %v1525
        %v1527 = vpop.xlane.xlu0 %1526
        %v1528 = vsub.f32 %v1512, %v1518
        %v1529 = vsub.f32 %v1513, %v1521
        %v1530 = vsub.f32 %v1514, %v1524
        %v1531 = vsub.f32 %v1515, %v1527
        %v1532 = vmul.f32 %v1528, 1.442695
        %v1533 = vpow.pop %v1532
        %v1534 = vmul.f32 %v1529, 1.442695
        %v1535 = vpow.pop %v1534
        %v1536 = vmul.f32 %v1530, 1.442695
        %v1537 = vpow.pop %v1536
        %v1538 = vmul.f32 %v1531, 1.442695
        %v1539 = vpow.pop %v1538
        %v1540 = vsel %vm1314, %v1533, 0.0
        %1541 = vadd.xlane.f32.xlu0 %v1540
        %v1542 = vpop.xlane.xlu0 %1541
        %v1543 = vsel %vm1314, %v1535, 0.0
        %1544 = vadd.xlane.f32.xlu0 %v1543
        %v1545 = vpop.xlane.xlu0 %1544
        %v1546 = vsel %vm1314, %v1537, 0.0
        %1547 = vadd.xlane.f32.xlu0 %v1546
        %v1548 = vpop.xlane.xlu0 %1547
        %v1549 = vsel %vm1314, %v1539, 0.0
        %1550 = vadd.xlane.f32.xlu0 %v1549
        %v1551 = vpop.xlane.xlu0 %1550
        %v1552 = vrcp.pop %v1542
        %v1553 = vrcp.pop %v1545
        %v1554 = vrcp.pop %v1548
        %v1555 = vrcp.pop %v1551
        %v1556 = vmul.f32 %v1533, %v1552
        %v1557 = vmul.f32 %v1535, %v1553
        %v1558 = vmul.f32 %v1537, %v1554
        %v1559 = vmul.f32 %v1539, %v1555
        %v1560 = vpack.c.bf16 %v1556, %v1556
        %v1561 = vpack.c.bf16 %v1557, %v1557
        %v1562 = vpack.c.bf16 %v1558, %v1558
        %v1563 = vpack.c.bf16 %v1559, %v1559
        %1564 = vrot.lane.b32.xlu0 %v1307, 64
        %v1565 = vpop.permute.xlu0 %1564
        %v1567 = vsel %vm1314, %v1560, 0
        %vm1569 = vcmask 1043456
        %v1571 = vsel %vm1569, %v1565, 0
        %1573 = vmatprep.subr.bf16.mxu0 0
        %1574 = vmatpush1.bf16.msra.mxu0 0
        %1575 = vmatprep.subr.bf16.mxu0 0
        %1576 = vmatpush1.bf16.msra.mxu0 0
        %1577 = vmatprep.subr.bf16.mxu0 0
        %1578 = vmatpush1.bf16.msra.mxu0 0
        %1579 = vmatprep.subr.bf16.mxu0 0
        %1580 = vmatpush1.bf16.msra.mxu0 0
        %1581 = vmatprep.subr.bf16.mxu0 0
        %1582 = vmatpush1.bf16.msra.mxu0 0
        %1583 = vmatprep.subr.bf16.mxu0 0
        %1584 = vmatpush1.bf16.msra.mxu0 0
        %1585 = vmatprep.subr.bf16.mxu0 0
        %1586 = vmatpush1.bf16.msra.mxu0 0
        %1587 = vmatprep.subr.bf16.mxu0 0
        %1588 = vmatpush1.bf16.msra.mxu0 %v1571
        %1589 = vmatprep.subr.bf16.mxu0 0
        %1590 = vmatpush2.bf16.msra.mxu0 0
        %1591 = vmatprep.subr.bf16.mxu0 0
        %1592 = vmatpush2.bf16.msra.mxu0 0
        %1593 = vmatprep.subr.bf16.mxu0 0
        %1594 = vmatpush2.bf16.msra.mxu0 0
        %1595 = vmatprep.subr.bf16.mxu0 0
        %1596 = vmatpush2.bf16.msra.mxu0 0
        %1597 = vmatprep.subr.bf16.mxu0 0
        %1598 = vmatpush2.bf16.msra.mxu0 0
        %1599 = vmatprep.subr.bf16.mxu0 0
        %1600 = vmatpush2.bf16.msra.mxu0 0
        %1601 = vmatprep.subr.bf16.mxu0 0
        %1602 = vmatpush2.bf16.msra.mxu0 0
        %1603 = vmatprep.subr.bf16.mxu0 0
        %1604 = vmatpush2.bf16.msra.mxu0 0
        %1605 = vmatprep.mubr.bf16.mxu0 0
        %1606 = vmatmul.mubr.bf16.gmra.mxu0 %v1567
        %v1607 = vpop.f32.mrf.mxu0
        %v1608 = vadd.f32 0.0, %v1607
        %v1609 = vpop.f32.mrf.mxu0
        %v1610 = vpop.f32.mrf.mxu0
        %v1611 = vpop.f32.mrf.mxu0
        %1612 = vdwg.mxu0
        %1613 = vrot.lane.b32.xlu0 %v1308, 64
        %v1614 = vpop.permute.xlu0 %1613
        %v1616 = vsel %vm1314, %v1561, 0
        %v1619 = vsel %vm1569, %v1614, 0
        %1621 = vmatprep.subr.bf16.mxu0 0
        %1622 = vmatpush1.bf16.msra.mxu0 0
        %1623 = vmatprep.subr.bf16.mxu0 0
        %1624 = vmatpush1.bf16.msra.mxu0 0
        %1625 = vmatprep.subr.bf16.mxu0 0
        %1626 = vmatpush1.bf16.msra.mxu0 0
        %1627 = vmatprep.subr.bf16.mxu0 0
        %1628 = vmatpush1.bf16.msra.mxu0 0
        %1629 = vmatprep.subr.bf16.mxu0 0
        %1630 = vmatpush1.bf16.msra.mxu0 0
        %1631 = vmatprep.subr.bf16.mxu0 0
        %1632 = vmatpush1.bf16.msra.mxu0 0
        %1633 = vmatprep.subr.bf16.mxu0 0
        %1634 = vmatpush1.bf16.msra.mxu0 0
        %1635 = vmatprep.subr.bf16.mxu0 0
        %1636 = vmatpush1.bf16.msra.mxu0 %v1619
        %1637 = vmatprep.subr.bf16.mxu0 0
        %1638 = vmatpush2.bf16.msra.mxu0 0
        %1639 = vmatprep.subr.bf16.mxu0 0
        %1640 = vmatpush2.bf16.msra.mxu0 0
        %1641 = vmatprep.subr.bf16.mxu0 0
        %1642 = vmatpush2.bf16.msra.mxu0 0
        %1643 = vmatprep.subr.bf16.mxu0 0
        %1644 = vmatpush2.bf16.msra.mxu0 0
        %1645 = vmatprep.subr.bf16.mxu0 0
        %1646 = vmatpush2.bf16.msra.mxu0 0
        %1647 = vmatprep.subr.bf16.mxu0 0
        %1648 = vmatpush2.bf16.msra.mxu0 0
        %1649 = vmatprep.subr.bf16.mxu0 0
        %1650 = vmatpush2.bf16.msra.mxu0 0
        %1651 = vmatprep.subr.bf16.mxu0 0
        %1652 = vmatpush2.bf16.msra.mxu0 0
        %1653 = vmatprep.mubr.bf16.mxu0 0
        %1654 = vmatmul.mubr.bf16.gmra.mxu0 %v1616
        %v1655 = vpop.f32.mrf.mxu0
        %v1656 = vadd.f32 0.0, %v1655
        %v1657 = vpop.f32.mrf.mxu0
        %v1658 = vpop.f32.mrf.mxu0
        %v1659 = vpop.f32.mrf.mxu0
        %1660 = vdwg.mxu0
        %1661 = vrot.lane.b32.xlu0 %v1309, 64
        %v1662 = vpop.permute.xlu0 %1661
        %v1664 = vsel %vm1314, %v1562, 0
        %v1667 = vsel %vm1569, %v1662, 0
        %1669 = vmatprep.subr.bf16.mxu0 0
        %1670 = vmatpush1.bf16.msra.mxu0 0
        %1671 = vmatprep.subr.bf16.mxu0 0
        %1672 = vmatpush1.bf16.msra.mxu0 0
        %1673 = vmatprep.subr.bf16.mxu0 0
        %1674 = vmatpush1.bf16.msra.mxu0 0
        %1675 = vmatprep.subr.bf16.mxu0 0
        %1676 = vmatpush1.bf16.msra.mxu0 0
        %1677 = vmatprep.subr.bf16.mxu0 0
        %1678 = vmatpush1.bf16.msra.mxu0 0
        %1679 = vmatprep.subr.bf16.mxu0 0
        %1680 = vmatpush1.bf16.msra.mxu0 0
        %1681 = vmatprep.subr.bf16.mxu0 0
        %1682 = vmatpush1.bf16.msra.mxu0 0
        %1683 = vmatprep.subr.bf16.mxu0 0
        %1684 = vmatpush1.bf16.msra.mxu0 %v1667
        %1685 = vmatprep.subr.bf16.mxu0 0
        %1686 = vmatpush2.bf16.msra.mxu0 0
        %1687 = vmatprep.subr.bf16.mxu0 0
        %1688 = vmatpush2.bf16.msra.mxu0 0
        %1689 = vmatprep.subr.bf16.mxu0 0
        %1690 = vmatpush2.bf16.msra.mxu0 0
        %1691 = vmatprep.subr.bf16.mxu0 0
        %1692 = vmatpush2.bf16.msra.mxu0 0
        %1693 = vmatprep.subr.bf16.mxu0 0
        %1694 = vmatpush2.bf16.msra.mxu0 0
        %1695 = vmatprep.subr.bf16.mxu0 0
        %1696 = vmatpush2.bf16.msra.mxu0 0
        %1697 = vmatprep.subr.bf16.mxu0 0
        %1698 = vmatpush2.bf16.msra.mxu0 0
        %1699 = vmatprep.subr.bf16.mxu0 0
        %1700 = vmatpush2.bf16.msra.mxu0 0
        %1701 = vmatprep.mubr.bf16.mxu0 0
        %1702 = vmatmul.mubr.bf16.gmra.mxu0 %v1664
        %v1703 = vpop.f32.mrf.mxu0
        %v1704 = vadd.f32 0.0, %v1703
        %v1705 = vpop.f32.mrf.mxu0
        %v1706 = vpop.f32.mrf.mxu0
        %v1707 = vpop.f32.mrf.mxu0
        %1708 = vdwg.mxu0
        %1709 = vrot.lane.b32.xlu0 %v1310, 64
        %v1710 = vpop.permute.xlu0 %1709
        %v1712 = vsel %vm1314, %v1563, 0
        %v1715 = vsel %vm1569, %v1710, 0
        %1717 = vmatprep.subr.bf16.mxu0 0
        %1718 = vmatpush1.bf16.msra.mxu0 0
        %1719 = vmatprep.subr.bf16.mxu0 0
        %1720 = vmatpush1.bf16.msra.mxu0 0
        %1721 = vmatprep.subr.bf16.mxu0 0
        %1722 = vmatpush1.bf16.msra.mxu0 0
        %1723 = vmatprep.subr.bf16.mxu0 0
        %1724 = vmatpush1.bf16.msra.mxu0 0
        %1725 = vmatprep.subr.bf16.mxu0 0
        %1726 = vmatpush1.bf16.msra.mxu0 0
        %1727 = vmatprep.subr.bf16.mxu0 0
        %1728 = vmatpush1.bf16.msra.mxu0 0
        %1729 = vmatprep.subr.bf16.mxu0 0
        %1730 = vmatpush1.bf16.msra.mxu0 0
        %1731 = vmatprep.subr.bf16.mxu0 0
        %1732 = vmatpush1.bf16.msra.mxu0 %v1715
        %1733 = vmatprep.subr.bf16.mxu0 0
        %1734 = vmatpush2.bf16.msra.mxu0 0
        %1735 = vmatprep.subr.bf16.mxu0 0
        %1736 = vmatpush2.bf16.msra.mxu0 0
        %1737 = vmatprep.subr.bf16.mxu0 0
        %1738 = vmatpush2.bf16.msra.mxu0 0
        %1739 = vmatprep.subr.bf16.mxu0 0
        %1740 = vmatpush2.bf16.msra.mxu0 0
        %1741 = vmatprep.subr.bf16.mxu0 0
        %1742 = vmatpush2.bf16.msra.mxu0 0
        %1743 = vmatprep.subr.bf16.mxu0 0
        %1744 = vmatpush2.bf16.msra.mxu0 0
        %1745 = vmatprep.subr.bf16.mxu0 0
        %1746 = vmatpush2.bf16.msra.mxu0 0
        %1747 = vmatprep.subr.bf16.mxu0 0
        %1748 = vmatpush2.bf16.msra.mxu0 0
        %1749 = vmatprep.mubr.bf16.mxu0 0
        %1750 = vmatmul.mubr.bf16.gmra.mxu0 %v1712
        %v1751 = vpop.f32.mrf.mxu0
        %v1752 = vadd.f32 0.0, %v1751
        %v1753 = vpop.f32.mrf.mxu0
        %v1754 = vpop.f32.mrf.mxu0
        %v1755 = vpop.f32.mrf.mxu0
        %1756 = vdwg.mxu0
        %1758 = vrot.lane.b32.xlu0 %v1656, 8
        %v1759 = vpop.permute.xlu0 %1758
        %1762 = vrot.lane.b32.xlu0 %v1704, 16
        %v1763 = vpop.permute.xlu0 %1762
        %1766 = vrot.lane.b32.xlu0 %v1752, 24
        %v1767 = vpop.permute.xlu0 %1766
        %v1769 = vsel %vm1314, %v1608, %v1759
        %vm1770 = vcmask 130048
        %v1771 = vsel %vm1770, %v1769, %v1763
        %vm1772 = vcmask 195584
        %v1773 = vsel %vm1772, %v1771, %v1767
        %v1774 = vsel %vm1314, %v1556, 0.0
        %v1775 = vsel %vm1314, %v1557, 0.0
        %v1776 = vadd.f32 %v1774, %v1775
        %v1777 = vsel %vm1314, %v1558, 0.0
        %v1778 = vadd.f32 %v1776, %v1777
        %v1779 = vsel %vm1314, %v1559, 0.0
        %v1780 = vadd.f32 %v1778, %v1779
        %v1781 = vrcp.pop 4.0
        %v1782 = vmul.f32 %v1780, %v1781
        %v1783 = vld [vmem:[%s1122] sm:$0xf]
        %v1784 = vld [vmem:[%s1122 + $0x4] sm:$0xf]
        %v1785 = vld [vmem:[%s1122 + $0x8] sm:$0xf]
        %v1786 = vld [vmem:[%s1122 + $0xc] sm:$0xf]
        %v1787 = vpack.c.bf16 %v1773, %v1773
        %v1792 = vunpack.c.l.b16 %v1783
        %v1793 = vunpack.c.l.b16 %v1784
        %v1794 = vunpack.c.l.b16 %v1785
        %v1795 = vunpack.c.l.b16 %v1786
        %v1796 = vpack.c.b16 %v1793, %v1792
        %v1797 = vpack.c.b16 %v1795, %v1794
        %v1801 = vsel %vm1201, %v1787, 0
        %1803 = vmatprep.subr.bf16.mxu0 0
        %1804 = vmatpush1.bf16.msra.mxu0 0
        %1805 = vmatprep.subr.bf16.mxu0 0
        %1806 = vmatpush1.bf16.msra.mxu0 0
        %1807 = vmatprep.subr.bf16.mxu0 0
        %1808 = vmatpush1.bf16.msra.mxu0 0
        %1809 = vmatprep.subr.bf16.mxu0 0
        %1810 = vmatpush1.bf16.msra.mxu0 0
        %1811 = vmatprep.subr.bf16.mxu0 0
        %1812 = vmatpush1.bf16.msra.mxu0 0
        %1813 = vmatprep.subr.bf16.mxu0 0
        %1814 = vmatpush1.bf16.msra.mxu0 0
        %1815 = vmatprep.subr.bf16.mxu0 0
        %1816 = vmatpush1.bf16.msra.mxu0 %v1797
        %1817 = vmatprep.subr.bf16.mxu0 0
        %1818 = vmatpush1.bf16.msra.mxu0 %v1796
        %1819 = vmatprep.subr.bf16.mxu0 0
        %1820 = vmatpush2.bf16.msra.mxu0 0
        %1821 = vmatprep.subr.bf16.mxu0 0
        %1822 = vmatpush2.bf16.msra.mxu0 0
        %1823 = vmatprep.subr.bf16.mxu0 0
        %1824 = vmatpush2.bf16.msra.mxu0 0
        %1825 = vmatprep.subr.bf16.mxu0 0
        %1826 = vmatpush2.bf16.msra.mxu0 0
        %1827 = vmatprep.subr.bf16.mxu0 0
        %1828 = vmatpush2.bf16.msra.mxu0 0
        %1829 = vmatprep.subr.bf16.mxu0 0
        %1830 = vmatpush2.bf16.msra.mxu0 0
        %1831 = vmatprep.subr.bf16.mxu0 0
        %1832 = vmatpush2.bf16.msra.mxu0 0
        %1833 = vmatprep.subr.bf16.mxu0 0
        %1834 = vmatpush2.bf16.msra.mxu0 0
        %1835 = vmatprep.mubr.bf16.mxu0 0
        %1836 = vmatmul.mubr.bf16.gmra.mxu0 %v1801
        %v1837 = vpop.f32.mrf.mxu0
        %v1838 = vadd.f32 0.0, %v1837
        %v1839 = vpop.f32.mrf.mxu0
        %v1840 = vpop.f32.mrf.mxu0
        %v1841 = vpop.f32.mrf.mxu0
        %1842 = vdwg.mxu0
        %v1843 = vadd.f32 %v1190, %v1838
        %v1844 = vld [vmem:[%s1125] sm:$0x1]
        %v1846 = vlaneseq
        %v1847 = vshrl.u32 %v1846, 7
        %v1848 = vsub.s32 0, %v1847
        %v1849 = vrot.slane %v1844, %v1848
        %v1851 = vadd.f32 %v1843, %v1849
        %v1852 = vld [vmem:[%s1100] sm:$0x1]
        %v1853 = vld [vmem:[%s1103] sm:$0x1]
        %v1854 = vsel %vm1201, %v1851, 0.0
        %1855 = vadd.xlane.f32.xlu0 %v1854
        %v1856 = vpop.xlane.xlu0 %1855
        %v1857 = vmul.f32 %v1856, %v1205
        %v1858 = vsub.f32 %v1851, %v1857
        %v1859 = vmul.f32 %v1858, %v1858
        %v1860 = vsel %vm1201, %v1859, 0.0
        %1861 = vadd.xlane.f32.xlu0 %v1860
        %v1862 = vpop.xlane.xlu0 %1861
        %v1863 = vmul.f32 %v1862, %v1205
        %v1864 = vadd.f32 %v1863, 1e-05
        %v1865 = vrsqrt.pop %v1864
        %v1866 = vmul.f32 %v1858, %v1865
        %v1868 = vlaneseq
        %v1869 = vshrl.u32 %v1868, 7
        %v1870 = vsub.s32 0, %v1869
        %v1871 = vrot.slane %v1852, %v1870
        %v1873 = vmul.f32 %v1866, %v1871
        %v1875 = vlaneseq
        %v1876 = vshrl.u32 %v1875, 7
        %v1877 = vsub.s32 0, %v1876
        %v1878 = vrot.slane %v1853, %v1877
        %v1880 = vadd.f32 %v1873, %v1878
        %v1881 = vld [vmem:[%s1130] sm:$0xf]
        %v1882 = vld [vmem:[%s1130 + $0x4] sm:$0xf]
        %v1883 = vld [vmem:[%s1130 + $0x8] sm:$0xf]
        %v1884 = vld [vmem:[%s1130 + $0xc] sm:$0xf]
        %v1885 = vpack.c.bf16 %v1880, %v1880
        %v1886 = vld [vmem:[%s1133] sm:$0x1]
        %v1888 = vlaneseq
        %v1889 = vshrl.u32 %v1888, 7
        %v1890 = vsub.s32 0, %v1889
        %v1891 = vrot.slane %v1886, %v1890
        %v1897 = vunpack.c.l.b16 %v1881
        %v1898 = vunpack.c.l.b16 %v1882
        %v1899 = vunpack.c.l.b16 %v1883
        %v1900 = vunpack.c.l.b16 %v1884
        %v1901 = vpack.c.b16 %v1898, %v1897
        %v1902 = vpack.c.b16 %v1900, %v1899
        %v1906 = vsel %vm1201, %v1885, 0
        %1908 = vmatprep.subr.bf16.mxu0 0
        %1909 = vmatpush1.bf16.msra.mxu0 0
        %1910 = vmatprep.subr.bf16.mxu0 0
        %1911 = vmatpush1.bf16.msra.mxu0 0
        %1912 = vmatprep.subr.bf16.mxu0 0
        %1913 = vmatpush1.bf16.msra.mxu0 0
        %1914 = vmatprep.subr.bf16.mxu0 0
        %1915 = vmatpush1.bf16.msra.mxu0 0
        %1916 = vmatprep.subr.bf16.mxu0 0
        %1917 = vmatpush1.bf16.msra.mxu0 0
        %1918 = vmatprep.subr.bf16.mxu0 0
        %1919 = vmatpush1.bf16.msra.mxu0 0
        %1920 = vmatprep.subr.bf16.mxu0 0
        %1921 = vmatpush1.bf16.msra.mxu0 %v1902
        %1922 = vmatprep.subr.bf16.mxu0 0
        %1923 = vmatpush1.bf16.msra.mxu0 %v1901
        %1924 = vmatprep.subr.bf16.mxu0 0
        %1925 = vmatpush2.bf16.msra.mxu0 0
        %1926 = vmatprep.subr.bf16.mxu0 0
        %1927 = vmatpush2.bf16.msra.mxu0 0
        %1928 = vmatprep.subr.bf16.mxu0 0
        %1929 = vmatpush2.bf16.msra.mxu0 0
        %1930 = vmatprep.subr.bf16.mxu0 0
        %1931 = vmatpush2.bf16.msra.mxu0 0
        %1932 = vmatprep.subr.bf16.mxu0 0
        %1933 = vmatpush2.bf16.msra.mxu0 0
        %1934 = vmatprep.subr.bf16.mxu0 0
        %1935 = vmatpush2.bf16.msra.mxu0 0
        %1936 = vmatprep.subr.bf16.mxu0 0
        %1937 = vmatpush2.bf16.msra.mxu0 0
        %1938 = vmatprep.subr.bf16.mxu0 0
        %1939 = vmatpush2.bf16.msra.mxu0 0
        %1940 = vmatprep.mubr.bf16.mxu0 0
        %1941 = vmatmul.mubr.bf16.gmra.mxu0 %v1906
        %v1942 = vpop.f32.mrf.mxu0
        %v1943 = vadd.f32 %v1891, %v1942
        %v1944 = vpop.f32.mrf.mxu0
        %v1945 = vpop.f32.mrf.mxu0
        %v1946 = vpop.f32.mrf.mxu0
        %1947 = vdwg.mxu0
        %v1948 = vld [vmem:[%s1138] sm:$0xf]
        %v1949 = vld [vmem:[%s1138 + $0x4] sm:$0xf]
        %v1950 = vld [vmem:[%s1138 + $0x8] sm:$0xf]
        %v1951 = vld [vmem:[%s1138 + $0xc] sm:$0xf]
        %v1952 = vpack.c.bf16 %v1192, %v1191
        %v1953 = vld [vmem:[%s1141] sm:$0x1]
        %v1955 = vlaneseq
        %v1956 = vshrl.u32 %v1955, 7
        %v1957 = vsub.s32 0, %v1956
        %v1958 = vrot.slane %v1953, %v1957
        %v1964 = vunpack.c.l.b16 %v1948
        %v1965 = vunpack.c.l.b16 %v1949
        %v1966 = vunpack.c.l.b16 %v1950
        %v1967 = vunpack.c.l.b16 %v1951
        %v1968 = vpack.c.b16 %v1965, %v1964
        %v1969 = vpack.c.b16 %v1967, %v1966
        %v1973 = vsel %vm1201, %v1952, 0
        %1975 = vmatprep.subr.bf16.mxu0 0
        %1976 = vmatpush1.bf16.msra.mxu0 0
        %1977 = vmatprep.subr.bf16.mxu0 0
        %1978 = vmatpush1.bf16.msra.mxu0 0
        %1979 = vmatprep.subr.bf16.mxu0 0
        %1980 = vmatpush1.bf16.msra.mxu0 0
        %1981 = vmatprep.subr.bf16.mxu0 0
        %1982 = vmatpush1.bf16.msra.mxu0 0
        %1983 = vmatprep.subr.bf16.mxu0 0
        %1984 = vmatpush1.bf16.msra.mxu0 0
        %1985 = vmatprep.subr.bf16.mxu0 0
        %1986 = vmatpush1.bf16.msra.mxu0 0
        %1987 = vmatprep.subr.bf16.mxu0 0
        %1988 = vmatpush1.bf16.msra.mxu0 %v1969
        %1989 = vmatprep.subr.bf16.mxu0 0
        %1990 = vmatpush1.bf16.msra.mxu0 %v1968
        %1991 = vmatprep.subr.bf16.mxu0 0
        %1992 = vmatpush2.bf16.msra.mxu0 0
        %1993 = vmatprep.subr.bf16.mxu0 0
        %1994 = vmatpush2.bf16.msra.mxu0 0
        %1995 = vmatprep.subr.bf16.mxu0 0
        %1996 = vmatpush2.bf16.msra.mxu0 0
        %1997 = vmatprep.subr.bf16.mxu0 0
        %1998 = vmatpush2.bf16.msra.mxu0 0
        %1999 = vmatprep.subr.bf16.mxu0 0
        %2000 = vmatpush2.bf16.msra.mxu0 0
        %2001 = vmatprep.subr.bf16.mxu0 0
        %2002 = vmatpush2.bf16.msra.mxu0 0
        %2003 = vmatprep.subr.bf16.mxu0 0
        %2004 = vmatpush2.bf16.msra.mxu0 0
        %2005 = vmatprep.subr.bf16.mxu0 0
        %2006 = vmatpush2.bf16.msra.mxu0 0
        %2007 = vmatprep.mubr.bf16.mxu0 0
        %2008 = vmatmul.mubr.bf16.gmra.mxu0 %v1973
        %v2009 = vpop.f32.mrf.mxu0
        %v2010 = vadd.f32 %v1958, %v2009
        %v2011 = vpop.f32.mrf.mxu0
        %v2012 = vpop.f32.mrf.mxu0
        %v2013 = vadd.f32 %v1958, %v2012
        %v2014 = vpop.f32.mrf.mxu0
        %2015 = vdwg.mxu0
        %2017 = vrot.lane.b32.xlu0 %v1943, 120
        %v2018 = vpop.permute.xlu0 %2017
        %2020 = vrot.lane.b32.xlu0 %v1943, 112
        %v2021 = vpop.permute.xlu0 %2020
        %2023 = vrot.lane.b32.xlu0 %v1943, 104
        %v2024 = vpop.permute.xlu0 %2023
        %v2026 = vpack.c.bf16 %v1943, %v1943
        %v2027 = vpack.c.bf16 %v2018, %v2018
        %v2028 = vpack.c.bf16 %v2021, %v2021
        %v2029 = vpack.c.bf16 %v2024, %v2024
        %2032 = vrot.lane.b32.xlu0 %v2010, 120
        %v2033 = vpop.permute.xlu0 %2032
        %2034 = vrot.lane.b32.xlu0 %v2013, 120
        %v2035 = vpop.permute.xlu0 %2034
        %2038 = vrot.lane.b32.xlu0 %v2010, 112
        %v2039 = vpop.permute.xlu0 %2038
        %2040 = vrot.lane.b32.xlu0 %v2013, 112
        %v2041 = vpop.permute.xlu0 %2040
        %2044 = vrot.lane.b32.xlu0 %v2010, 104
        %v2045 = vpop.permute.xlu0 %2044
        %2046 = vrot.lane.b32.xlu0 %v2013, 104
        %v2047 = vpop.permute.xlu0 %2046
        %v2050 = vpack.c.bf16 %v2013, %v2010
        %v2051 = vpack.c.bf16 %v2035, %v2033
        %v2052 = vpack.c.bf16 %v2041, %v2039
        %v2053 = vpack.c.bf16 %v2047, %v2045
        %v2055 = vsel %vm1314, %v2026, 0
        %v2058 = vsel %vm1314, %v2050, 0
        %2060 = vmatprep.subr.bf16.mxu0 0
        %2061 = vmatpush1.bf16.xpose.msra.mxu0 0
        %2062 = vmatprep.subr.bf16.mxu0 0
        %2063 = vmatpush1.bf16.xpose.msra.mxu0 0
        %2064 = vmatprep.subr.bf16.mxu0 0
        %2065 = vmatpush1.bf16.xpose.msra.mxu0 0
        %2066 = vmatprep.subr.bf16.mxu0 0
        %2067 = vmatpush1.bf16.xpose.msra.mxu0 0
        %2068 = vmatprep.subr.bf16.mxu0 0
        %2069 = vmatpush1.bf16.xpose.msra.mxu0 0
        %2070 = vmatprep.subr.bf16.mxu0 0
        %2071 = vmatpush1.bf16.xpose.msra.mxu0 0
        %2072 = vmatprep.subr.bf16.mxu0 0
        %2073 = vmatpush1.bf16.xpose.msra.mxu0 0
        %2074 = vmatprep.subr.bf16.mxu0 0
        %2075 = vmatpush1.bf16.xpose.msra.mxu0 %v2058
        %2076 = vmatprep.subr.bf16.mxu0 0
        %2077 = vmatpush2.bf16.xpose.msra.mxu0 0
        %2078 = vmatprep.subr.bf16.mxu0 0
        %2079 = vmatpush2.bf16.xpose.msra.mxu0 0
        %2080 = vmatprep.subr.bf16.mxu0 0
        %2081 = vmatpush2.bf16.xpose.msra.mxu0 0
        %2082 = vmatprep.subr.bf16.mxu0 0
        %2083 = vmatpush2.bf16.xpose.msra.mxu0 0
        %2084 = vmatprep.subr.bf16.mxu0 0
        %2085 = vmatpush2.bf16.xpose.msra.mxu0 0
        %2086 = vmatprep.subr.bf16.mxu0 0
        %2087 = vmatpush2.bf16.xpose.msra.mxu0 0
        %2088 = vmatprep.subr.bf16.mxu0 0
        %2089 = vmatpush2.bf16.xpose.msra.mxu0 0
        %2090 = vmatprep.subr.bf16.mxu0 0
        %2091 = vmatpush2.bf16.xpose.msra.mxu0 0
        %2092 = vmatprep.mubr.bf16.mxu0 0
        %2093 = vmatmul.mubr.bf16.gmra.mxu0 %v2055
        %v2094 = vpop.f32.mrf.mxu0
        %v2095 = vadd.f32 0.0, %v2094
        %v2096 = vpop.f32.mrf.mxu0
        %v2097 = vpop.f32.mrf.mxu0
        %v2098 = vpop.f32.mrf.mxu0
        %2099 = vdwg.mxu0
        %v2101 = vsel %vm1314, %v2027, 0
        %v2104 = vsel %vm1314, %v2051, 0
        %2106 = vmatprep.subr.bf16.mxu0 0
        %2107 = vmatpush1.bf16.xpose.msra.mxu0 0
        %2108 = vmatprep.subr.bf16.mxu0 0
        %2109 = vmatpush1.bf16.xpose.msra.mxu0 0
        %2110 = vmatprep.subr.bf16.mxu0 0
        %2111 = vmatpush1.bf16.xpose.msra.mxu0 0
        %2112 = vmatprep.subr.bf16.mxu0 0
        %2113 = vmatpush1.bf16.xpose.msra.mxu0 0
        %2114 = vmatprep.subr.bf16.mxu0 0
        %2115 = vmatpush1.bf16.xpose.msra.mxu0 0
        %2116 = vmatprep.subr.bf16.mxu0 0
        %2117 = vmatpush1.bf16.xpose.msra.mxu0 0
        %2118 = vmatprep.subr.bf16.mxu0 0
        %2119 = vmatpush1.bf16.xpose.msra.mxu0 0
        %2120 = vmatprep.subr.bf16.mxu0 0
        %2121 = vmatpush1.bf16.xpose.msra.mxu0 %v2104
        %2122 = vmatprep.subr.bf16.mxu0 0
        %2123 = vmatpush2.bf16.xpose.msra.mxu0 0
        %2124 = vmatprep.subr.bf16.mxu0 0
        %2125 = vmatpush2.bf16.xpose.msra.mxu0 0
        %2126 = vmatprep.subr.bf16.mxu0 0
        %2127 = vmatpush2.bf16.xpose.msra.mxu0 0
        %2128 = vmatprep.subr.bf16.mxu0 0
        %2129 = vmatpush2.bf16.xpose.msra.mxu0 0
        %2130 = vmatprep.subr.bf16.mxu0 0
        %2131 = vmatpush2.bf16.xpose.msra.mxu0 0
        %2132 = vmatprep.subr.bf16.mxu0 0
        %2133 = vmatpush2.bf16.xpose.msra.mxu0 0
        %2134 = vmatprep.subr.bf16.mxu0 0
        %2135 = vmatpush2.bf16.xpose.msra.mxu0 0
        %2136 = vmatprep.subr.bf16.mxu0 0
        %2137 = vmatpush2.bf16.xpose.msra.mxu0 0
        %2138 = vmatprep.mubr.bf16.mxu0 0
        %2139 = vmatmul.mubr.bf16.gmra.mxu0 %v2101
        %v2140 = vpop.f32.mrf.mxu0
        %v2141 = vadd.f32 0.0, %v2140
        %v2142 = vpop.f32.mrf.mxu0
        %v2143 = vpop.f32.mrf.mxu0
        %v2144 = vpop.f32.mrf.mxu0
        %2145 = vdwg.mxu0
        %v2147 = vsel %vm1314, %v2028, 0
        %v2150 = vsel %vm1314, %v2052, 0
        %2152 = vmatprep.subr.bf16.mxu0 0
        %2153 = vmatpush1.bf16.xpose.msra.mxu0 0
        %2154 = vmatprep.subr.bf16.mxu0 0
        %2155 = vmatpush1.bf16.xpose.msra.mxu0 0
        %2156 = vmatprep.subr.bf16.mxu0 0
        %2157 = vmatpush1.bf16.xpose.msra.mxu0 0
        %2158 = vmatprep.subr.bf16.mxu0 0
        %2159 = vmatpush1.bf16.xpose.msra.mxu0 0
        %2160 = vmatprep.subr.bf16.mxu0 0
        %2161 = vmatpush1.bf16.xpose.msra.mxu0 0
        %2162 = vmatprep.subr.bf16.mxu0 0
        %2163 = vmatpush1.bf16.xpose.msra.mxu0 0
        %2164 = vmatprep.subr.bf16.mxu0 0
        %2165 = vmatpush1.bf16.xpose.msra.mxu0 0
        %2166 = vmatprep.subr.bf16.mxu0 0
        %2167 = vmatpush1.bf16.xpose.msra.mxu0 %v2150
        %2168 = vmatprep.subr.bf16.mxu0 0
        %2169 = vmatpush2.bf16.xpose.msra.mxu0 0
        %2170 = vmatprep.subr.bf16.mxu0 0
        %2171 = vmatpush2.bf16.xpose.msra.mxu0 0
        %2172 = vmatprep.subr.bf16.mxu0 0
        %2173 = vmatpush2.bf16.xpose.msra.mxu0 0
        %2174 = vmatprep.subr.bf16.mxu0 0
        %2175 = vmatpush2.bf16.xpose.msra.mxu0 0
        %2176 = vmatprep.subr.bf16.mxu0 0
        %2177 = vmatpush2.bf16.xpose.msra.mxu0 0
        %2178 = vmatprep.subr.bf16.mxu0 0
        %2179 = vmatpush2.bf16.xpose.msra.mxu0 0
        %2180 = vmatprep.subr.bf16.mxu0 0
        %2181 = vmatpush2.bf16.xpose.msra.mxu0 0
        %2182 = vmatprep.subr.bf16.mxu0 0
        %2183 = vmatpush2.bf16.xpose.msra.mxu0 0
        %2184 = vmatprep.mubr.bf16.mxu0 0
        %2185 = vmatmul.mubr.bf16.gmra.mxu0 %v2147
        %v2186 = vpop.f32.mrf.mxu0
        %v2187 = vadd.f32 0.0, %v2186
        %v2188 = vpop.f32.mrf.mxu0
        %v2189 = vpop.f32.mrf.mxu0
        %v2190 = vpop.f32.mrf.mxu0
        %2191 = vdwg.mxu0
        %v2193 = vsel %vm1314, %v2029, 0
        %v2196 = vsel %vm1314, %v2053, 0
        %2198 = vmatprep.subr.bf16.mxu0 0
        %2199 = vmatpush1.bf16.xpose.msra.mxu0 0
        %2200 = vmatprep.subr.bf16.mxu0 0
        %2201 = vmatpush1.bf16.xpose.msra.mxu0 0
        %2202 = vmatprep.subr.bf16.mxu0 0
        %2203 = vmatpush1.bf16.xpose.msra.mxu0 0
        %2204 = vmatprep.subr.bf16.mxu0 0
        %2205 = vmatpush1.bf16.xpose.msra.mxu0 0
        %2206 = vmatprep.subr.bf16.mxu0 0
        %2207 = vmatpush1.bf16.xpose.msra.mxu0 0
        %2208 = vmatprep.subr.bf16.mxu0 0
        %2209 = vmatpush1.bf16.xpose.msra.mxu0 0
        %2210 = vmatprep.subr.bf16.mxu0 0
        %2211 = vmatpush1.bf16.xpose.msra.mxu0 0
        %2212 = vmatprep.subr.bf16.mxu0 0
        %2213 = vmatpush1.bf16.xpose.msra.mxu0 %v2196
        %2214 = vmatprep.subr.bf16.mxu0 0
        %2215 = vmatpush2.bf16.xpose.msra.mxu0 0
        %2216 = vmatprep.subr.bf16.mxu0 0
        %2217 = vmatpush2.bf16.xpose.msra.mxu0 0
        %2218 = vmatprep.subr.bf16.mxu0 0
        %2219 = vmatpush2.bf16.xpose.msra.mxu0 0
        %2220 = vmatprep.subr.bf16.mxu0 0
        %2221 = vmatpush2.bf16.xpose.msra.mxu0 0
        %2222 = vmatprep.subr.bf16.mxu0 0
        %2223 = vmatpush2.bf16.xpose.msra.mxu0 0
        %2224 = vmatprep.subr.bf16.mxu0 0
        %2225 = vmatpush2.bf16.xpose.msra.mxu0 0
        %2226 = vmatprep.subr.bf16.mxu0 0
        %2227 = vmatpush2.bf16.xpose.msra.mxu0 0
        %2228 = vmatprep.subr.bf16.mxu0 0
        %2229 = vmatpush2.bf16.xpose.msra.mxu0 0
        %2230 = vmatprep.mubr.bf16.mxu0 0
        %2231 = vmatmul.mubr.bf16.gmra.mxu0 %v2193
        %v2232 = vpop.f32.mrf.mxu0
        %v2233 = vadd.f32 0.0, %v2232
        %v2234 = vpop.f32.mrf.mxu0
        %v2235 = vpop.f32.mrf.mxu0
        %v2236 = vpop.f32.mrf.mxu0
        %2237 = vdwg.mxu0
        %v2238 = vmul.f32 %v2095, 0.35355338
        %v2239 = vmul.f32 %v2141, 0.35355338
        %v2240 = vmul.f32 %v2187, 0.35355338
        %v2241 = vmul.f32 %v2233, 0.35355338
        %v2242 = vsel %vm1770, %v2238, -inf
        %2243 = vmax.xlane.f32.xlu0 %v2242
        %v2244 = vpop.xlane.xlu0 %2243
        %v2245 = vsel %vm1770, %v2239, -inf
        %2246 = vmax.xlane.f32.xlu0 %v2245
        %v2247 = vpop.xlane.xlu0 %2246
        %v2248 = vsel %vm1770, %v2240, -inf
        %2249 = vmax.xlane.f32.xlu0 %v2248
        %v2250 = vpop.xlane.xlu0 %2249
        %v2251 = vsel %vm1770, %v2241, -inf
        %2252 = vmax.xlane.f32.xlu0 %v2251
        %v2253 = vpop.xlane.xlu0 %2252
        %v2254 = vsub.f32 %v2238, %v2244
        %v2255 = vsub.f32 %v2239, %v2247
        %v2256 = vsub.f32 %v2240, %v2250
        %v2257 = vsub.f32 %v2241, %v2253
        %v2258 = vmul.f32 %v2254, 1.442695
        %v2259 = vpow.pop %v2258
        %v2260 = vmul.f32 %v2255, 1.442695
        %v2261 = vpow.pop %v2260
        %v2262 = vmul.f32 %v2256, 1.442695
        %v2263 = vpow.pop %v2262
        %v2264 = vmul.f32 %v2257, 1.442695
        %v2265 = vpow.pop %v2264
        %v2266 = vsel %vm1770, %v2259, 0.0
        %2267 = vadd.xlane.f32.xlu0 %v2266
        %v2268 = vpop.xlane.xlu0 %2267
        %v2269 = vsel %vm1770, %v2261, 0.0
        %2270 = vadd.xlane.f32.xlu0 %v2269
        %v2271 = vpop.xlane.xlu0 %2270
        %v2272 = vsel %vm1770, %v2263, 0.0
        %2273 = vadd.xlane.f32.xlu0 %v2272
        %v2274 = vpop.xlane.xlu0 %2273
        %v2275 = vsel %vm1770, %v2265, 0.0
        %2276 = vadd.xlane.f32.xlu0 %v2275
        %v2277 = vpop.xlane.xlu0 %2276
        %v2278 = vrcp.pop %v2268
        %v2279 = vrcp.pop %v2271
        %v2280 = vrcp.pop %v2274
        %v2281 = vrcp.pop %v2277
        %v2282 = vmul.f32 %v2259, %v2278
        %v2283 = vmul.f32 %v2261, %v2279
        %v2284 = vmul.f32 %v2263, %v2280
        %v2285 = vmul.f32 %v2265, %v2281
        %v2286 = vpack.c.bf16 %v2282, %v2282
        %v2287 = vpack.c.bf16 %v2283, %v2283
        %v2288 = vpack.c.bf16 %v2284, %v2284
        %v2289 = vpack.c.bf16 %v2285, %v2285
        %2291 = vrot.lane.b32.xlu0 %v2050, 96
        %v2292 = vpop.permute.xlu0 %2291
        %v2295 = vsel %vm1770, %v2286, 0
        %2297 = vmatprep.subr.bf16.mxu0 0
        %2298 = vmatpush1.bf16.msra.mxu0 0
        %2299 = vmatprep.subr.bf16.mxu0 0
        %2300 = vmatpush1.bf16.msra.mxu0 0
        %2301 = vmatprep.subr.bf16.mxu0 0
        %2302 = vmatpush1.bf16.msra.mxu0 0
        %2303 = vmatprep.subr.bf16.mxu0 0
        %2304 = vmatpush1.bf16.msra.mxu0 0
        %2305 = vmatprep.subr.bf16.mxu0 0
        %2306 = vmatpush1.bf16.msra.mxu0 0
        %2307 = vmatprep.subr.bf16.mxu0 0
        %2308 = vmatpush1.bf16.msra.mxu0 0
        %2309 = vmatprep.subr.bf16.mxu0 0
        %2310 = vmatpush1.bf16.msra.mxu0 0
        %2311 = vmatprep.subr.bf16.mxu0 0
        %2312 = vmatpush1.bf16.msra.mxu0 %v2292
        %2313 = vmatprep.subr.bf16.mxu0 0
        %2314 = vmatpush2.bf16.msra.mxu0 0
        %2315 = vmatprep.subr.bf16.mxu0 0
        %2316 = vmatpush2.bf16.msra.mxu0 0
        %2317 = vmatprep.subr.bf16.mxu0 0
        %2318 = vmatpush2.bf16.msra.mxu0 0
        %2319 = vmatprep.subr.bf16.mxu0 0
        %2320 = vmatpush2.bf16.msra.mxu0 0
        %2321 = vmatprep.subr.bf16.mxu0 0
        %2322 = vmatpush2.bf16.msra.mxu0 0
        %2323 = vmatprep.subr.bf16.mxu0 0
        %2324 = vmatpush2.bf16.msra.mxu0 0
        %2325 = vmatprep.subr.bf16.mxu0 0
        %2326 = vmatpush2.bf16.msra.mxu0 0
        %2327 = vmatprep.subr.bf16.mxu0 0
        %2328 = vmatpush2.bf16.msra.mxu0 0
        %2329 = vmatprep.mubr.bf16.mxu0 0
        %2330 = vmatmul.mubr.bf16.gmra.mxu0 %v2295
        %v2331 = vpop.f32.mrf.mxu0
        %v2332 = vadd.f32 0.0, %v2331
        %v2333 = vpop.f32.mrf.mxu0
        %v2334 = vpop.f32.mrf.mxu0
        %v2335 = vpop.f32.mrf.mxu0
        %2336 = vdwg.mxu0
        %2338 = vrot.lane.b32.xlu0 %v2051, 96
        %v2339 = vpop.permute.xlu0 %2338
        %v2342 = vsel %vm1770, %v2287, 0
        %2344 = vmatprep.subr.bf16.mxu0 0
        %2345 = vmatpush1.bf16.msra.mxu0 0
        %2346 = vmatprep.subr.bf16.mxu0 0
        %2347 = vmatpush1.bf16.msra.mxu0 0
        %2348 = vmatprep.subr.bf16.mxu0 0
        %2349 = vmatpush1.bf16.msra.mxu0 0
        %2350 = vmatprep.subr.bf16.mxu0 0
        %2351 = vmatpush1.bf16.msra.mxu0 0
        %2352 = vmatprep.subr.bf16.mxu0 0
        %2353 = vmatpush1.bf16.msra.mxu0 0
        %2354 = vmatprep.subr.bf16.mxu0 0
        %2355 = vmatpush1.bf16.msra.mxu0 0
        %2356 = vmatprep.subr.bf16.mxu0 0
        %2357 = vmatpush1.bf16.msra.mxu0 0
        %2358 = vmatprep.subr.bf16.mxu0 0
        %2359 = vmatpush1.bf16.msra.mxu0 %v2339
        %2360 = vmatprep.subr.bf16.mxu0 0
        %2361 = vmatpush2.bf16.msra.mxu0 0
        %2362 = vmatprep.subr.bf16.mxu0 0
        %2363 = vmatpush2.bf16.msra.mxu0 0
        %2364 = vmatprep.subr.bf16.mxu0 0
        %2365 = vmatpush2.bf16.msra.mxu0 0
        %2366 = vmatprep.subr.bf16.mxu0 0
        %2367 = vmatpush2.bf16.msra.mxu0 0
        %2368 = vmatprep.subr.bf16.mxu0 0
        %2369 = vmatpush2.bf16.msra.mxu0 0
        %2370 = vmatprep.subr.bf16.mxu0 0
        %2371 = vmatpush2.bf16.msra.mxu0 0
        %2372 = vmatprep.subr.bf16.mxu0 0
        %2373 = vmatpush2.bf16.msra.mxu0 0
        %2374 = vmatprep.subr.bf16.mxu0 0
        %2375 = vmatpush2.bf16.msra.mxu0 0
        %2376 = vmatprep.mubr.bf16.mxu0 0
        %2377 = vmatmul.mubr.bf16.gmra.mxu0 %v2342
        %v2378 = vpop.f32.mrf.mxu0
        %v2379 = vadd.f32 0.0, %v2378
        %v2380 = vpop.f32.mrf.mxu0
        %v2381 = vpop.f32.mrf.mxu0
        %v2382 = vpop.f32.mrf.mxu0
        %2383 = vdwg.mxu0
        %2385 = vrot.lane.b32.xlu0 %v2052, 96
        %v2386 = vpop.permute.xlu0 %2385
        %v2389 = vsel %vm1770, %v2288, 0
        %2391 = vmatprep.subr.bf16.mxu0 0
        %2392 = vmatpush1.bf16.msra.mxu0 0
        %2393 = vmatprep.subr.bf16.mxu0 0
        %2394 = vmatpush1.bf16.msra.mxu0 0
        %2395 = vmatprep.subr.bf16.mxu0 0
        %2396 = vmatpush1.bf16.msra.mxu0 0
        %2397 = vmatprep.subr.bf16.mxu0 0
        %2398 = vmatpush1.bf16.msra.mxu0 0
        %2399 = vmatprep.subr.bf16.mxu0 0
        %2400 = vmatpush1.bf16.msra.mxu0 0
        %2401 = vmatprep.subr.bf16.mxu0 0
        %2402 = vmatpush1.bf16.msra.mxu0 0
        %2403 = vmatprep.subr.bf16.mxu0 0
        %2404 = vmatpush1.bf16.msra.mxu0 0
        %2405 = vmatprep.subr.bf16.mxu0 0
        %2406 = vmatpush1.bf16.msra.mxu0 %v2386
        %2407 = vmatprep.subr.bf16.mxu0 0
        %2408 = vmatpush2.bf16.msra.mxu0 0
        %2409 = vmatprep.subr.bf16.mxu0 0
        %2410 = vmatpush2.bf16.msra.mxu0 0
        %2411 = vmatprep.subr.bf16.mxu0 0
        %2412 = vmatpush2.bf16.msra.mxu0 0
        %2413 = vmatprep.subr.bf16.mxu0 0
        %2414 = vmatpush2.bf16.msra.mxu0 0
        %2415 = vmatprep.subr.bf16.mxu0 0
        %2416 = vmatpush2.bf16.msra.mxu0 0
        %2417 = vmatprep.subr.bf16.mxu0 0
        %2418 = vmatpush2.bf16.msra.mxu0 0
        %2419 = vmatprep.subr.bf16.mxu0 0
        %2420 = vmatpush2.bf16.msra.mxu0 0
        %2421 = vmatprep.subr.bf16.mxu0 0
        %2422 = vmatpush2.bf16.msra.mxu0 0
        %2423 = vmatprep.mubr.bf16.mxu0 0
        %2424 = vmatmul.mubr.bf16.gmra.mxu0 %v2389
        %v2425 = vpop.f32.mrf.mxu0
        %v2426 = vadd.f32 0.0, %v2425
        %v2427 = vpop.f32.mrf.mxu0
        %v2428 = vpop.f32.mrf.mxu0
        %v2429 = vpop.f32.mrf.mxu0
        %2430 = vdwg.mxu0
        %2432 = vrot.lane.b32.xlu0 %v2053, 96
        %v2433 = vpop.permute.xlu0 %2432
        %v2436 = vsel %vm1770, %v2289, 0
        %2438 = vmatprep.subr.bf16.mxu0 0
        %2439 = vmatpush1.bf16.msra.mxu0 0
        %2440 = vmatprep.subr.bf16.mxu0 0
        %2441 = vmatpush1.bf16.msra.mxu0 0
        %2442 = vmatprep.subr.bf16.mxu0 0
        %2443 = vmatpush1.bf16.msra.mxu0 0
        %2444 = vmatprep.subr.bf16.mxu0 0
        %2445 = vmatpush1.bf16.msra.mxu0 0
        %2446 = vmatprep.subr.bf16.mxu0 0
        %2447 = vmatpush1.bf16.msra.mxu0 0
        %2448 = vmatprep.subr.bf16.mxu0 0
        %2449 = vmatpush1.bf16.msra.mxu0 0
        %2450 = vmatprep.subr.bf16.mxu0 0
        %2451 = vmatpush1.bf16.msra.mxu0 0
        %2452 = vmatprep.subr.bf16.mxu0 0
        %2453 = vmatpush1.bf16.msra.mxu0 %v2433
        %2454 = vmatprep.subr.bf16.mxu0 0
        %2455 = vmatpush2.bf16.msra.mxu0 0
        %2456 = vmatprep.subr.bf16.mxu0 0
        %2457 = vmatpush2.bf16.msra.mxu0 0
        %2458 = vmatprep.subr.bf16.mxu0 0
        %2459 = vmatpush2.bf16.msra.mxu0 0
        %2460 = vmatprep.subr.bf16.mxu0 0
        %2461 = vmatpush2.bf16.msra.mxu0 0
        %2462 = vmatprep.subr.bf16.mxu0 0
        %2463 = vmatpush2.bf16.msra.mxu0 0
        %2464 = vmatprep.subr.bf16.mxu0 0
        %2465 = vmatpush2.bf16.msra.mxu0 0
        %2466 = vmatprep.subr.bf16.mxu0 0
        %2467 = vmatpush2.bf16.msra.mxu0 0
        %2468 = vmatprep.subr.bf16.mxu0 0
        %2469 = vmatpush2.bf16.msra.mxu0 0
        %2470 = vmatprep.mubr.bf16.mxu0 0
        %2471 = vmatmul.mubr.bf16.gmra.mxu0 %v2436
        %v2472 = vpop.f32.mrf.mxu0
        %v2473 = vadd.f32 0.0, %v2472
        %v2474 = vpop.f32.mrf.mxu0
        %v2475 = vpop.f32.mrf.mxu0
        %v2476 = vpop.f32.mrf.mxu0
        %2477 = vdwg.mxu0
        %2479 = vrot.lane.b32.xlu0 %v2379, 8
        %v2480 = vpop.permute.xlu0 %2479
        %2483 = vrot.lane.b32.xlu0 %v2426, 16
        %v2484 = vpop.permute.xlu0 %2483
        %2487 = vrot.lane.b32.xlu0 %v2473, 24
        %v2488 = vpop.permute.xlu0 %2487
        %v2490 = vsel %vm1314, %v2332, %v2480
        %v2491 = vsel %vm1770, %v2490, %v2484
        %v2492 = vsel %vm1772, %v2491, %v2488
        %v2493 = vsel %vm1770, %v2282, 0.0
        %v2494 = vsel %vm1770, %v2283, 0.0
        %v2495 = vadd.f32 %v2493, %v2494
        %v2496 = vsel %vm1770, %v2284, 0.0
        %v2497 = vadd.f32 %v2495, %v2496
        %v2498 = vsel %vm1770, %v2285, 0.0
        %v2499 = vadd.f32 %v2497, %v2498
        %v2500 = vmul.f32 %v2499, %v1781
        %v2501 = vld [vmem:[%s1146] sm:$0xf]
        %v2502 = vld [vmem:[%s1146 + $0x4] sm:$0xf]
        %v2503 = vld [vmem:[%s1146 + $0x8] sm:$0xf]
        %v2504 = vld [vmem:[%s1146 + $0xc] sm:$0xf]
        %v2505 = vpack.c.bf16 %v2492, %v2492
        %v2510 = vunpack.c.l.b16 %v2501
        %v2511 = vunpack.c.l.b16 %v2502
        %v2512 = vunpack.c.l.b16 %v2503
        %v2513 = vunpack.c.l.b16 %v2504
        %v2514 = vpack.c.b16 %v2511, %v2510
        %v2515 = vpack.c.b16 %v2513, %v2512
        %v2519 = vsel %vm1201, %v2505, 0
        %2521 = vmatprep.subr.bf16.mxu0 0
        %2522 = vmatpush1.bf16.msra.mxu0 0
        %2523 = vmatprep.subr.bf16.mxu0 0
        %2524 = vmatpush1.bf16.msra.mxu0 0
        %2525 = vmatprep.subr.bf16.mxu0 0
        %2526 = vmatpush1.bf16.msra.mxu0 0
        %2527 = vmatprep.subr.bf16.mxu0 0
        %2528 = vmatpush1.bf16.msra.mxu0 0
        %2529 = vmatprep.subr.bf16.mxu0 0
        %2530 = vmatpush1.bf16.msra.mxu0 0
        %2531 = vmatprep.subr.bf16.mxu0 0
        %2532 = vmatpush1.bf16.msra.mxu0 0
        %2533 = vmatprep.subr.bf16.mxu0 0
        %2534 = vmatpush1.bf16.msra.mxu0 %v2515
        %2535 = vmatprep.subr.bf16.mxu0 0
        %2536 = vmatpush1.bf16.msra.mxu0 %v2514
        %2537 = vmatprep.subr.bf16.mxu0 0
        %2538 = vmatpush2.bf16.msra.mxu0 0
        %2539 = vmatprep.subr.bf16.mxu0 0
        %2540 = vmatpush2.bf16.msra.mxu0 0
        %2541 = vmatprep.subr.bf16.mxu0 0
        %2542 = vmatpush2.bf16.msra.mxu0 0
        %2543 = vmatprep.subr.bf16.mxu0 0
        %2544 = vmatpush2.bf16.msra.mxu0 0
        %2545 = vmatprep.subr.bf16.mxu0 0
        %2546 = vmatpush2.bf16.msra.mxu0 0
        %2547 = vmatprep.subr.bf16.mxu0 0
        %2548 = vmatpush2.bf16.msra.mxu0 0
        %2549 = vmatprep.subr.bf16.mxu0 0
        %2550 = vmatpush2.bf16.msra.mxu0 0
        %2551 = vmatprep.subr.bf16.mxu0 0
        %2552 = vmatpush2.bf16.msra.mxu0 0
        %2553 = vmatprep.mubr.bf16.mxu0 0
        %2554 = vmatmul.mubr.bf16.gmra.mxu0 %v2519
        %v2555 = vpop.f32.mrf.mxu0
        %v2556 = vadd.f32 0.0, %v2555
        %v2557 = vpop.f32.mrf.mxu0
        %v2558 = vpop.f32.mrf.mxu0
        %v2559 = vpop.f32.mrf.mxu0
        %2560 = vdwg.mxu0
        %v2561 = vadd.f32 %v1851, %v2556
        %v2562 = vld [vmem:[%s1149] sm:$0x1]
        %v2564 = vlaneseq
        %v2565 = vshrl.u32 %v2564, 7
        %v2566 = vsub.s32 0, %v2565
        %v2567 = vrot.slane %v2562, %v2566
        %v2569 = vadd.f32 %v2561, %v2567
        %v2570 = vld [vmem:[%s1106] sm:$0x1]
        %v2571 = vld [vmem:[%s1109] sm:$0x1]
        %v2572 = vsel %vm1201, %v2569, 0.0
        %2573 = vadd.xlane.f32.xlu0 %v2572
        %v2574 = vpop.xlane.xlu0 %2573
        %v2575 = vmul.f32 %v2574, %v1205
        %v2576 = vsub.f32 %v2569, %v2575
        %v2577 = vmul.f32 %v2576, %v2576
        %v2578 = vsel %vm1201, %v2577, 0.0
        %2579 = vadd.xlane.f32.xlu0 %v2578
        %v2580 = vpop.xlane.xlu0 %2579
        %v2581 = vmul.f32 %v2580, %v1205
        %v2582 = vadd.f32 %v2581, 1e-05
        %v2583 = vrsqrt.pop %v2582
        %v2584 = vmul.f32 %v2576, %v2583
        %v2586 = vlaneseq
        %v2587 = vshrl.u32 %v2586, 7
        %v2588 = vsub.s32 0, %v2587
        %v2589 = vrot.slane %v2570, %v2588
        %v2591 = vmul.f32 %v2584, %v2589
        %v2593 = vlaneseq
        %v2594 = vshrl.u32 %v2593, 7
        %v2595 = vsub.s32 0, %v2594
        %v2596 = vrot.slane %v2571, %v2595
        %v2598 = vadd.f32 %v2591, %v2596
        %v2599 = vld [vmem:[%s1154] sm:$0xf]
        %v2600 = vld [vmem:[%s1154 + $0x4] sm:$0xf]
        %v2601 = vld [vmem:[%s1154 + $0x8] sm:$0xf]
        %v2602 = vld [vmem:[%s1154 + $0xc] sm:$0xf]
        %v2603 = vpack.c.bf16 %v2598, %v2598
        %v2604 = vld [vmem:[%s1157] sm:$0x1]
        %v2606 = vlaneseq
        %v2607 = vshrl.u32 %v2606, 7
        %v2608 = vsub.s32 0, %v2607
        %v2609 = vrot.slane %v2604, %v2608
        %v2615 = vunpack.c.l.b16 %v2599
        %v2616 = vunpack.c.l.b16 %v2600
        %v2617 = vunpack.c.l.b16 %v2601
        %v2618 = vunpack.c.l.b16 %v2602
        %v2619 = vpack.c.b16 %v2616, %v2615
        %v2620 = vpack.c.b16 %v2618, %v2617
        %v2624 = vsel %vm1201, %v2603, 0
        %2626 = vmatprep.subr.bf16.mxu0 0
        %2627 = vmatpush1.bf16.msra.mxu0 0
        %2628 = vmatprep.subr.bf16.mxu0 0
        %2629 = vmatpush1.bf16.msra.mxu0 0
        %2630 = vmatprep.subr.bf16.mxu0 0
        %2631 = vmatpush1.bf16.msra.mxu0 0
        %2632 = vmatprep.subr.bf16.mxu0 0
        %2633 = vmatpush1.bf16.msra.mxu0 0
        %2634 = vmatprep.subr.bf16.mxu0 0
        %2635 = vmatpush1.bf16.msra.mxu0 0
        %2636 = vmatprep.subr.bf16.mxu0 0
        %2637 = vmatpush1.bf16.msra.mxu0 0
        %2638 = vmatprep.subr.bf16.mxu0 0
        %2639 = vmatpush1.bf16.msra.mxu0 %v2620
        %2640 = vmatprep.subr.bf16.mxu0 0
        %2641 = vmatpush1.bf16.msra.mxu0 %v2619
        %2642 = vmatprep.subr.bf16.mxu0 0
        %2643 = vmatpush2.bf16.msra.mxu0 0
        %2644 = vmatprep.subr.bf16.mxu0 0
        %2645 = vmatpush2.bf16.msra.mxu0 0
        %2646 = vmatprep.subr.bf16.mxu0 0
        %2647 = vmatpush2.bf16.msra.mxu0 0
        %2648 = vmatprep.subr.bf16.mxu0 0
        %2649 = vmatpush2.bf16.msra.mxu0 0
        %2650 = vmatprep.subr.bf16.mxu0 0
        %2651 = vmatpush2.bf16.msra.mxu0 0
        %2652 = vmatprep.subr.bf16.mxu0 0
        %2653 = vmatpush2.bf16.msra.mxu0 0
        %2654 = vmatprep.subr.bf16.mxu0 0
        %2655 = vmatpush2.bf16.msra.mxu0 0
        %2656 = vmatprep.subr.bf16.mxu0 0
        %2657 = vmatpush2.bf16.msra.mxu0 0
        %2658 = vmatprep.mubr.bf16.mxu0 0
        %2659 = vmatmul.mubr.bf16.gmra.mxu0 %v2624
        %v2660 = vpop.f32.mrf.mxu0
        %v2661 = vadd.f32 %v2609, %v2660
        %v2662 = vpop.f32.mrf.mxu0
        %v2663 = vpop.f32.mrf.mxu0
        %v2664 = vpop.f32.mrf.mxu0
        %2665 = vdwg.mxu0
        %v2666 = vmul.f32 %v2661, 0.5
        %v2667 = vmul.f32 %v2661, 0.044715
        %v2668 = vmul.f32 %v2667, %v2661
        %v2669 = vmul.f32 %v2668, %v2661
        %v2670 = vadd.f32 %v2661, %v2669
        %v2671 = vmul.f32 %v2670, 0.7978846
        %v2672 = vtanh.pop %v2671
        %v2673 = vadd.f32 %v2672, 1.0
        %v2674 = vmul.f32 %v2666, %v2673
        %v2675 = vld [vmem:[%s1162] sm:$0xf]
        %v2676 = vld [vmem:[%s1162 + $0x4] sm:$0xf]
        %v2677 = vld [vmem:[%s1162 + $0x8] sm:$0xf]
        %v2678 = vld [vmem:[%s1162 + $0xc] sm:$0xf]
        %v2679 = vld [vmem:[%s1162 + $0x10] sm:$0xf]
        %v2680 = vld [vmem:[%s1162 + $0x14] sm:$0xf]
        %v2681 = vld [vmem:[%s1162 + $0x18] sm:$0xf]
        %v2682 = vld [vmem:[%s1162 + $0x1c] sm:$0xf]
        %v2683 = vld [vmem:[%s1162 + $0x20] sm:$0xf]
        %v2684 = vld [vmem:[%s1162 + $0x24] sm:$0xf]
        %v2685 = vld [vmem:[%s1162 + $0x28] sm:$0xf]
        %v2686 = vld [vmem:[%s1162 + $0x2c] sm:$0xf]
        %v2687 = vld [vmem:[%s1162 + $0x30] sm:$0xf]
        %v2688 = vld [vmem:[%s1162 + $0x34] sm:$0xf]
        %v2689 = vld [vmem:[%s1162 + $0x38] sm:$0xf]
        %v2690 = vld [vmem:[%s1162 + $0x3c] sm:$0xf]
        %v2691 = vpack.c.bf16 %v2674, %v2674
        %v2708 = vunpack.c.l.b16 %v2675
        %v2709 = vunpack.c.l.b16 %v2676
        %v2710 = vunpack.c.l.b16 %v2677
        %v2711 = vunpack.c.l.b16 %v2678
        %v2712 = vunpack.c.l.b16 %v2679
        %v2713 = vunpack.c.l.b16 %v2680
        %v2714 = vunpack.c.l.b16 %v2681
        %v2715 = vunpack.c.l.b16 %v2682
        %v2716 = vunpack.c.l.b16 %v2683
        %v2717 = vunpack.c.l.b16 %v2684
        %v2718 = vunpack.c.l.b16 %v2685
        %v2719 = vunpack.c.l.b16 %v2686
        %v2720 = vunpack.c.l.b16 %v2687
        %v2721 = vunpack.c.l.b16 %v2688
        %v2722 = vunpack.c.l.b16 %v2689
        %v2723 = vunpack.c.l.b16 %v2690
        %v2724 = vpack.c.b16 %v2709, %v2708
        %v2725 = vpack.c.b16 %v2711, %v2710
        %v2726 = vpack.c.b16 %v2713, %v2712
        %v2727 = vpack.c.b16 %v2715, %v2714
        %v2728 = vpack.c.b16 %v2717, %v2716
        %v2729 = vpack.c.b16 %v2719, %v2718
        %v2730 = vpack.c.b16 %v2721, %v2720
        %v2731 = vpack.c.b16 %v2723, %v2722
        %2740 = vmatprep.subr.bf16.mxu0 0
        %2741 = vmatpush1.bf16.msra.mxu0 %v2731
        %2742 = vmatprep.subr.bf16.mxu0 0
        %2743 = vmatpush1.bf16.msra.mxu0 %v2730
        %2744 = vmatprep.subr.bf16.mxu0 0
        %2745 = vmatpush1.bf16.msra.mxu0 %v2729
        %2746 = vmatprep.subr.bf16.mxu0 0
        %2747 = vmatpush1.bf16.msra.mxu0 %v2728
        %2748 = vmatprep.subr.bf16.mxu0 0
        %2749 = vmatpush1.bf16.msra.mxu0 %v2727
        %2750 = vmatprep.subr.bf16.mxu0 0
        %2751 = vmatpush1.bf16.msra.mxu0 %v2726
        %2752 = vmatprep.subr.bf16.mxu0 0
        %2753 = vmatpush1.bf16.msra.mxu0 %v2725
        %2754 = vmatprep.subr.bf16.mxu0 0
        %2755 = vmatpush1.bf16.msra.mxu0 %v2724
        %2756 = vmatprep.subr.bf16.mxu0 0
        %2757 = vmatpush2.bf16.msra.mxu0 0
        %2758 = vmatprep.subr.bf16.mxu0 0
        %2759 = vmatpush2.bf16.msra.mxu0 0
        %2760 = vmatprep.subr.bf16.mxu0 0
        %2761 = vmatpush2.bf16.msra.mxu0 0
        %2762 = vmatprep.subr.bf16.mxu0 0
        %2763 = vmatpush2.bf16.msra.mxu0 0
        %2764 = vmatprep.subr.bf16.mxu0 0
        %2765 = vmatpush2.bf16.msra.mxu0 0
        %2766 = vmatprep.subr.bf16.mxu0 0
        %2767 = vmatpush2.bf16.msra.mxu0 0
        %2768 = vmatprep.subr.bf16.mxu0 0
        %2769 = vmatpush2.bf16.msra.mxu0 0
        %2770 = vmatprep.subr.bf16.mxu0 0
        %2771 = vmatpush2.bf16.msra.mxu0 0
        %2772 = vmatprep.mubr.bf16.mxu0 0
        %2773 = vmatmul.mubr.bf16.gmra.mxu0 %v2691
        %v2774 = vpop.f32.mrf.mxu0
        %v2775 = vadd.f32 0.0, %v2774
        %v2776 = vpop.f32.mrf.mxu0
        %v2777 = vpop.f32.mrf.mxu0
        %v2778 = vpop.f32.mrf.mxu0
        %2779 = vdwg.mxu0
        %v2780 = vadd.f32 %v2569, %v2775
        %v2781 = vld [vmem:[%s1165] sm:$0x1]
        %v2783 = vlaneseq
        %v2784 = vshrl.u32 %v2783, 7
        %v2785 = vsub.s32 0, %v2784
        %v2786 = vrot.slane %v2781, %v2785
        %v2788 = vadd.f32 %v2780, %v2786
        %2789 = vst.msk [vmem:[%s1173] sm:$0xff] %vm1314, %v1782
        %2790 = vst.msk [vmem:[%s1181] sm:$0xff] %vm1770, %v2500
        %p2791 = scmp.eq.s32.totalorder %s46, 1
        // Predicated region
        $region121: #{transformer_decoder_forward.1} parent=115 // pred_check
          %p2792 = pneg %p2791
        $region122: #{transformer_decoder_forward.1} parent=115 // pred_check_branch
          %2794 = sbr.rel (%p2792) target = $region124
        $region123: #{transformer_decoder_forward.1} parent=115 // pred_region
          %v2795 = vld [vmem:[%s22] sm:$0x1]
          %v2796 = vld [vmem:[%s23] sm:$0x1]
          %v2797 = vsel %vm1201, %v2788, 0.0
          %2798 = vadd.xlane.f32.xlu0 %v2797
          %v2799 = vpop.xlane.xlu0 %2798
          %v2800 = vmul.f32 %v2799, %v1205
          %v2801 = vsub.f32 %v2788, %v2800
          %v2802 = vmul.f32 %v2801, %v2801
          %v2803 = vsel %vm1201, %v2802, 0.0
          %2804 = vadd.xlane.f32.xlu0 %v2803
          %v2805 = vpop.xlane.xlu0 %2804
          %v2806 = vmul.f32 %v2805, %v1205
          %v2807 = vadd.f32 %v2806, 1e-05
          %v2808 = vrsqrt.pop %v2807
          %v2809 = vmul.f32 %v2801, %v2808
          %v2811 = vlaneseq
          %v2812 = vshrl.u32 %v2811, 7
          %v2813 = vsub.s32 0, %v2812
          %v2814 = vrot.slane %v2795, %v2813
          %v2816 = vmul.f32 %v2809, %v2814
          %v2818 = vlaneseq
          %v2819 = vshrl.u32 %v2818, 7
          %v2820 = vsub.s32 0, %v2819
          %v2821 = vrot.slane %v2796, %v2820
          %v2823 = vadd.f32 %v2816, %v2821
          %2824 = vst.msk [vmem:[%s1062] sm:$0xff] %vm1201, %v2823
        $region124: #{transformer_decoder_forward.1} parent=115 // pred_fallthru
          _
        %p2825 = scmp.lt.s32.totalorder %s46, 1
        // Predicated region
        $region125: #{transformer_decoder_forward.1} parent=115 // pred_check
          %p2826 = pneg %p2825
        $region126: #{transformer_decoder_forward.1} parent=115 // pred_check_branch
          %2828 = sbr.rel (%p2826) target = $region128
        $region127: #{transformer_decoder_forward.1} parent=115 // pred_region
          %2829 = vst.msk [vmem:[%s1062] sm:$0xff] %vm1201, %v2788
        $region128: #{transformer_decoder_forward.1} parent=115 // pred_fallthru
          _
        %s2830 = sand.u32 %s675, 1
        %s2831 = scalar_lea.sflag [#allocation3], %s2830
        %s2832 = sand.u32 %s675, 1
        %s2833 = smul.addr %s2832, 8
        %s2834 = scalar_lea.vmem [#allocation2], %s2833
        %p2835 = scmp.lt.s32.totalorder %s46, 1
        %s2836 = scalar_select %p2835, %s46, 1
        %p2837 = scmp.lt.s32.totalorder %s45, 1
        %s2838 = scalar_select %p2837, %s45, 1
        %s2839 = smul.addr %s2836, 2
        %s2840 = sadd.s32 %s2838, %s2839
        %s2841 = smul.addr %s2840, 8
        %s2842 = scalar_lea.vmem %s25, %s2841
        %p2843 = scmp.lt.s32.totalorder %s46, 1
        %s2844 = scalar_select %p2843, %s46, 1
        %p2845 = scmp.lt.s32.totalorder %s45, 1
        %s2846 = scalar_select %p2845, %s45, 1
        %s2847 = smul.addr %s2844, 2
        %s2848 = sadd.s32 %s2846, %s2847
        %s2849 = smul.addr %s2848, 8
        %s2850 = scalar_lea.vmem %s26, %s2849
        // Predicated region
        $region129: #{transformer_decoder_forward.1} parent=115 // pred_check
          %p2851 = pneg %p685
        $region130: #{transformer_decoder_forward.1} parent=115 // pred_check_branch
          %2853 = sbr.rel (%p2851) target = $region132
        $region131: #{transformer_decoder_forward.1} parent=115 // pred_region
          %s2855 = ssub.s32 128, 128
          %2856 = vsyncadd %s2831, %s2855
          %s2857 = smul.addr %s45, 128
          %s2858 = scalar_lea.hbm %s24, %s2857
          %s2860 = sshll.u32 %s2834, 4
          %s2861 = int_to_ptr.vmem [resolvable:$true] %s2860
          %2863 = dma.vmem_to_hbm [thread:$0]  %s2861, 128, %s2858, %s2831
        $region132: #{transformer_decoder_forward.1} parent=115 // pred_fallthru
          _
        // Predicated region
        $region133: #{transformer_decoder_forward.1} parent=115 // pred_check
          %p2864 = pneg %p713
        $region134: #{transformer_decoder_forward.1} parent=115 // pred_check_branch
          %2866 = sbr.rel (%p2864) target = $region136
        $region135: #{transformer_decoder_forward.1} parent=115 // pred_region
          _
        $region136: #{transformer_decoder_forward.1} parent=115 // pred_fallthru
          _
        // Predicated region
        $region137: #{transformer_decoder_forward.1} parent=115 // pred_check
          %p2867 = pneg %p741
        $region138: #{transformer_decoder_forward.1} parent=115 // pred_check_branch
          %2869 = sbr.rel (%p2867) target = $region140
        $region139: #{transformer_decoder_forward.1} parent=115 // pred_region
          _
        $region140: #{transformer_decoder_forward.1} parent=115 // pred_fallthru
          _
      $region116: #{transformer_decoder_forward.1} parent=5 // pred_fallthru
        _
      %p2870 = scmp.le.s32.totalorder 2, %s36
      // Predicated region
      $region141: #{transformer_decoder_forward.1} parent=5 // pred_check
        %p2871 = pneg %p2870
      $region142: #{transformer_decoder_forward.1} parent=5 // pred_check_branch
        %2873 = sbr.rel (%p2871) target = $region144
      $region143: #{transformer_decoder_forward.1} parent=5 // pred_region
        %s2874 = ssub.s32 %s36, 2
        // Predicated region
        $region145: #{transformer_decoder_forward.1} parent=143 // pred_check
          %p2875 = pneg %p691
        $region146: #{transformer_decoder_forward.1} parent=143 // pred_check_branch
          %2877 = sbr.rel (%p2875) target = $region148
        $region147: #{transformer_decoder_forward.1} parent=143 // pred_region
          %s2878 = sand.u32 %s676, 1
          %s2879 = scalar_lea.sflag [#allocation3], %s2878
          %s2880 = sand.u32 %s676, 1
          %s2881 = smul.addr %s2880, 8
          %s2882 = scalar_lea.vmem [#allocation2], %s2881
          %2883 = dma.done %s2879, 128
        $region148: #{transformer_decoder_forward.1} parent=143 // pred_fallthru
          _
        // Predicated region
        $region149: #{transformer_decoder_forward.1} parent=143 // pred_check
          %p2884 = pneg %p719
        $region150: #{transformer_decoder_forward.1} parent=143 // pred_check_branch
          %2886 = sbr.rel (%p2884) target = $region152
        $region151: #{transformer_decoder_forward.1} parent=143 // pred_region
          %p2887 = scmp.lt.s32.totalorder %s48, 1
          %s2888 = scalar_select %p2887, %s48, 1
          %p2889 = scmp.lt.s32.totalorder %s47, 1
          %s2890 = scalar_select %p2889, %s47, 1
          %s2891 = smul.addr %s2888, 2
          %s2892 = sadd.s32 %s2890, %s2891
          %s2893 = smul.addr %s2892, 8
          %s2894 = scalar_lea.vmem %s25, %s2893
        $region152: #{transformer_decoder_forward.1} parent=143 // pred_fallthru
          _
        // Predicated region
        $region153: #{transformer_decoder_forward.1} parent=143 // pred_check
          %p2895 = pneg %p747
        $region154: #{transformer_decoder_forward.1} parent=143 // pred_check_branch
          %2897 = sbr.rel (%p2895) target = $region156
        $region155: #{transformer_decoder_forward.1} parent=143 // pred_region
          %p2898 = scmp.lt.s32.totalorder %s48, 1
          %s2899 = scalar_select %p2898, %s48, 1
          %p2900 = scmp.lt.s32.totalorder %s47, 1
          %s2901 = scalar_select %p2900, %s47, 1
          %s2902 = smul.addr %s2899, 2
          %s2903 = sadd.s32 %s2901, %s2902
          %s2904 = smul.addr %s2903, 8
          %s2905 = scalar_lea.vmem %s26, %s2904
        $region156: #{transformer_decoder_forward.1} parent=143 // pred_fallthru
          _
      $region144: #{transformer_decoder_forward.1} parent=5 // pred_fallthru
        _
    $region6: #{transformer_decoder_forward.1} parent=1 // loop_footer
      %s40 = sadd.s32 1, %s36
    $region7: #{transformer_decoder_forward.1} parent=1 // loop_footer_branch
      %35 = sbr.rel target = $region3
    $region8: #{transformer_decoder_forward.1} parent=1 // loop_exit
      _
    %2906 = vsyncpa [#allocation3], 1
    %s2907 = scalar_lea.sflag [#allocation3], 1
    %2908 = vsyncpa %s2907, 1

</llo_original>
